<compile_context>
chip_gen: v6e
topology: v6e:2x2x1
jax: 0.10.0
libtpu: 0.0.40
codegen_flags: <defaults>
</compile_context>

<pallas_src>
import math
import jax
import jax.numpy as jnp
from jax import lax
from jax.experimental import pallas as pl
from jax.experimental.pallas import tpu as pltpu


def _make_attention_kernel(num_heads: int, embed_dim: int, seq_len: int,
                           batch_tile: int):
    H, E, T, Bt = num_heads, embed_dim, seq_len, batch_tile
    D = E // H
    M = Bt * T
    scale = 1.0 / math.sqrt(D)

    def kernel(x_ref, wqkv_ref, bqkv_ref, wo_ref, bo_ref, o_ref, attn_ref):
        # --- fused QKV projection with fat M = Bt*T (fills the MXU) ----------
        x = x_ref[...].reshape(M, E)                       # leading-dim merge: free
        qkv = jnp.dot(x, wqkv_ref[...],
                      preferred_element_type=jnp.float32) + bqkv_ref[...]
        q = qkv[:, 0 * E:1 * E] * scale                    # fold 1/sqrt(D) into q
        k = qkv[:, 1 * E:2 * E]
        v = qkv[:, 2 * E:3 * E]

        # --- causal additive bias: built once per grid step, shared by heads -
        row = lax.broadcasted_iota(jnp.int32, (T, T), 0)
        col = lax.broadcasted_iota(jnp.int32, (T, T), 1)
        bias = jnp.where(col <= row, 0.0, -1e30).astype(jnp.float32)  # (T, T)

        # --- per-head attention, batched over the Bt rows of this tile -------
        for h in range(H):
            cols = slice(h * D, (h + 1) * D)
            qh = q[:, cols].reshape(Bt, T, D)              # leading-dim split: free
            kh = k[:, cols].reshape(Bt, T, D)
            vh = v[:, cols].reshape(Bt, T, D)

            # contract last dims directly -> no kh transpose relayout
            s = jnp.einsum('bqd,bkd->bqk', qh, kh,
                           preferred_element_type=jnp.float32)        # (Bt, T, T)
            s = s + bias[None]                             # causal mask
            s = s - jnp.max(s, axis=-1, keepdims=True)     # numerical stability
            p = jnp.exp(s)
            inv = pl.reciprocal(jnp.sum(p, axis=-1, keepdims=True),
                                approx=True)               # EUP, off the VALU path

            oh = jnp.einsum('bqk,bkd->bqd', p, vh,
                            preferred_element_type=jnp.float32)       # (Bt, T, D)
            # normalize the small (Bt,T,D) result instead of the (Bt,T,T) probs
            attn_ref[:, cols] = (oh * inv).reshape(M, D)

        # --- output projection, again with fat M and fat K = E ---------------
        y = jnp.dot(attn_ref[...], wo_ref[...],
                    preferred_element_type=jnp.float32) + bo_ref[...]
        o_ref[...] = y.reshape(Bt, T, E).astype(o_ref.dtype)

    return kernel


def causal_self_attention(x, w_qkv, b_qkv, w_out, b_out, num_heads,
                          batch_tile=None):
    """x: (B, T, E); w_qkv: (E, 3E); b_qkv: (1, 3E); w_out: (E, E); b_out: (1, E).

    Weights are stored pre-transposed as (in, out) so the kernel computes
    y = x @ W + b directly on the MXU.
    """
    B, T, E = x.shape
    assert E % num_heads == 0
    if batch_tile is None:
        batch_tile = 2 if B % 2 == 0 else 1
    assert B % batch_tile == 0, "batch must be divisible by batch_tile"
    Bt = batch_tile

    kernel = _make_attention_kernel(num_heads, E, T, Bt)

    return pl.pallas_call(
        kernel,
        out_shape=jax.ShapeDtypeStruct((B, T, E), x.dtype),
        grid_spec=pltpu.PrefetchScalarGridSpec(
            num_scalar_prefetch=0,
            grid=(B // Bt,),
            in_specs=[
                pl.BlockSpec((Bt, T, E), lambda i: (i, 0, 0)),
                pl.BlockSpec((E, 3 * E), lambda i: (0, 0)),
                pl.BlockSpec((1, 3 * E), lambda i: (0, 0)),
                pl.BlockSpec((E, E), lambda i: (0, 0)),
                pl.BlockSpec((1, E), lambda i: (0, 0)),
            ],
            out_specs=pl.BlockSpec((Bt, T, E), lambda i: (i, 0, 0)),
            scratch_shapes=[pltpu.VMEM((Bt * T, E), jnp.float32)],
        ),
        compiler_params=pltpu.CompilerParams(
            dimension_semantics=("parallel",)),
    )(x, w_qkv, b_qkv, w_out, b_out)


def _reference(x, w_qkv, b_qkv, w_out, b_out, num_heads):
    """Pure-JAX reference mirroring the PyTorch forward."""
    B, T, E = x.shape
    D = E // num_heads
    qkv = x @ w_qkv + b_qkv[0]
    q, k, v = jnp.split(qkv, 3, axis=-1)

    def heads(t):  # (B, T, E) -> (B, H, T, D)
        return t.reshape(B, T, num_heads, D).transpose(0, 2, 1, 3)

    q, k, v = heads(q), heads(k), heads(v)
    s = jnp.einsum("bhqd,bhkd->bhqk", q, k) / math.sqrt(D)
    mask = jnp.tril(jnp.ones((T, T), dtype=bool))
    s = jnp.where(mask, s, -1e30)
    p = jax.nn.softmax(s, axis=-1)
    o = jnp.einsum("bhqk,bhkd->bhqd", p, v)
    o = o.transpose(0, 2, 1, 3).reshape(B, T, E)
    return o @ w_out + b_out[0]


if __name__ == "__main__":
    # Small config consistent with the module (embed_dim divisible by num_heads).
    # E = 128 keeps every output store lane-dense; B = 8 with Bt = 2 gives the
    # grid 4 parallel steps (>= 2 per TensorCore on v7x megacore).
    batch, seq_len, embed_dim, num_heads = 8, 128, 128, 4

    key = jax.random.PRNGKey(0)
    kx, k1, k2, k3, k4 = jax.random.split(key, 5)

    bound = 1.0 / math.sqrt(embed_dim)
    x = jax.random.normal(kx, (batch, seq_len, embed_dim), dtype=jnp.float32)
    w_qkv = jax.random.uniform(k1, (embed_dim, 3 * embed_dim),
                               minval=-bound, maxval=bound, dtype=jnp.float32)
    b_qkv = jax.random.uniform(k2, (1, 3 * embed_dim),
                               minval=-bound, maxval=bound, dtype=jnp.float32)
    w_out = jax.random.uniform(k3, (embed_dim, embed_dim),
                               minval=-bound, maxval=bound, dtype=jnp.float32)
    b_out = jax.random.uniform(k4, (1, embed_dim),
                               minval=-bound, maxval=bound, dtype=jnp.float32)

    out = causal_self_attention(x, w_qkv, b_qkv, w_out, b_out, num_heads)
    out = jax.block_until_ready(out)

    ref = _reference(x, w_qkv, b_qkv, w_out, b_out, num_heads)
    assert out.shape == (batch, seq_len, embed_dim)
    # Tolerance accounts for the approximate (EUP vrcp) softmax reciprocal.
    assert jnp.allclose(out, ref, atol=2e-3, rtol=2e-3), "mismatch vs reference"

    print("KERNEL_OK")
</pallas_src>

<mosaic_0001>
module attributes {stable_mosaic.version = 11 : i64} {
  func.func @kernel(%arg0: i32, %arg1: memref<2x128x128xf32, #tpu.memory_space<vmem>>, %arg2: memref<128x384xf32, #tpu.memory_space<vmem>>, %arg3: memref<1x384xf32, #tpu.memory_space<vmem>>, %arg4: memref<128x128xf32, #tpu.memory_space<vmem>>, %arg5: memref<1x128xf32, #tpu.memory_space<vmem>>, %arg6: memref<2x128x128xf32, #tpu.memory_space<vmem>>, %arg7: memref<256x128xf32, #tpu.memory_space<vmem>>) attributes {dimension_semantics = [#tpu.dimension_semantics<parallel>], iteration_bounds = array<i64: 4>, scalar_prefetch = 0 : i64, scratch_operands = 1 : i64, tpu.core_type = #tpu.core_type<tc>, window_params = [{transform_indices = @transform_0, window_bounds = array<i64: 2, 128, 128>}, {pipeline_mode = #tpu.pipeline_mode<synchronous>, transform_indices = @transform_1, window_bounds = array<i64: 128, 384>}, {pipeline_mode = #tpu.pipeline_mode<synchronous>, transform_indices = @transform_2, window_bounds = array<i64: 1, 384>}, {pipeline_mode = #tpu.pipeline_mode<synchronous>, transform_indices = @transform_3, window_bounds = array<i64: 128, 128>}, {pipeline_mode = #tpu.pipeline_mode<synchronous>, transform_indices = @transform_4, window_bounds = array<i64: 1, 128>}, {transform_indices = @transform_5, window_bounds = array<i64: 2, 128, 128>}]} {
    %c0 = arith.constant 0 : index
    %c0_0 = arith.constant 0 : index
    %c0_1 = arith.constant 0 : index
    %0 = vector.load %arg1[%c0, %c0_0, %c0_1] : memref<2x128x128xf32, #tpu.memory_space<vmem>>, vector<2x128x128xf32>
    %1 = vector.shape_cast %0 : vector<2x128x128xf32> to vector<256x128xf32>
    %c0_2 = arith.constant 0 : index
    %c0_3 = arith.constant 0 : index
    %2 = vector.load %arg2[%c0_2, %c0_3] : memref<128x384xf32, #tpu.memory_space<vmem>>, vector<128x384xf32>
    %cst = arith.constant dense<0.000000e+00> : vector<256x384xf32>
    %3 = tpu.matmul %1, %2, %cst {dimension_numbers = #tpu.dot_dimension_numbers<[1], [0], [0], [1], [0, 0, 1, 1], [], []>} : vector<256x128xf32>, vector<128x384xf32>, vector<256x384xf32> -> vector<256x384xf32>
    %c0_4 = arith.constant 0 : index
    %c0_5 = arith.constant 0 : index
    %4 = vector.load %arg3[%c0_4, %c0_5] : memref<1x384xf32, #tpu.memory_space<vmem>>, vector<1x384xf32>
    %5 = vector.broadcast %4 : vector<1x384xf32> to vector<256x384xf32>
    %6 = arith.addf %3, %5 : vector<256x384xf32>
    %7 = vector.extract_strided_slice %6 {offsets = [0, 0], sizes = [256, 128], strides = [1, 1]} : vector<256x384xf32> to vector<256x128xf32>
    %cst_6 = arith.constant 0.176776692 : f32
    %8 = vector.broadcast %cst_6 : f32 to vector<256x128xf32>
    %9 = arith.mulf %7, %8 : vector<256x128xf32>
    %10 = vector.extract_strided_slice %6 {offsets = [0, 128], sizes = [256, 128], strides = [1, 1]} : vector<256x384xf32> to vector<256x128xf32>
    %11 = vector.extract_strided_slice %6 {offsets = [0, 256], sizes = [256, 128], strides = [1, 1]} : vector<256x384xf32> to vector<256x128xf32>
    %12 = tpu.iota {dimensions = array<i32: 0>} : vector<128x128xi32>
    %13 = tpu.iota {dimensions = array<i32: 1>} : vector<128x128xi32>
    %14 = arith.cmpi sle, %13, %12 : vector<128x128xi32>
    %cst_7 = arith.constant 0.000000e+00 : f32
    %cst_8 = arith.constant -1.000000e+30 : f32
    %15 = vector.broadcast %cst_7 : f32 to vector<128x128xf32>
    %16 = vector.broadcast %cst_8 : f32 to vector<128x128xf32>
    %17 = arith.select %14, %15, %16 : vector<128x128xi1>, vector<128x128xf32>
    %18 = vector.extract_strided_slice %9 {offsets = [0, 0], sizes = [256, 32], strides = [1, 1]} : vector<256x128xf32> to vector<256x32xf32>
    %19 = vector.shape_cast %18 : vector<256x32xf32> to vector<2x128x32xf32>
    %20 = vector.extract_strided_slice %10 {offsets = [0, 0], sizes = [256, 32], strides = [1, 1]} : vector<256x128xf32> to vector<256x32xf32>
    %21 = vector.shape_cast %20 : vector<256x32xf32> to vector<2x128x32xf32>
    %22 = vector.extract_strided_slice %11 {offsets = [0, 0], sizes = [256, 32], strides = [1, 1]} : vector<256x128xf32> to vector<256x32xf32>
    %23 = vector.shape_cast %22 : vector<256x32xf32> to vector<2x128x32xf32>
    "tpu.trace_start"() <{level = 10 : i32, message = "bqd,bkd->bqk"}> : () -> ()
    %cst_9 = arith.constant dense<0.000000e+00> : vector<2x128x128xf32>
    %24 = tpu.matmul %19, %21, %cst_9 {dimension_numbers = #tpu.dot_dimension_numbers<[2], [2], [1], [1], [0, 0, 0, 1, 1, 1], [0], [0]>} : vector<2x128x32xf32>, vector<2x128x32xf32>, vector<2x128x128xf32> -> vector<2x128x128xf32>
    "tpu.trace_stop"() : () -> ()
    %25 = vector.shape_cast %17 : vector<128x128xf32> to vector<1x128x128xf32>
    %26 = vector.broadcast %25 : vector<1x128x128xf32> to vector<2x128x128xf32>
    %27 = arith.addf %24, %26 : vector<2x128x128xf32>
    %cst_10 = arith.constant dense<0xFF800000> : vector<2x128xf32>
    %28 = vector.multi_reduction <maximumf>, %27, %cst_10 [2] : vector<2x128x128xf32> to vector<2x128xf32>
    %29 = vector.shape_cast %28 : vector<2x128xf32> to vector<2x128x1xf32>
    %30 = vector.broadcast %29 : vector<2x128x1xf32> to vector<2x128x128xf32>
    %31 = arith.subf %27, %30 : vector<2x128x128xf32>
    %32 = math.exp %31 : vector<2x128x128xf32>
    %cst_11 = arith.constant dense<0.000000e+00> : vector<2x128xf32>
    %33 = vector.multi_reduction <add>, %32, %cst_11 [2] : vector<2x128x128xf32> to vector<2x128xf32>
    %34 = vector.shape_cast %33 : vector<2x128xf32> to vector<2x128x1xf32>
    %35 = tpu.reciprocal %34 {approx = true} : vector<2x128x1xf32> -> vector<2x128x1xf32>
    "tpu.trace_start"() <{level = 10 : i32, message = "bqk,bkd->bqd"}> : () -> ()
    %cst_12 = arith.constant dense<0.000000e+00> : vector<2x128x32xf32>
    %36 = tpu.matmul %32, %23, %cst_12 {dimension_numbers = #tpu.dot_dimension_numbers<[2], [1], [1], [2], [0, 0, 0, 1, 1, 2], [0], [0]>} : vector<2x128x128xf32>, vector<2x128x32xf32>, vector<2x128x32xf32> -> vector<2x128x32xf32>
    "tpu.trace_stop"() : () -> ()
    %37 = vector.broadcast %35 : vector<2x128x1xf32> to vector<2x128x32xf32>
    %38 = arith.mulf %36, %37 : vector<2x128x32xf32>
    %39 = vector.shape_cast %38 : vector<2x128x32xf32> to vector<256x32xf32>
    %c0_13 = arith.constant 0 : index
    %c0_14 = arith.constant 0 : index
    %40 = vector.load %arg7[%c0_13, %c0_14] : memref<256x128xf32, #tpu.memory_space<vmem>>, vector<256x32xf32>
    tpu.vector_store %arg7[%c0_13, %c0_14], %39 {strides = array<i32>} : memref<256x128xf32, #tpu.memory_space<vmem>>, vector<256x32xf32>,
    %41 = vector.extract_strided_slice %9 {offsets = [0, 32], sizes = [256, 32], strides = [1, 1]} : vector<256x128xf32> to vector<256x32xf32>
    %42 = vector.shape_cast %41 : vector<256x32xf32> to vector<2x128x32xf32>
    %43 = vector.extract_strided_slice %10 {offsets = [0, 32], sizes = [256, 32], strides = [1, 1]} : vector<256x128xf32> to vector<256x32xf32>
    %44 = vector.shape_cast %43 : vector<256x32xf32> to vector<2x128x32xf32>
    %45 = vector.extract_strided_slice %11 {offsets = [0, 32], sizes = [256, 32], strides = [1, 1]} : vector<256x128xf32> to vector<256x32xf32>
    %46 = vector.shape_cast %45 : vector<256x32xf32> to vector<2x128x32xf32>
    "tpu.trace_start"() <{level = 10 : i32, message = "bqd,bkd->bqk"}> : () -> ()
    %cst_15 = arith.constant dense<0.000000e+00> : vector<2x128x128xf32>
    %47 = tpu.matmul %42, %44, %cst_15 {dimension_numbers = #tpu.dot_dimension_numbers<[2], [2], [1], [1], [0, 0, 0, 1, 1, 1], [0], [0]>} : vector<2x128x32xf32>, vector<2x128x32xf32>, vector<2x128x128xf32> -> vector<2x128x128xf32>
    "tpu.trace_stop"() : () -> ()
    %48 = vector.shape_cast %17 : vector<128x128xf32> to vector<1x128x128xf32>
    %49 = vector.broadcast %48 : vector<1x128x128xf32> to vector<2x128x128xf32>
    %50 = arith.addf %47, %49 : vector<2x128x128xf32>
    %cst_16 = arith.constant dense<0xFF800000> : vector<2x128xf32>
    %51 = vector.multi_reduction <maximumf>, %50, %cst_16 [2] : vector<2x128x128xf32> to vector<2x128xf32>
    %52 = vector.shape_cast %51 : vector<2x128xf32> to vector<2x128x1xf32>
    %53 = vector.broadcast %52 : vector<2x128x1xf32> to vector<2x128x128xf32>
    %54 = arith.subf %50, %53 : vector<2x128x128xf32>
    %55 = math.exp %54 : vector<2x128x128xf32>
    %cst_17 = arith.constant dense<0.000000e+00> : vector<2x128xf32>
    %56 = vector.multi_reduction <add>, %55, %cst_17 [2] : vector<2x128x128xf32> to vector<2x128xf32>
    %57 = vector.shape_cast %56 : vector<2x128xf32> to vector<2x128x1xf32>
    %58 = tpu.reciprocal %57 {approx = true} : vector<2x128x1xf32> -> vector<2x128x1xf32>
    "tpu.trace_start"() <{level = 10 : i32, message = "bqk,bkd->bqd"}> : () -> ()
    %cst_18 = arith.constant dense<0.000000e+00> : vector<2x128x32xf32>
    %59 = tpu.matmul %55, %46, %cst_18 {dimension_numbers = #tpu.dot_dimension_numbers<[2], [1], [1], [2], [0, 0, 0, 1, 1, 2], [0], [0]>} : vector<2x128x128xf32>, vector<2x128x32xf32>, vector<2x128x32xf32> -> vector<2x128x32xf32>
    "tpu.trace_stop"() : () -> ()
    %60 = vector.broadcast %58 : vector<2x128x1xf32> to vector<2x128x32xf32>
    %61 = arith.mulf %59, %60 : vector<2x128x32xf32>
    %62 = vector.shape_cast %61 : vector<2x128x32xf32> to vector<256x32xf32>
    %c0_19 = arith.constant 0 : index
    %c32 = arith.constant 32 : index
    %63 = vector.load %arg7[%c0_19, %c32] : memref<256x128xf32, #tpu.memory_space<vmem>>, vector<256x32xf32>
    tpu.vector_store %arg7[%c0_19, %c32], %62 {strides = array<i32>} : memref<256x128xf32, #tpu.memory_space<vmem>>, vector<256x32xf32>,
    %64 = vector.extract_strided_slice %9 {offsets = [0, 64], sizes = [256, 32], strides = [1, 1]} : vector<256x128xf32> to vector<256x32xf32>
    %65 = vector.shape_cast %64 : vector<256x32xf32> to vector<2x128x32xf32>
    %66 = vector.extract_strided_slice %10 {offsets = [0, 64], sizes = [256, 32], strides = [1, 1]} : vector<256x128xf32> to vector<256x32xf32>
    %67 = vector.shape_cast %66 : vector<256x32xf32> to vector<2x128x32xf32>
    %68 = vector.extract_strided_slice %11 {offsets = [0, 64], sizes = [256, 32], strides = [1, 1]} : vector<256x128xf32> to vector<256x32xf32>
    %69 = vector.shape_cast %68 : vector<256x32xf32> to vector<2x128x32xf32>
    "tpu.trace_start"() <{level = 10 : i32, message = "bqd,bkd->bqk"}> : () -> ()
    %cst_20 = arith.constant dense<0.000000e+00> : vector<2x128x128xf32>
    %70 = tpu.matmul %65, %67, %cst_20 {dimension_numbers = #tpu.dot_dimension_numbers<[2], [2], [1], [1], [0, 0, 0, 1, 1, 1], [0], [0]>} : vector<2x128x32xf32>, vector<2x128x32xf32>, vector<2x128x128xf32> -> vector<2x128x128xf32>
    "tpu.trace_stop"() : () -> ()
    %71 = vector.shape_cast %17 : vector<128x128xf32> to vector<1x128x128xf32>
    %72 = vector.broadcast %71 : vector<1x128x128xf32> to vector<2x128x128xf32>
    %73 = arith.addf %70, %72 : vector<2x128x128xf32>
    %cst_21 = arith.constant dense<0xFF800000> : vector<2x128xf32>
    %74 = vector.multi_reduction <maximumf>, %73, %cst_21 [2] : vector<2x128x128xf32> to vector<2x128xf32>
    %75 = vector.shape_cast %74 : vector<2x128xf32> to vector<2x128x1xf32>
    %76 = vector.broadcast %75 : vector<2x128x1xf32> to vector<2x128x128xf32>
    %77 = arith.subf %73, %76 : vector<2x128x128xf32>
    %78 = math.exp %77 : vector<2x128x128xf32>
    %cst_22 = arith.constant dense<0.000000e+00> : vector<2x128xf32>
    %79 = vector.multi_reduction <add>, %78, %cst_22 [2] : vector<2x128x128xf32> to vector<2x128xf32>
    %80 = vector.shape_cast %79 : vector<2x128xf32> to vector<2x128x1xf32>
    %81 = tpu.reciprocal %80 {approx = true} : vector<2x128x1xf32> -> vector<2x128x1xf32>
    "tpu.trace_start"() <{level = 10 : i32, message = "bqk,bkd->bqd"}> : () -> ()
    %cst_23 = arith.constant dense<0.000000e+00> : vector<2x128x32xf32>
    %82 = tpu.matmul %78, %69, %cst_23 {dimension_numbers = #tpu.dot_dimension_numbers<[2], [1], [1], [2], [0, 0, 0, 1, 1, 2], [0], [0]>} : vector<2x128x128xf32>, vector<2x128x32xf32>, vector<2x128x32xf32> -> vector<2x128x32xf32>
    "tpu.trace_stop"() : () -> ()
    %83 = vector.broadcast %81 : vector<2x128x1xf32> to vector<2x128x32xf32>
    %84 = arith.mulf %82, %83 : vector<2x128x32xf32>
    %85 = vector.shape_cast %84 : vector<2x128x32xf32> to vector<256x32xf32>
    %c0_24 = arith.constant 0 : index
    %c64 = arith.constant 64 : index
    %86 = vector.load %arg7[%c0_24, %c64] : memref<256x128xf32, #tpu.memory_space<vmem>>, vector<256x32xf32>
    tpu.vector_store %arg7[%c0_24, %c64], %85 {strides = array<i32>} : memref<256x128xf32, #tpu.memory_space<vmem>>, vector<256x32xf32>,
    %87 = vector.extract_strided_slice %9 {offsets = [0, 96], sizes = [256, 32], strides = [1, 1]} : vector<256x128xf32> to vector<256x32xf32>
    %88 = vector.shape_cast %87 : vector<256x32xf32> to vector<2x128x32xf32>
    %89 = vector.extract_strided_slice %10 {offsets = [0, 96], sizes = [256, 32], strides = [1, 1]} : vector<256x128xf32> to vector<256x32xf32>
    %90 = vector.shape_cast %89 : vector<256x32xf32> to vector<2x128x32xf32>
    %91 = vector.extract_strided_slice %11 {offsets = [0, 96], sizes = [256, 32], strides = [1, 1]} : vector<256x128xf32> to vector<256x32xf32>
    %92 = vector.shape_cast %91 : vector<256x32xf32> to vector<2x128x32xf32>
    "tpu.trace_start"() <{level = 10 : i32, message = "bqd,bkd->bqk"}> : () -> ()
    %cst_25 = arith.constant dense<0.000000e+00> : vector<2x128x128xf32>
    %93 = tpu.matmul %88, %90, %cst_25 {dimension_numbers = #tpu.dot_dimension_numbers<[2], [2], [1], [1], [0, 0, 0, 1, 1, 1], [0], [0]>} : vector<2x128x32xf32>, vector<2x128x32xf32>, vector<2x128x128xf32> -> vector<2x128x128xf32>
    "tpu.trace_stop"() : () -> ()
    %94 = vector.shape_cast %17 : vector<128x128xf32> to vector<1x128x128xf32>
    %95 = vector.broadcast %94 : vector<1x128x128xf32> to vector<2x128x128xf32>
    %96 = arith.addf %93, %95 : vector<2x128x128xf32>
    %cst_26 = arith.constant dense<0xFF800000> : vector<2x128xf32>
    %97 = vector.multi_reduction <maximumf>, %96, %cst_26 [2] : vector<2x128x128xf32> to vector<2x128xf32>
    %98 = vector.shape_cast %97 : vector<2x128xf32> to vector<2x128x1xf32>
    %99 = vector.broadcast %98 : vector<2x128x1xf32> to vector<2x128x128xf32>
    %100 = arith.subf %96, %99 : vector<2x128x128xf32>
    %101 = math.exp %100 : vector<2x128x128xf32>
    %cst_27 = arith.constant dense<0.000000e+00> : vector<2x128xf32>
    %102 = vector.multi_reduction <add>, %101, %cst_27 [2] : vector<2x128x128xf32> to vector<2x128xf32>
    %103 = vector.shape_cast %102 : vector<2x128xf32> to vector<2x128x1xf32>
    %104 = tpu.reciprocal %103 {approx = true} : vector<2x128x1xf32> -> vector<2x128x1xf32>
    "tpu.trace_start"() <{level = 10 : i32, message = "bqk,bkd->bqd"}> : () -> ()
    %cst_28 = arith.constant dense<0.000000e+00> : vector<2x128x32xf32>
    %105 = tpu.matmul %101, %92, %cst_28 {dimension_numbers = #tpu.dot_dimension_numbers<[2], [1], [1], [2], [0, 0, 0, 1, 1, 2], [0], [0]>} : vector<2x128x128xf32>, vector<2x128x32xf32>, vector<2x128x32xf32> -> vector<2x128x32xf32>
    "tpu.trace_stop"() : () -> ()
    %106 = vector.broadcast %104 : vector<2x128x1xf32> to vector<2x128x32xf32>
    %107 = arith.mulf %105, %106 : vector<2x128x32xf32>
    %108 = vector.shape_cast %107 : vector<2x128x32xf32> to vector<256x32xf32>
    %c0_29 = arith.constant 0 : index
    %c96 = arith.constant 96 : index
    %109 = vector.load %arg7[%c0_29, %c96] : memref<256x128xf32, #tpu.memory_space<vmem>>, vector<256x32xf32>
    tpu.vector_store %arg7[%c0_29, %c96], %108 {strides = array<i32>} : memref<256x128xf32, #tpu.memory_space<vmem>>, vector<256x32xf32>,
    %c0_30 = arith.constant 0 : index
    %c0_31 = arith.constant 0 : index
    %110 = vector.load %arg7[%c0_30, %c0_31] : memref<256x128xf32, #tpu.memory_space<vmem>>, vector<256x128xf32>
    %c0_32 = arith.constant 0 : index
    %c0_33 = arith.constant 0 : index
    %111 = vector.load %arg4[%c0_32, %c0_33] : memref<128x128xf32, #tpu.memory_space<vmem>>, vector<128x128xf32>
    %cst_34 = arith.constant dense<0.000000e+00> : vector<256x128xf32>
    %112 = tpu.matmul %110, %111, %cst_34 {dimension_numbers = #tpu.dot_dimension_numbers<[1], [0], [0], [1], [0, 0, 1, 1], [], []>} : vector<256x128xf32>, vector<128x128xf32>, vector<256x128xf32> -> vector<256x128xf32>
    %c0_35 = arith.constant 0 : index
    %c0_36 = arith.constant 0 : index
    %113 = vector.load %arg5[%c0_35, %c0_36] : memref<1x128xf32, #tpu.memory_space<vmem>>, vector<1x128xf32>
    %114 = vector.broadcast %113 : vector<1x128xf32> to vector<256x128xf32>
    %115 = arith.addf %112, %114 : vector<256x128xf32>
    %116 = vector.shape_cast %115 : vector<256x128xf32> to vector<2x128x128xf32>
    %c0_37 = arith.constant 0 : index
    %c0_38 = arith.constant 0 : index
    %c0_39 = arith.constant 0 : index
    %117 = vector.load %arg6[%c0_37, %c0_38, %c0_39] : memref<2x128x128xf32, #tpu.memory_space<vmem>>, vector<2x128x128xf32>
    tpu.vector_store %arg6[%c0_37, %c0_38, %c0_39], %116 {strides = array<i32>} : memref<2x128x128xf32, #tpu.memory_space<vmem>>, vector<2x128x128xf32>,
    return
  }
  func.func @transform_0(%arg0: i32) -> (i32, i32, i32) {
    %c0_i32 = arith.constant 0 : i32
    %c0_i32_0 = arith.constant 0 : i32
    %c0_i32_1 = arith.constant 0 : i32
    return %arg0, %c0_i32, %c0_i32_0 : i32, i32, i32
  }
  func.func @transform_1(%arg0: i32) -> (i32, i32) {
    %c0_i32 = arith.constant 0 : i32
    %c0_i32_0 = arith.constant 0 : i32
    %c0_i32_1 = arith.constant 0 : i32
    return %c0_i32, %c0_i32_0 : i32, i32
  }
  func.func @transform_2(%arg0: i32) -> (i32, i32) {
    %c0_i32 = arith.constant 0 : i32
    %c0_i32_0 = arith.constant 0 : i32
    %c0_i32_1 = arith.constant 0 : i32
    return %c0_i32, %c0_i32_0 : i32, i32
  }
  func.func @transform_3(%arg0: i32) -> (i32, i32) {
    %c0_i32 = arith.constant 0 : i32
    %c0_i32_0 = arith.constant 0 : i32
    %c0_i32_1 = arith.constant 0 : i32
    return %c0_i32, %c0_i32_0 : i32, i32
  }
  func.func @transform_4(%arg0: i32) -> (i32, i32) {
    %c0_i32 = arith.constant 0 : i32
    %c0_i32_0 = arith.constant 0 : i32
    %c0_i32_1 = arith.constant 0 : i32
    return %c0_i32, %c0_i32_0 : i32, i32
  }
  func.func @transform_5(%arg0: i32) -> (i32, i32, i32) {
    %c0_i32 = arith.constant 0 : i32
    %c0_i32_0 = arith.constant 0 : i32
    %c0_i32_1 = arith.constant 0 : i32
    return %arg0, %c0_i32, %c0_i32_0 : i32, i32, i32
  }
}

</mosaic_0001>

<llo_original>
// kernel: tpu_custom_call.1
$region0: #{tpu_custom_call.1}
  #allocation0 [shape = 'u32[]', space=smem, size = 0x4, offset = 0x4, fixed_abs, tag = 'smem constant byte address 0x4 - core index']
  #allocation1 [shape = 'u32[144,128]{1,0:T(1,128)}', space=vmem, size = 0x12000, scoped, tag = 'internal scratch']
  #allocation2 [shape = 'f32[256,128]{1,0:T(8,128)}', space=vmem, size = 0x20000, scoped, tag = 'scratch operand']
  %s0 = inlined_call_operand.hbm [shape: f32[8,128,128], index: 0, kind: input, shape index: {}]
  %s1 = inlined_call_operand.hbm [shape: f32[128,384], index: 1, kind: input, shape index: {}]
  %s2 = inlined_call_operand.vmem [shape: f32[1,384], index: 2, kind: input, shape index: {}]
  %s3 = inlined_call_operand.hbm [shape: f32[128,128], index: 3, kind: input, shape index: {}]
  %s4 = inlined_call_operand.vmem [shape: f32[1,128], index: 4, kind: input, shape index: {}]
  %s5 = inlined_call_operand.hbm [shape: f32[8,128,128], index: 5, kind: output, shape index: {}]
  %s6 = sld [smem:[#allocation0]]
  $region65: #{tpu_custom_call.1} parent=0
    _
  %s8 = ssub.s32 1, %s6
  %s9 = scalar_select 0, %s8, %s6
  $region1: #{tpu_custom_call.1} parent=0
    #allocation3 [shape = 'u8[262144]{0}', space=vmem, size = 0x40000, scoped, tag = 'input window, operand 0']
    #allocation4 [shape = 's32[2]{0}', space=sflag, size = 0x8, scoped, tag = 'scoped memory for tpu_custom_call.1']
    #allocation5 [shape = 's32[2]{0}', space=sflag, size = 0x8, scoped, tag = 'scoped memory for tpu_custom_call.1']
    #allocation6 [shape = 'u8[196608]{0}', space=vmem, size = 0x30000, scoped, tag = 'input window, operand 1, single buffered']
    #allocation7 [shape = 's32[1]{0}', space=sflag, size = 0x4, scoped, tag = 'scoped memory for tpu_custom_call.1']
    #allocation8 [shape = 'u8[65536]{0}', space=vmem, size = 0x10000, scoped, tag = 'input window, operand 3, single buffered']
    #allocation9 [shape = 'u8[262144]{0}', space=vmem, size = 0x40000, scoped, tag = 'output window, operand 0']
    %10 = vsyncpa [#allocation4], 0
    %s11 = scalar_lea.sflag [#allocation4], 1
    %12 = vsyncpa %s11, 0
    %13 = vsyncpa [#allocation7], 0
    %14 = vsyncpa [#allocation5], 0
    %s15 = scalar_lea.sflag [#allocation5], 1
    %16 = vsyncpa %s15, 0
    loop: start=0, step=1, limit=6
    $region2: #{tpu_custom_call.1} parent=1 // loop_pre_header
      _
    $region3: #{tpu_custom_call.1} parent=1 // loop_header
      %s18 = sphi 0, %s22
      %p19 = scmp.ge.s32.totalorder %s18, 6
      %s28 = sphi 0, %s30
      %s31 = sphi 0, %s28
      %s32 = sphi 0, %s31
      %s48 = sphi 0, %s32
      %s52 = sphi 0, %s52
      %s54 = sphi 0, %s52
      %s55 = sphi 0, %s54
      %s69 = sphi 0, %s55
      %s73 = sphi 0, %s73
      %s75 = sphi 0, %s73
      %s76 = sphi 0, %s75
      %s90 = sphi 0, %s76
      %s94 = sphi 0, %s94
      %s96 = sphi 0, %s94
      %s97 = sphi 0, %s96
      %s111 = sphi 0, %s97
      %s115 = sphi 0, %s115
      %s117 = sphi 0, %s115
      %s118 = sphi 0, %s117
      %s132 = sphi 0, %s118
      %s138 = sphi 0, %s140
      %s141 = sphi 0, %s138
      %s142 = sphi 0, %s141
      %s158 = sphi 0, %s142
    $region4: #{tpu_custom_call.1} parent=1 // loop_header_branch
      %21 = sbr.rel (%p19) target = $region8
    $region5: #{tpu_custom_call.1} parent=1 // loop_body
      %s23 = ssub.s32 %s18, 1
      %s24 = ssub.s32 %s18, 2
      %s25 = sadd.s32 %s18, 1
      %s26 = ssub.s32 %s18, %s25
      %p27 = scmp.eq.s32.totalorder %s26, 0
      %s29 = sadd.s32 %s28, 1
      %s30 = scalar_select %p27, %s28, %s29
      %p33 = pneg %p27
      %p34 = scmp.eq.s32.totalorder %s18, 3
      %p35 = por %p33, %p34
      %p36 = scmp.ne.s32.totalorder %s28, %s31
      %p37 = scmp.eq.s32.totalorder %s18, 0
      %p38 = por %p36, %p37
      %p39 = scmp.ne.s32.totalorder %s28, %s31
      %p40 = scmp.eq.s32.totalorder %s23, 3
      %p41 = por %p39, %p40
      %p42 = scmp.ne.s32.totalorder %s31, %s32
      %p43 = scmp.eq.s32.totalorder %s23, 0
      %p44 = por %p42, %p43
      %p45 = scmp.ne.s32.totalorder %s31, %s32
      %p46 = scmp.eq.s32.totalorder %s24, 3
      %p47 = por %p45, %p46
      %p49 = scmp.ne.s32.totalorder %s32, %s48
      %p50 = scmp.eq.s32.totalorder %s24, 0
      %p51 = por %p49, %p50
      %s53 = sadd.s32 %s52, 1
      %p56 = scmp.eq.s32.totalorder %s18, 3
      %p57 = scmp.ne.s32.totalorder %s52, %s54
      %p58 = scmp.eq.s32.totalorder %s18, 0
      %p59 = por %p57, %p58
      %p60 = scmp.ne.s32.totalorder %s52, %s54
      %p61 = scmp.eq.s32.totalorder %s23, 3
      %p62 = por %p60, %p61
      %p63 = scmp.ne.s32.totalorder %s54, %s55
      %p64 = scmp.eq.s32.totalorder %s23, 0
      %p65 = por %p63, %p64
      %p66 = scmp.ne.s32.totalorder %s54, %s55
      %p67 = scmp.eq.s32.totalorder %s24, 3
      %p68 = por %p66, %p67
      %p70 = scmp.ne.s32.totalorder %s55, %s69
      %p71 = scmp.eq.s32.totalorder %s24, 0
      %p72 = por %p70, %p71
      %s74 = sadd.s32 %s73, 1
      %p77 = scmp.eq.s32.totalorder %s18, 3
      %p78 = scmp.ne.s32.totalorder %s73, %s75
      %p79 = scmp.eq.s32.totalorder %s18, 0
      %p80 = por %p78, %p79
      %p81 = scmp.ne.s32.totalorder %s73, %s75
      %p82 = scmp.eq.s32.totalorder %s23, 3
      %p83 = por %p81, %p82
      %p84 = scmp.ne.s32.totalorder %s75, %s76
      %p85 = scmp.eq.s32.totalorder %s23, 0
      %p86 = por %p84, %p85
      %p87 = scmp.ne.s32.totalorder %s75, %s76
      %p88 = scmp.eq.s32.totalorder %s24, 3
      %p89 = por %p87, %p88
      %p91 = scmp.ne.s32.totalorder %s76, %s90
      %p92 = scmp.eq.s32.totalorder %s24, 0
      %p93 = por %p91, %p92
      %s95 = sadd.s32 %s94, 1
      %p98 = scmp.eq.s32.totalorder %s18, 3
      %p99 = scmp.ne.s32.totalorder %s94, %s96
      %p100 = scmp.eq.s32.totalorder %s18, 0
      %p101 = por %p99, %p100
      %p102 = scmp.ne.s32.totalorder %s94, %s96
      %p103 = scmp.eq.s32.totalorder %s23, 3
      %p104 = por %p102, %p103
      %p105 = scmp.ne.s32.totalorder %s96, %s97
      %p106 = scmp.eq.s32.totalorder %s23, 0
      %p107 = por %p105, %p106
      %p108 = scmp.ne.s32.totalorder %s96, %s97
      %p109 = scmp.eq.s32.totalorder %s24, 3
      %p110 = por %p108, %p109
      %p112 = scmp.ne.s32.totalorder %s97, %s111
      %p113 = scmp.eq.s32.totalorder %s24, 0
      %p114 = por %p112, %p113
      %s116 = sadd.s32 %s115, 1
      %p119 = scmp.eq.s32.totalorder %s18, 3
      %p120 = scmp.ne.s32.totalorder %s115, %s117
      %p121 = scmp.eq.s32.totalorder %s18, 0
      %p122 = por %p120, %p121
      %p123 = scmp.ne.s32.totalorder %s115, %s117
      %p124 = scmp.eq.s32.totalorder %s23, 3
      %p125 = por %p123, %p124
      %p126 = scmp.ne.s32.totalorder %s117, %s118
      %p127 = scmp.eq.s32.totalorder %s23, 0
      %p128 = por %p126, %p127
      %p129 = scmp.ne.s32.totalorder %s117, %s118
      %p130 = scmp.eq.s32.totalorder %s24, 3
      %p131 = por %p129, %p130
      %p133 = scmp.ne.s32.totalorder %s118, %s132
      %p134 = scmp.eq.s32.totalorder %s24, 0
      %p135 = por %p133, %p134
      %s136 = ssub.s32 %s18, %s25
      %p137 = scmp.eq.s32.totalorder %s136, 0
      %s139 = sadd.s32 %s138, 1
      %s140 = scalar_select %p137, %s138, %s139
      %p143 = pneg %p137
      %p144 = scmp.eq.s32.totalorder %s18, 3
      %p145 = por %p143, %p144
      %p146 = scmp.ne.s32.totalorder %s138, %s141
      %p147 = scmp.eq.s32.totalorder %s18, 0
      %p148 = por %p146, %p147
      %p149 = scmp.ne.s32.totalorder %s138, %s141
      %p150 = scmp.eq.s32.totalorder %s23, 3
      %p151 = por %p149, %p150
      %p152 = scmp.ne.s32.totalorder %s141, %s142
      %p153 = scmp.eq.s32.totalorder %s23, 0
      %p154 = por %p152, %p153
      %p155 = scmp.ne.s32.totalorder %s141, %s142
      %p156 = scmp.eq.s32.totalorder %s24, 3
      %p157 = por %p155, %p156
      %p159 = scmp.ne.s32.totalorder %s142, %s158
      %p160 = scmp.eq.s32.totalorder %s24, 0
      %p161 = por %p159, %p160
      %p162 = scmp.le.s32.totalorder 1, %s18
      %p163 = scmp.lt.s32.totalorder %s18, 5
      %p164 = pnand %p162, %p163
      %p165 = pneg %p164
      // Predicated region
      $region9: #{tpu_custom_call.1} parent=5 // pred_check
        _
      $region10: #{tpu_custom_call.1} parent=5 // pred_check_branch
        %167 = sbr.rel (%p164) target = $region12
      $region11: #{tpu_custom_call.1} parent=5 // pred_region
        %s168 = ssub.s32 %s18, 1
        // Predicated region
        $region13: #{tpu_custom_call.1} parent=11 // pred_check
          %p169 = pneg %p65
        $region14: #{tpu_custom_call.1} parent=11 // pred_check_branch
          %171 = sbr.rel (%p169) target = $region16
        $region15: #{tpu_custom_call.1} parent=11 // pred_region
          %s173 = ssub.s32 6144, 6144
          %174 = vsyncadd [#allocation7], %s173
          %s175 = sshll.u32 [#allocation6], 4
          %s176 = int_to_ptr.vmem [resolvable:$true] %s175
          %181 = dma.hbm_to_vmem [thread:$0]  %s1, 6144, %s176, [#allocation7], 384, 384, 24
        $region16: #{tpu_custom_call.1} parent=11 // pred_fallthru
          _
        // Predicated region
        $region17: #{tpu_custom_call.1} parent=11 // pred_check
          %p182 = pneg %p86
        $region18: #{tpu_custom_call.1} parent=11 // pred_check_branch
          %184 = sbr.rel (%p182) target = $region20
        $region19: #{tpu_custom_call.1} parent=11 // pred_region
          _
        $region20: #{tpu_custom_call.1} parent=11 // pred_fallthru
          _
        // Predicated region
        $region21: #{tpu_custom_call.1} parent=11 // pred_check
          %p185 = pneg %p107
        $region22: #{tpu_custom_call.1} parent=11 // pred_check_branch
          %187 = sbr.rel (%p185) target = $region24
        $region23: #{tpu_custom_call.1} parent=11 // pred_region
          %s189 = ssub.s32 2048, 2048
          %190 = vsyncadd [#allocation7], %s189
          %s191 = sshll.u32 [#allocation8], 4
          %s192 = int_to_ptr.vmem [resolvable:$true] %s191
          %197 = dma.hbm_to_vmem [thread:$0]  %s3, 2048, %s192, [#allocation7], 128, 128, 8
        $region24: #{tpu_custom_call.1} parent=11 // pred_fallthru
          _
        // Predicated region
        $region25: #{tpu_custom_call.1} parent=11 // pred_check
          %p198 = pneg %p128
        $region26: #{tpu_custom_call.1} parent=11 // pred_check_branch
          %200 = sbr.rel (%p198) target = $region28
        $region27: #{tpu_custom_call.1} parent=11 // pred_region
          _
        $region28: #{tpu_custom_call.1} parent=11 // pred_fallthru
          _
      $region12: #{tpu_custom_call.1} parent=5 // pred_fallthru
        _
      %p201 = scmp.lt.s32.totalorder %s18, 4
      // Predicated region
      $region29: #{tpu_custom_call.1} parent=5 // pred_check
        %p202 = pneg %p201
      $region30: #{tpu_custom_call.1} parent=5 // pred_check_branch
        %204 = sbr.rel (%p202) target = $region32
      $region31: #{tpu_custom_call.1} parent=5 // pred_region
        // Predicated region
        $region33: #{tpu_custom_call.1} parent=31 // pred_check
          %p205 = pneg %p38
        $region34: #{tpu_custom_call.1} parent=31 // pred_check_branch
          %207 = sbr.rel (%p205) target = $region36
        $region35: #{tpu_custom_call.1} parent=31 // pred_region
          %s208 = sand.u32 %s28, 1
          %s209 = scalar_lea.sflag [#allocation4], %s208
          %s210 = sand.u32 %s28, 1
          %s211 = smul.addr %s210, 256
          %s212 = scalar_lea.vmem [#allocation3], %s211
          %s213 = smul.u32 2, %s18
          %s215 = ssub.s32 4096, 4096
          %216 = vsyncadd %s209, %s215
          %s217 = smul.addr %s213, 16
          %s218 = smul.addr %s217, 128
          %s219 = scalar_lea.hbm %s0, %s218
          %s220 = sshll.u32 %s212, 4
          %s221 = int_to_ptr.vmem [resolvable:$true] %s220
          %226 = dma.hbm_to_vmem [thread:$0]  %s219, 4096, %s221, %s209, 128, 128, 8
        $region36: #{tpu_custom_call.1} parent=31 // pred_fallthru
          _
      $region32: #{tpu_custom_call.1} parent=5 // pred_fallthru
        _
      %p227 = scmp.le.s32.totalorder 1, %s18
      %p228 = scmp.lt.s32.totalorder %s18, 5
      %p229 = pnand %p227, %p228
      %p230 = pneg %p229
      // Predicated region
      $region37: #{tpu_custom_call.1} parent=5 // pred_check
        _
      $region38: #{tpu_custom_call.1} parent=5 // pred_check_branch
        %232 = sbr.rel (%p229) target = $region40
      $region39: #{tpu_custom_call.1} parent=5 // pred_region
        %s233 = ssub.s32 %s18, 1
        %s234 = sand.u32 %s31, 1
        %s235 = scalar_lea.sflag [#allocation4], %s234
        %s236 = sand.u32 %s31, 1
        %s237 = smul.addr %s236, 256
        %s238 = scalar_lea.vmem [#allocation3], %s237
        // Predicated region
        $region41: #{tpu_custom_call.1} parent=39 // pred_check
          %p239 = pneg %p44
        $region42: #{tpu_custom_call.1} parent=39 // pred_check_branch
          %241 = sbr.rel (%p239) target = $region44
        $region43: #{tpu_custom_call.1} parent=39 // pred_region
          %242 = dma.done %s235, 4096
        $region44: #{tpu_custom_call.1} parent=39 // pred_fallthru
          _
        // Predicated region
        $region45: #{tpu_custom_call.1} parent=39 // pred_check
          %p243 = pneg %p65
        $region46: #{tpu_custom_call.1} parent=39 // pred_check_branch
          %245 = sbr.rel (%p243) target = $region48
        $region47: #{tpu_custom_call.1} parent=39 // pred_region
          %246 = dma.done [#allocation7], 6144
        $region48: #{tpu_custom_call.1} parent=39 // pred_fallthru
          _
        // Predicated region
        $region49: #{tpu_custom_call.1} parent=39 // pred_check
          %p247 = pneg %p107
        $region50: #{tpu_custom_call.1} parent=39 // pred_check_branch
          %249 = sbr.rel (%p247) target = $region52
        $region51: #{tpu_custom_call.1} parent=39 // pred_region
          %250 = dma.done [#allocation7], 2048
        $region52: #{tpu_custom_call.1} parent=39 // pred_fallthru
          _
        %s251 = sand.u32 %s31, 1
        %s252 = scalar_lea.sflag [#allocation4], %s251
        %s253 = sand.u32 %s31, 1
        %s254 = smul.addr %s253, 256
        %s255 = scalar_lea.vmem [#allocation3], %s254
        %p256 = pneg %p44
        %p257 = pneg %p41
        %p258 = pneg %p65
        %p259 = pneg %p62
        %p260 = pneg %p86
        %p261 = pneg %p83
        %p262 = pneg %p107
        %p263 = pneg %p104
        %p264 = pneg %p128
        %p265 = pneg %p125
        %p266 = pneg %p154
        %p267 = pneg %p151
        %s268 = sand.u32 %s141, 1
        %s269 = scalar_lea.sflag [#allocation5], %s268
        %s270 = sand.u32 %s141, 1
        %s271 = smul.addr %s270, 256
        %s272 = scalar_lea.vmem [#allocation9], %s271
        %s273 = smul.u32 2, %s23
        %s274 = smul.u32 2, %s23
        %v275 = vld [vmem:[%s238] sm:$0xff]
        %v276 = vld [vmem:[%s238 + $0x8] sm:$0xff]
        %v277 = vld [vmem:[%s238 + $0x10] sm:$0xff]
        %v278 = vld [vmem:[%s238 + $0x18] sm:$0xff]
        %v279 = vld [vmem:[%s238 + $0x20] sm:$0xff]
        %v280 = vld [vmem:[%s238 + $0x28] sm:$0xff]
        %v281 = vld [vmem:[%s238 + $0x30] sm:$0xff]
        %v282 = vld [vmem:[%s238 + $0x38] sm:$0xff]
        %v283 = vld [vmem:[%s238 + $0x40] sm:$0xff]
        %v284 = vld [vmem:[%s238 + $0x48] sm:$0xff]
        %v285 = vld [vmem:[%s238 + $0x50] sm:$0xff]
        %v286 = vld [vmem:[%s238 + $0x58] sm:$0xff]
        %v287 = vld [vmem:[%s238 + $0x60] sm:$0xff]
        %v288 = vld [vmem:[%s238 + $0x68] sm:$0xff]
        %v289 = vld [vmem:[%s238 + $0x70] sm:$0xff]
        %v290 = vld [vmem:[%s238 + $0x78] sm:$0xff]
        %v291 = vld [vmem:[%s238 + $0x80] sm:$0xff]
        %v292 = vld [vmem:[%s238 + $0x88] sm:$0xff]
        %v293 = vld [vmem:[%s238 + $0x90] sm:$0xff]
        %v294 = vld [vmem:[%s238 + $0x98] sm:$0xff]
        %v295 = vld [vmem:[%s238 + $0xa0] sm:$0xff]
        %v296 = vld [vmem:[%s238 + $0xa8] sm:$0xff]
        %v297 = vld [vmem:[%s238 + $0xb0] sm:$0xff]
        %v298 = vld [vmem:[%s238 + $0xb8] sm:$0xff]
        %v299 = vld [vmem:[%s238 + $0xc0] sm:$0xff]
        %v300 = vld [vmem:[%s238 + $0xc8] sm:$0xff]
        %v301 = vld [vmem:[%s238 + $0xd0] sm:$0xff]
        %v302 = vld [vmem:[%s238 + $0xd8] sm:$0xff]
        %v303 = vld [vmem:[%s238 + $0xe0] sm:$0xff]
        %v304 = vld [vmem:[%s238 + $0xe8] sm:$0xff]
        %v305 = vld [vmem:[%s238 + $0xf0] sm:$0xff]
        %v306 = vld [vmem:[%s238 + $0xf8] sm:$0xff]
        %v307 = vld [vmem:[#allocation6] sm:$0xff]
        %v308 = vld [vmem:[#allocation6 + $0x8] sm:$0xff]
        %v309 = vld [vmem:[#allocation6 + $0x10] sm:$0xff]
        %v310 = vld [vmem:[#allocation6 + $0x18] sm:$0xff]
        %v311 = vld [vmem:[#allocation6 + $0x20] sm:$0xff]
        %v312 = vld [vmem:[#allocation6 + $0x28] sm:$0xff]
        %v313 = vld [vmem:[#allocation6 + $0x30] sm:$0xff]
        %v314 = vld [vmem:[#allocation6 + $0x38] sm:$0xff]
        %v315 = vld [vmem:[#allocation6 + $0x40] sm:$0xff]
        %v316 = vld [vmem:[#allocation6 + $0x48] sm:$0xff]
        %v317 = vld [vmem:[#allocation6 + $0x50] sm:$0xff]
        %v318 = vld [vmem:[#allocation6 + $0x58] sm:$0xff]
        %v319 = vld [vmem:[#allocation6 + $0x60] sm:$0xff]
        %v320 = vld [vmem:[#allocation6 + $0x68] sm:$0xff]
        %v321 = vld [vmem:[#allocation6 + $0x70] sm:$0xff]
        %v322 = vld [vmem:[#allocation6 + $0x78] sm:$0xff]
        %v323 = vld [vmem:[#allocation6 + $0x80] sm:$0xff]
        %v324 = vld [vmem:[#allocation6 + $0x88] sm:$0xff]
        %v325 = vld [vmem:[#allocation6 + $0x90] sm:$0xff]
        %v326 = vld [vmem:[#allocation6 + $0x98] sm:$0xff]
        %v327 = vld [vmem:[#allocation6 + $0xa0] sm:$0xff]
        %v328 = vld [vmem:[#allocation6 + $0xa8] sm:$0xff]
        %v329 = vld [vmem:[#allocation6 + $0xb0] sm:$0xff]
        %v330 = vld [vmem:[#allocation6 + $0xb8] sm:$0xff]
        %v331 = vld [vmem:[#allocation6 + $0xc0] sm:$0xff]
        %v332 = vld [vmem:[#allocation6 + $0xc8] sm:$0xff]
        %v333 = vld [vmem:[#allocation6 + $0xd0] sm:$0xff]
        %v334 = vld [vmem:[#allocation6 + $0xd8] sm:$0xff]
        %v335 = vld [vmem:[#allocation6 + $0xe0] sm:$0xff]
        %v336 = vld [vmem:[#allocation6 + $0xe8] sm:$0xff]
        %v337 = vld [vmem:[#allocation6 + $0xf0] sm:$0xff]
        %v338 = vld [vmem:[#allocation6 + $0xf8] sm:$0xff]
        %v339 = vld [vmem:[#allocation6 + $0x100] sm:$0xff]
        %v340 = vld [vmem:[#allocation6 + $0x108] sm:$0xff]
        %v341 = vld [vmem:[#allocation6 + $0x110] sm:$0xff]
        %v342 = vld [vmem:[#allocation6 + $0x118] sm:$0xff]
        %v343 = vld [vmem:[#allocation6 + $0x120] sm:$0xff]
        %v344 = vld [vmem:[#allocation6 + $0x128] sm:$0xff]
        %v345 = vld [vmem:[#allocation6 + $0x130] sm:$0xff]
        %v346 = vld [vmem:[#allocation6 + $0x138] sm:$0xff]
        %v347 = vld [vmem:[#allocation6 + $0x140] sm:$0xff]
        %v348 = vld [vmem:[#allocation6 + $0x148] sm:$0xff]
        %v349 = vld [vmem:[#allocation6 + $0x150] sm:$0xff]
        %v350 = vld [vmem:[#allocation6 + $0x158] sm:$0xff]
        %v351 = vld [vmem:[#allocation6 + $0x160] sm:$0xff]
        %v352 = vld [vmem:[#allocation6 + $0x168] sm:$0xff]
        %v353 = vld [vmem:[#allocation6 + $0x170] sm:$0xff]
        %v354 = vld [vmem:[#allocation6 + $0x178] sm:$0xff]
        %v355 = vld [vmem:[%s2] sm:$0x7]
        %v357 = vlaneseq
        %v358 = vshrl.u32 %v357, 7
        %v359 = vsub.s32 0, %v358
        %v360 = vrot.slane %v355, %v359
        %v361 = vlaneseq
        %v362 = vshrl.u32 %v361, 7
        %v363 = vsub.s32 1, %v362
        %v364 = vrot.slane %v355, %v363
        %v365 = vlaneseq
        %v366 = vshrl.u32 %v365, 7
        %v367 = vsub.s32 2, %v366
        %v368 = vrot.slane %v355, %v367
        %372 = vmatprep.subr.mxu0 %v353
        %373 = vmatpush1.msra.mxu0 %v352
        %374 = vmatprep.subr.mxu0 %v350
        %375 = vmatpush1.msra.mxu0 %v349
        %376 = vmatprep.subr.mxu0 %v347
        %377 = vmatpush1.msra.mxu0 %v346
        %378 = vmatprep.subr.mxu0 %v344
        %379 = vmatpush1.msra.mxu0 %v343
        %380 = vmatprep.subr.mxu0 %v341
        %381 = vmatpush1.msra.mxu0 %v340
        %382 = vmatprep.subr.mxu0 %v338
        %383 = vmatpush1.msra.mxu0 %v337
        %384 = vmatprep.subr.mxu0 %v335
        %385 = vmatpush1.msra.mxu0 %v334
        %386 = vmatprep.subr.mxu0 %v332
        %387 = vmatpush1.msra.mxu0 %v331
        %388 = vmatprep.subr.mxu0 %v329
        %389 = vmatpush1.msra.mxu0 %v328
        %390 = vmatprep.subr.mxu0 %v326
        %391 = vmatpush1.msra.mxu0 %v325
        %392 = vmatprep.subr.mxu0 %v323
        %393 = vmatpush1.msra.mxu0 %v322
        %394 = vmatprep.subr.mxu0 %v320
        %395 = vmatpush1.msra.mxu0 %v319
        %396 = vmatprep.subr.mxu0 %v317
        %397 = vmatpush1.msra.mxu0 %v316
        %398 = vmatprep.subr.mxu0 %v314
        %399 = vmatpush1.msra.mxu0 %v313
        %400 = vmatprep.subr.mxu0 %v311
        %401 = vmatpush1.msra.mxu0 %v310
        %402 = vmatprep.subr.mxu0 %v308
        %403 = vmatpush1.msra.mxu0 %v307
        %404 = vmatprep.subr.mxu0 0.0
        %405 = vmatpush2.msra.mxu0 0.0
        %406 = vmatprep.subr.mxu0 0.0
        %407 = vmatpush2.msra.mxu0 0.0
        %408 = vmatprep.subr.mxu0 0.0
        %409 = vmatpush2.msra.mxu0 0.0
        %410 = vmatprep.subr.mxu0 0.0
        %411 = vmatpush2.msra.mxu0 0.0
        %412 = vmatprep.subr.mxu0 0.0
        %413 = vmatpush2.msra.mxu0 0.0
        %414 = vmatprep.subr.mxu0 0.0
        %415 = vmatpush2.msra.mxu0 0.0
        %416 = vmatprep.subr.mxu0 0.0
        %417 = vmatpush2.msra.mxu0 0.0
        %418 = vmatprep.subr.mxu0 0.0
        %419 = vmatpush2.msra.mxu0 0.0
        %420 = vmatprep.subr.mxu0 0.0
        %421 = vmatpush2.msra.mxu0 0.0
        %422 = vmatprep.subr.mxu0 0.0
        %423 = vmatpush2.msra.mxu0 0.0
        %424 = vmatprep.subr.mxu0 0.0
        %425 = vmatpush2.msra.mxu0 0.0
        %426 = vmatprep.subr.mxu0 0.0
        %427 = vmatpush2.msra.mxu0 0.0
        %428 = vmatprep.subr.mxu0 0.0
        %429 = vmatpush2.msra.mxu0 0.0
        %430 = vmatprep.subr.mxu0 0.0
        %431 = vmatpush2.msra.mxu0 0.0
        %432 = vmatprep.subr.mxu0 0.0
        %433 = vmatpush2.msra.mxu0 0.0
        %434 = vmatprep.subr.mxu0 0.0
        %435 = vmatpush2.msra.mxu0 0.0
        %436 = vmatprep.mubr.f32.mxu0 0.0
        %437 = vmatmul.mubr.f32.gmra.mxu0 %v275
        %v438 = vpop.f32.mrf.mxu0
        %v439 = vadd.f32 %v360, %v438
        %v440 = vpop.f32.mrf.mxu0
        %v441 = vadd.f32 %v364, %v440
        %442 = vmatprep.mubr.f32.mxu0 0.0
        %443 = vmatmul.mubr.f32.gmra.mxu0 %v276
        %v444 = vpop.f32.mrf.mxu0
        %v445 = vadd.f32 %v360, %v444
        %v446 = vpop.f32.mrf.mxu0
        %v447 = vadd.f32 %v364, %v446
        %448 = vmatprep.mubr.f32.mxu0 0.0
        %449 = vmatmul.mubr.f32.gmra.mxu0 %v277
        %v450 = vpop.f32.mrf.mxu0
        %v451 = vadd.f32 %v360, %v450
        %v452 = vpop.f32.mrf.mxu0
        %v453 = vadd.f32 %v364, %v452
        %454 = vmatprep.mubr.f32.mxu0 0.0
        %455 = vmatmul.mubr.f32.gmra.mxu0 %v278
        %v456 = vpop.f32.mrf.mxu0
        %v457 = vadd.f32 %v360, %v456
        %v458 = vpop.f32.mrf.mxu0
        %v459 = vadd.f32 %v364, %v458
        %460 = vmatprep.mubr.f32.mxu0 0.0
        %461 = vmatmul.mubr.f32.gmra.mxu0 %v279
        %v462 = vpop.f32.mrf.mxu0
        %v463 = vadd.f32 %v360, %v462
        %v464 = vpop.f32.mrf.mxu0
        %v465 = vadd.f32 %v364, %v464
        %466 = vmatprep.mubr.f32.mxu0 0.0
        %467 = vmatmul.mubr.f32.gmra.mxu0 %v280
        %v468 = vpop.f32.mrf.mxu0
        %v469 = vadd.f32 %v360, %v468
        %v470 = vpop.f32.mrf.mxu0
        %v471 = vadd.f32 %v364, %v470
        %472 = vmatprep.mubr.f32.mxu0 0.0
        %473 = vmatmul.mubr.f32.gmra.mxu0 %v281
        %v474 = vpop.f32.mrf.mxu0
        %v475 = vadd.f32 %v360, %v474
        %v476 = vpop.f32.mrf.mxu0
        %v477 = vadd.f32 %v364, %v476
        %478 = vmatprep.mubr.f32.mxu0 0.0
        %479 = vmatmul.mubr.f32.gmra.mxu0 %v282
        %v480 = vpop.f32.mrf.mxu0
        %v481 = vadd.f32 %v360, %v480
        %v482 = vpop.f32.mrf.mxu0
        %v483 = vadd.f32 %v364, %v482
        %484 = vmatprep.mubr.f32.mxu0 0.0
        %485 = vmatmul.mubr.f32.gmra.mxu0 %v283
        %v486 = vpop.f32.mrf.mxu0
        %v487 = vadd.f32 %v360, %v486
        %v488 = vpop.f32.mrf.mxu0
        %v489 = vadd.f32 %v364, %v488
        %490 = vmatprep.mubr.f32.mxu0 0.0
        %491 = vmatmul.mubr.f32.gmra.mxu0 %v284
        %v492 = vpop.f32.mrf.mxu0
        %v493 = vadd.f32 %v360, %v492
        %v494 = vpop.f32.mrf.mxu0
        %v495 = vadd.f32 %v364, %v494
        %496 = vmatprep.mubr.f32.mxu0 0.0
        %497 = vmatmul.mubr.f32.gmra.mxu0 %v285
        %v498 = vpop.f32.mrf.mxu0
        %v499 = vadd.f32 %v360, %v498
        %v500 = vpop.f32.mrf.mxu0
        %v501 = vadd.f32 %v364, %v500
        %502 = vmatprep.mubr.f32.mxu0 0.0
        %503 = vmatmul.mubr.f32.gmra.mxu0 %v286
        %v504 = vpop.f32.mrf.mxu0
        %v505 = vadd.f32 %v360, %v504
        %v506 = vpop.f32.mrf.mxu0
        %v507 = vadd.f32 %v364, %v506
        %508 = vmatprep.mubr.f32.mxu0 0.0
        %509 = vmatmul.mubr.f32.gmra.mxu0 %v287
        %v510 = vpop.f32.mrf.mxu0
        %v511 = vadd.f32 %v360, %v510
        %v512 = vpop.f32.mrf.mxu0
        %v513 = vadd.f32 %v364, %v512
        %514 = vmatprep.mubr.f32.mxu0 0.0
        %515 = vmatmul.mubr.f32.gmra.mxu0 %v288
        %v516 = vpop.f32.mrf.mxu0
        %v517 = vadd.f32 %v360, %v516
        %v518 = vpop.f32.mrf.mxu0
        %v519 = vadd.f32 %v364, %v518
        %520 = vmatprep.mubr.f32.mxu0 0.0
        %521 = vmatmul.mubr.f32.gmra.mxu0 %v289
        %v522 = vpop.f32.mrf.mxu0
        %v523 = vadd.f32 %v360, %v522
        %v524 = vpop.f32.mrf.mxu0
        %v525 = vadd.f32 %v364, %v524
        %526 = vmatprep.mubr.f32.mxu0 0.0
        %527 = vmatmul.mubr.f32.gmra.mxu0 %v290
        %v528 = vpop.f32.mrf.mxu0
        %v529 = vadd.f32 %v360, %v528
        %v530 = vpop.f32.mrf.mxu0
        %v531 = vadd.f32 %v364, %v530
        %532 = vmatprep.mubr.f32.mxu0 0.0
        %533 = vmatmul.mubr.f32.gmra.mxu0 %v291
        %v534 = vpop.f32.mrf.mxu0
        %v535 = vadd.f32 %v360, %v534
        %v536 = vpop.f32.mrf.mxu0
        %v537 = vadd.f32 %v364, %v536
        %538 = vmatprep.mubr.f32.mxu0 0.0
        %539 = vmatmul.mubr.f32.gmra.mxu0 %v292
        %v540 = vpop.f32.mrf.mxu0
        %v541 = vadd.f32 %v360, %v540
        %v542 = vpop.f32.mrf.mxu0
        %v543 = vadd.f32 %v364, %v542
        %544 = vmatprep.mubr.f32.mxu0 0.0
        %545 = vmatmul.mubr.f32.gmra.mxu0 %v293
        %v546 = vpop.f32.mrf.mxu0
        %v547 = vadd.f32 %v360, %v546
        %v548 = vpop.f32.mrf.mxu0
        %v549 = vadd.f32 %v364, %v548
        %550 = vmatprep.mubr.f32.mxu0 0.0
        %551 = vmatmul.mubr.f32.gmra.mxu0 %v294
        %v552 = vpop.f32.mrf.mxu0
        %v553 = vadd.f32 %v360, %v552
        %v554 = vpop.f32.mrf.mxu0
        %v555 = vadd.f32 %v364, %v554
        %556 = vmatprep.mubr.f32.mxu0 0.0
        %557 = vmatmul.mubr.f32.gmra.mxu0 %v295
        %v558 = vpop.f32.mrf.mxu0
        %v559 = vadd.f32 %v360, %v558
        %v560 = vpop.f32.mrf.mxu0
        %v561 = vadd.f32 %v364, %v560
        %562 = vmatprep.mubr.f32.mxu0 0.0
        %563 = vmatmul.mubr.f32.gmra.mxu0 %v296
        %v564 = vpop.f32.mrf.mxu0
        %v565 = vadd.f32 %v360, %v564
        %v566 = vpop.f32.mrf.mxu0
        %v567 = vadd.f32 %v364, %v566
        %568 = vmatprep.mubr.f32.mxu0 0.0
        %569 = vmatmul.mubr.f32.gmra.mxu0 %v297
        %v570 = vpop.f32.mrf.mxu0
        %v571 = vadd.f32 %v360, %v570
        %v572 = vpop.f32.mrf.mxu0
        %v573 = vadd.f32 %v364, %v572
        %574 = vmatprep.mubr.f32.mxu0 0.0
        %575 = vmatmul.mubr.f32.gmra.mxu0 %v298
        %v576 = vpop.f32.mrf.mxu0
        %v577 = vadd.f32 %v360, %v576
        %v578 = vpop.f32.mrf.mxu0
        %v579 = vadd.f32 %v364, %v578
        %580 = vmatprep.mubr.f32.mxu0 0.0
        %581 = vmatmul.mubr.f32.gmra.mxu0 %v299
        %v582 = vpop.f32.mrf.mxu0
        %v583 = vadd.f32 %v360, %v582
        %v584 = vpop.f32.mrf.mxu0
        %v585 = vadd.f32 %v364, %v584
        %586 = vmatprep.mubr.f32.mxu0 0.0
        %587 = vmatmul.mubr.f32.gmra.mxu0 %v300
        %v588 = vpop.f32.mrf.mxu0
        %v589 = vadd.f32 %v360, %v588
        %v590 = vpop.f32.mrf.mxu0
        %v591 = vadd.f32 %v364, %v590
        %592 = vmatprep.mubr.f32.mxu0 0.0
        %593 = vmatmul.mubr.f32.gmra.mxu0 %v301
        %v594 = vpop.f32.mrf.mxu0
        %v595 = vadd.f32 %v360, %v594
        %v596 = vpop.f32.mrf.mxu0
        %v597 = vadd.f32 %v364, %v596
        %598 = vmatprep.mubr.f32.mxu0 0.0
        %599 = vmatmul.mubr.f32.gmra.mxu0 %v302
        %v600 = vpop.f32.mrf.mxu0
        %v601 = vadd.f32 %v360, %v600
        %v602 = vpop.f32.mrf.mxu0
        %v603 = vadd.f32 %v364, %v602
        %604 = vmatprep.mubr.f32.mxu0 0.0
        %605 = vmatmul.mubr.f32.gmra.mxu0 %v303
        %v606 = vpop.f32.mrf.mxu0
        %v607 = vadd.f32 %v360, %v606
        %v608 = vpop.f32.mrf.mxu0
        %v609 = vadd.f32 %v364, %v608
        %610 = vmatprep.mubr.f32.mxu0 0.0
        %611 = vmatmul.mubr.f32.gmra.mxu0 %v304
        %v612 = vpop.f32.mrf.mxu0
        %v613 = vadd.f32 %v360, %v612
        %v614 = vpop.f32.mrf.mxu0
        %v615 = vadd.f32 %v364, %v614
        %616 = vmatprep.mubr.f32.mxu0 0.0
        %617 = vmatmul.mubr.f32.gmra.mxu0 %v305
        %v618 = vpop.f32.mrf.mxu0
        %v619 = vadd.f32 %v360, %v618
        %v620 = vpop.f32.mrf.mxu0
        %v621 = vadd.f32 %v364, %v620
        %622 = vmatprep.mubr.f32.mxu0 0.0
        %623 = vmatmul.mubr.f32.gmra.mxu0 %v306
        %v624 = vpop.f32.mrf.mxu0
        %v625 = vadd.f32 %v360, %v624
        %v626 = vpop.f32.mrf.mxu0
        %v627 = vadd.f32 %v364, %v626
        %628 = vdwg.mxu0
        %629 = vmatprep.subr.mxu0 0.0
        %630 = vmatpush1.msra.mxu0 %v354
        %631 = vmatprep.subr.mxu0 0.0
        %632 = vmatpush1.msra.mxu0 %v351
        %633 = vmatprep.subr.mxu0 0.0
        %634 = vmatpush1.msra.mxu0 %v348
        %635 = vmatprep.subr.mxu0 0.0
        %636 = vmatpush1.msra.mxu0 %v345
        %637 = vmatprep.subr.mxu0 0.0
        %638 = vmatpush1.msra.mxu0 %v342
        %639 = vmatprep.subr.mxu0 0.0
        %640 = vmatpush1.msra.mxu0 %v339
        %641 = vmatprep.subr.mxu0 0.0
        %642 = vmatpush1.msra.mxu0 %v336
        %643 = vmatprep.subr.mxu0 0.0
        %644 = vmatpush1.msra.mxu0 %v333
        %645 = vmatprep.subr.mxu0 0.0
        %646 = vmatpush1.msra.mxu0 %v330
        %647 = vmatprep.subr.mxu0 0.0
        %648 = vmatpush1.msra.mxu0 %v327
        %649 = vmatprep.subr.mxu0 0.0
        %650 = vmatpush1.msra.mxu0 %v324
        %651 = vmatprep.subr.mxu0 0.0
        %652 = vmatpush1.msra.mxu0 %v321
        %653 = vmatprep.subr.mxu0 0.0
        %654 = vmatpush1.msra.mxu0 %v318
        %655 = vmatprep.subr.mxu0 0.0
        %656 = vmatpush1.msra.mxu0 %v315
        %657 = vmatprep.subr.mxu0 0.0
        %658 = vmatpush1.msra.mxu0 %v312
        %659 = vmatprep.subr.mxu0 0.0
        %660 = vmatpush1.msra.mxu0 %v309
        %661 = vmatprep.subr.mxu0 0.0
        %662 = vmatpush2.msra.mxu0 0.0
        %663 = vmatprep.subr.mxu0 0.0
        %664 = vmatpush2.msra.mxu0 0.0
        %665 = vmatprep.subr.mxu0 0.0
        %666 = vmatpush2.msra.mxu0 0.0
        %667 = vmatprep.subr.mxu0 0.0
        %668 = vmatpush2.msra.mxu0 0.0
        %669 = vmatprep.subr.mxu0 0.0
        %670 = vmatpush2.msra.mxu0 0.0
        %671 = vmatprep.subr.mxu0 0.0
        %672 = vmatpush2.msra.mxu0 0.0
        %673 = vmatprep.subr.mxu0 0.0
        %674 = vmatpush2.msra.mxu0 0.0
        %675 = vmatprep.subr.mxu0 0.0
        %676 = vmatpush2.msra.mxu0 0.0
        %677 = vmatprep.subr.mxu0 0.0
        %678 = vmatpush2.msra.mxu0 0.0
        %679 = vmatprep.subr.mxu0 0.0
        %680 = vmatpush2.msra.mxu0 0.0
        %681 = vmatprep.subr.mxu0 0.0
        %682 = vmatpush2.msra.mxu0 0.0
        %683 = vmatprep.subr.mxu0 0.0
        %684 = vmatpush2.msra.mxu0 0.0
        %685 = vmatprep.subr.mxu0 0.0
        %686 = vmatpush2.msra.mxu0 0.0
        %687 = vmatprep.subr.mxu0 0.0
        %688 = vmatpush2.msra.mxu0 0.0
        %689 = vmatprep.subr.mxu0 0.0
        %690 = vmatpush2.msra.mxu0 0.0
        %691 = vmatprep.subr.mxu0 0.0
        %692 = vmatpush2.msra.mxu0 0.0
        %693 = vmatprep.mubr.f32.mxu0 0.0
        %694 = vmatmul.mubr.f32.gmra.mxu0 %v275
        %v695 = vpop.f32.mrf.mxu0
        %v696 = vadd.f32 %v368, %v695
        %v697 = vpop.f32.mrf.mxu0
        %698 = vmatprep.mubr.f32.mxu0 0.0
        %699 = vmatmul.mubr.f32.gmra.mxu0 %v276
        %v700 = vpop.f32.mrf.mxu0
        %v701 = vadd.f32 %v368, %v700
        %v702 = vpop.f32.mrf.mxu0
        %703 = vmatprep.mubr.f32.mxu0 0.0
        %704 = vmatmul.mubr.f32.gmra.mxu0 %v277
        %v705 = vpop.f32.mrf.mxu0
        %v706 = vadd.f32 %v368, %v705
        %v707 = vpop.f32.mrf.mxu0
        %708 = vmatprep.mubr.f32.mxu0 0.0
        %709 = vmatmul.mubr.f32.gmra.mxu0 %v278
        %v710 = vpop.f32.mrf.mxu0
        %v711 = vadd.f32 %v368, %v710
        %v712 = vpop.f32.mrf.mxu0
        %713 = vmatprep.mubr.f32.mxu0 0.0
        %714 = vmatmul.mubr.f32.gmra.mxu0 %v279
        %v715 = vpop.f32.mrf.mxu0
        %v716 = vadd.f32 %v368, %v715
        %v717 = vpop.f32.mrf.mxu0
        %718 = vmatprep.mubr.f32.mxu0 0.0
        %719 = vmatmul.mubr.f32.gmra.mxu0 %v280
        %v720 = vpop.f32.mrf.mxu0
        %v721 = vadd.f32 %v368, %v720
        %v722 = vpop.f32.mrf.mxu0
        %723 = vmatprep.mubr.f32.mxu0 0.0
        %724 = vmatmul.mubr.f32.gmra.mxu0 %v281
        %v725 = vpop.f32.mrf.mxu0
        %v726 = vadd.f32 %v368, %v725
        %v727 = vpop.f32.mrf.mxu0
        %728 = vmatprep.mubr.f32.mxu0 0.0
        %729 = vmatmul.mubr.f32.gmra.mxu0 %v282
        %v730 = vpop.f32.mrf.mxu0
        %v731 = vadd.f32 %v368, %v730
        %v732 = vpop.f32.mrf.mxu0
        %733 = vmatprep.mubr.f32.mxu0 0.0
        %734 = vmatmul.mubr.f32.gmra.mxu0 %v283
        %v735 = vpop.f32.mrf.mxu0
        %v736 = vadd.f32 %v368, %v735
        %v737 = vpop.f32.mrf.mxu0
        %738 = vmatprep.mubr.f32.mxu0 0.0
        %739 = vmatmul.mubr.f32.gmra.mxu0 %v284
        %v740 = vpop.f32.mrf.mxu0
        %v741 = vadd.f32 %v368, %v740
        %v742 = vpop.f32.mrf.mxu0
        %743 = vmatprep.mubr.f32.mxu0 0.0
        %744 = vmatmul.mubr.f32.gmra.mxu0 %v285
        %v745 = vpop.f32.mrf.mxu0
        %v746 = vadd.f32 %v368, %v745
        %v747 = vpop.f32.mrf.mxu0
        %748 = vmatprep.mubr.f32.mxu0 0.0
        %749 = vmatmul.mubr.f32.gmra.mxu0 %v286
        %v750 = vpop.f32.mrf.mxu0
        %v751 = vadd.f32 %v368, %v750
        %v752 = vpop.f32.mrf.mxu0
        %753 = vmatprep.mubr.f32.mxu0 0.0
        %754 = vmatmul.mubr.f32.gmra.mxu0 %v287
        %v755 = vpop.f32.mrf.mxu0
        %v756 = vadd.f32 %v368, %v755
        %v757 = vpop.f32.mrf.mxu0
        %758 = vmatprep.mubr.f32.mxu0 0.0
        %759 = vmatmul.mubr.f32.gmra.mxu0 %v288
        %v760 = vpop.f32.mrf.mxu0
        %v761 = vadd.f32 %v368, %v760
        %v762 = vpop.f32.mrf.mxu0
        %763 = vmatprep.mubr.f32.mxu0 0.0
        %764 = vmatmul.mubr.f32.gmra.mxu0 %v289
        %v765 = vpop.f32.mrf.mxu0
        %v766 = vadd.f32 %v368, %v765
        %v767 = vpop.f32.mrf.mxu0
        %768 = vmatprep.mubr.f32.mxu0 0.0
        %769 = vmatmul.mubr.f32.gmra.mxu0 %v290
        %v770 = vpop.f32.mrf.mxu0
        %v771 = vadd.f32 %v368, %v770
        %v772 = vpop.f32.mrf.mxu0
        %773 = vmatprep.mubr.f32.mxu0 0.0
        %774 = vmatmul.mubr.f32.gmra.mxu0 %v291
        %v775 = vpop.f32.mrf.mxu0
        %v776 = vadd.f32 %v368, %v775
        %v777 = vpop.f32.mrf.mxu0
        %778 = vmatprep.mubr.f32.mxu0 0.0
        %779 = vmatmul.mubr.f32.gmra.mxu0 %v292
        %v780 = vpop.f32.mrf.mxu0
        %v781 = vadd.f32 %v368, %v780
        %v782 = vpop.f32.mrf.mxu0
        %783 = vmatprep.mubr.f32.mxu0 0.0
        %784 = vmatmul.mubr.f32.gmra.mxu0 %v293
        %v785 = vpop.f32.mrf.mxu0
        %v786 = vadd.f32 %v368, %v785
        %v787 = vpop.f32.mrf.mxu0
        %788 = vmatprep.mubr.f32.mxu0 0.0
        %789 = vmatmul.mubr.f32.gmra.mxu0 %v294
        %v790 = vpop.f32.mrf.mxu0
        %v791 = vadd.f32 %v368, %v790
        %v792 = vpop.f32.mrf.mxu0
        %793 = vmatprep.mubr.f32.mxu0 0.0
        %794 = vmatmul.mubr.f32.gmra.mxu0 %v295
        %v795 = vpop.f32.mrf.mxu0
        %v796 = vadd.f32 %v368, %v795
        %v797 = vpop.f32.mrf.mxu0
        %798 = vmatprep.mubr.f32.mxu0 0.0
        %799 = vmatmul.mubr.f32.gmra.mxu0 %v296
        %v800 = vpop.f32.mrf.mxu0
        %v801 = vadd.f32 %v368, %v800
        %v802 = vpop.f32.mrf.mxu0
        %803 = vmatprep.mubr.f32.mxu0 0.0
        %804 = vmatmul.mubr.f32.gmra.mxu0 %v297
        %v805 = vpop.f32.mrf.mxu0
        %v806 = vadd.f32 %v368, %v805
        %v807 = vpop.f32.mrf.mxu0
        %808 = vmatprep.mubr.f32.mxu0 0.0
        %809 = vmatmul.mubr.f32.gmra.mxu0 %v298
        %v810 = vpop.f32.mrf.mxu0
        %v811 = vadd.f32 %v368, %v810
        %v812 = vpop.f32.mrf.mxu0
        %813 = vmatprep.mubr.f32.mxu0 0.0
        %814 = vmatmul.mubr.f32.gmra.mxu0 %v299
        %v815 = vpop.f32.mrf.mxu0
        %v816 = vadd.f32 %v368, %v815
        %v817 = vpop.f32.mrf.mxu0
        %818 = vmatprep.mubr.f32.mxu0 0.0
        %819 = vmatmul.mubr.f32.gmra.mxu0 %v300
        %v820 = vpop.f32.mrf.mxu0
        %v821 = vadd.f32 %v368, %v820
        %v822 = vpop.f32.mrf.mxu0
        %823 = vmatprep.mubr.f32.mxu0 0.0
        %824 = vmatmul.mubr.f32.gmra.mxu0 %v301
        %v825 = vpop.f32.mrf.mxu0
        %v826 = vadd.f32 %v368, %v825
        %v827 = vpop.f32.mrf.mxu0
        %828 = vmatprep.mubr.f32.mxu0 0.0
        %829 = vmatmul.mubr.f32.gmra.mxu0 %v302
        %v830 = vpop.f32.mrf.mxu0
        %v831 = vadd.f32 %v368, %v830
        %v832 = vpop.f32.mrf.mxu0
        %833 = vmatprep.mubr.f32.mxu0 0.0
        %834 = vmatmul.mubr.f32.gmra.mxu0 %v303
        %v835 = vpop.f32.mrf.mxu0
        %v836 = vadd.f32 %v368, %v835
        %v837 = vpop.f32.mrf.mxu0
        %838 = vmatprep.mubr.f32.mxu0 0.0
        %839 = vmatmul.mubr.f32.gmra.mxu0 %v304
        %v840 = vpop.f32.mrf.mxu0
        %v841 = vadd.f32 %v368, %v840
        %v842 = vpop.f32.mrf.mxu0
        %843 = vmatprep.mubr.f32.mxu0 0.0
        %844 = vmatmul.mubr.f32.gmra.mxu0 %v305
        %v845 = vpop.f32.mrf.mxu0
        %v846 = vadd.f32 %v368, %v845
        %v847 = vpop.f32.mrf.mxu0
        %848 = vmatprep.mubr.f32.mxu0 0.0
        %849 = vmatmul.mubr.f32.gmra.mxu0 %v306
        %v850 = vpop.f32.mrf.mxu0
        %v851 = vadd.f32 %v368, %v850
        %v852 = vpop.f32.mrf.mxu0
        %853 = vdwg.mxu0
        %v854 = vmul.f32 %v439, 0.17677669
        %v855 = vmul.f32 %v445, 0.17677669
        %v856 = vmul.f32 %v451, 0.17677669
        %v857 = vmul.f32 %v457, 0.17677669
        %v858 = vmul.f32 %v463, 0.17677669
        %v859 = vmul.f32 %v469, 0.17677669
        %v860 = vmul.f32 %v475, 0.17677669
        %v861 = vmul.f32 %v481, 0.17677669
        %v862 = vmul.f32 %v487, 0.17677669
        %v863 = vmul.f32 %v493, 0.17677669
        %v864 = vmul.f32 %v499, 0.17677669
        %v865 = vmul.f32 %v505, 0.17677669
        %v866 = vmul.f32 %v511, 0.17677669
        %v867 = vmul.f32 %v517, 0.17677669
        %v868 = vmul.f32 %v523, 0.17677669
        %v869 = vmul.f32 %v529, 0.17677669
        %v870 = vmul.f32 %v535, 0.17677669
        %v871 = vmul.f32 %v541, 0.17677669
        %v872 = vmul.f32 %v547, 0.17677669
        %v873 = vmul.f32 %v553, 0.17677669
        %v874 = vmul.f32 %v559, 0.17677669
        %v875 = vmul.f32 %v565, 0.17677669
        %v876 = vmul.f32 %v571, 0.17677669
        %v877 = vmul.f32 %v577, 0.17677669
        %v878 = vmul.f32 %v583, 0.17677669
        %v879 = vmul.f32 %v589, 0.17677669
        %v880 = vmul.f32 %v595, 0.17677669
        %v881 = vmul.f32 %v601, 0.17677669
        %v882 = vmul.f32 %v607, 0.17677669
        %v883 = vmul.f32 %v613, 0.17677669
        %v884 = vmul.f32 %v619, 0.17677669
        %v885 = vmul.f32 %v625, 0.17677669
        %v886 = vlaneseq
        %v887 = vshrl.u32 %v886, 7
        %v888 = vadd.s32 %v887, 8
        %v889 = vadd.s32 %v887, 16
        %v890 = vadd.s32 %v887, 24
        %v891 = vadd.s32 %v887, 32
        %v892 = vadd.s32 %v887, 40
        %v893 = vadd.s32 %v887, 48
        %v894 = vadd.s32 %v887, 56
        %v895 = vadd.s32 %v887, 64
        %v896 = vadd.s32 %v887, 72
        %v897 = vadd.s32 %v887, 80
        %v898 = vadd.s32 %v887, 88
        %v899 = vadd.s32 %v887, 96
        %v900 = vadd.s32 %v887, 104
        %v901 = vadd.s32 %v887, 112
        %v902 = vadd.s32 %v887, 120
        %v903 = vlaneseq
        %v904 = vand.u32 %v903, 127
        %vm905 = vcmp.le.s32.totalorder %v904, %v887
        %vm906 = vcmp.le.s32.totalorder %v904, %v888
        %vm907 = vcmp.le.s32.totalorder %v904, %v889
        %vm908 = vcmp.le.s32.totalorder %v904, %v890
        %vm909 = vcmp.le.s32.totalorder %v904, %v891
        %vm910 = vcmp.le.s32.totalorder %v904, %v892
        %vm911 = vcmp.le.s32.totalorder %v904, %v893
        %vm912 = vcmp.le.s32.totalorder %v904, %v894
        %vm913 = vcmp.le.s32.totalorder %v904, %v895
        %vm914 = vcmp.le.s32.totalorder %v904, %v896
        %vm915 = vcmp.le.s32.totalorder %v904, %v897
        %vm916 = vcmp.le.s32.totalorder %v904, %v898
        %vm917 = vcmp.le.s32.totalorder %v904, %v899
        %vm918 = vcmp.le.s32.totalorder %v904, %v900
        %vm919 = vcmp.le.s32.totalorder %v904, %v901
        %vm920 = vcmp.le.s32.totalorder %v904, %v902
        %v921 = vsel %vm905, 0.0, -1e+30
        %v922 = vsel %vm906, 0.0, -1e+30
        %v923 = vsel %vm907, 0.0, -1e+30
        %v924 = vsel %vm908, 0.0, -1e+30
        %v925 = vsel %vm909, 0.0, -1e+30
        %v926 = vsel %vm910, 0.0, -1e+30
        %v927 = vsel %vm911, 0.0, -1e+30
        %v928 = vsel %vm912, 0.0, -1e+30
        %v929 = vsel %vm913, 0.0, -1e+30
        %v930 = vsel %vm914, 0.0, -1e+30
        %v931 = vsel %vm915, 0.0, -1e+30
        %v932 = vsel %vm916, 0.0, -1e+30
        %v933 = vsel %vm917, 0.0, -1e+30
        %v934 = vsel %vm918, 0.0, -1e+30
        %v935 = vsel %vm919, 0.0, -1e+30
        %v936 = vsel %vm920, 0.0, -1e+30
        %vm937 = vcmask 261120
        %v939 = vsel %vm937, %v854, 0
        %v942 = vsel %vm937, %v855, 0
        %v945 = vsel %vm937, %v856, 0
        %v948 = vsel %vm937, %v857, 0
        %v951 = vsel %vm937, %v858, 0
        %v954 = vsel %vm937, %v859, 0
        %v957 = vsel %vm937, %v860, 0
        %v960 = vsel %vm937, %v861, 0
        %v963 = vsel %vm937, %v862, 0
        %v966 = vsel %vm937, %v863, 0
        %v969 = vsel %vm937, %v864, 0
        %v972 = vsel %vm937, %v865, 0
        %v975 = vsel %vm937, %v866, 0
        %v978 = vsel %vm937, %v867, 0
        %v981 = vsel %vm937, %v868, 0
        %v984 = vsel %vm937, %v869, 0
        %v987 = vsel %vm937, %v441, 0
        %v990 = vsel %vm937, %v447, 0
        %v993 = vsel %vm937, %v453, 0
        %v996 = vsel %vm937, %v459, 0
        %v999 = vsel %vm937, %v465, 0
        %v1002 = vsel %vm937, %v471, 0
        %v1005 = vsel %vm937, %v477, 0
        %v1008 = vsel %vm937, %v483, 0
        %v1011 = vsel %vm937, %v489, 0
        %v1014 = vsel %vm937, %v495, 0
        %v1017 = vsel %vm937, %v501, 0
        %v1020 = vsel %vm937, %v507, 0
        %v1023 = vsel %vm937, %v513, 0
        %v1026 = vsel %vm937, %v519, 0
        %v1029 = vsel %vm937, %v525, 0
        %v1032 = vsel %vm937, %v531, 0
        %1034 = vmatprep.subr.mxu0 0.0
        %1035 = vmatpush1.xpose.msra.mxu0 %v1032
        %1036 = vmatprep.subr.mxu0 0.0
        %1037 = vmatpush1.xpose.msra.mxu0 %v1029
        %1038 = vmatprep.subr.mxu0 0.0
        %1039 = vmatpush1.xpose.msra.mxu0 %v1026
        %1040 = vmatprep.subr.mxu0 0.0
        %1041 = vmatpush1.xpose.msra.mxu0 %v1023
        %1042 = vmatprep.subr.mxu0 0.0
        %1043 = vmatpush1.xpose.msra.mxu0 %v1020
        %1044 = vmatprep.subr.mxu0 0.0
        %1045 = vmatpush1.xpose.msra.mxu0 %v1017
        %1046 = vmatprep.subr.mxu0 0.0
        %1047 = vmatpush1.xpose.msra.mxu0 %v1014
        %1048 = vmatprep.subr.mxu0 0.0
        %1049 = vmatpush1.xpose.msra.mxu0 %v1011
        %1050 = vmatprep.subr.mxu0 0.0
        %1051 = vmatpush1.xpose.msra.mxu0 %v1008
        %1052 = vmatprep.subr.mxu0 0.0
        %1053 = vmatpush1.xpose.msra.mxu0 %v1005
        %1054 = vmatprep.subr.mxu0 0.0
        %1055 = vmatpush1.xpose.msra.mxu0 %v1002
        %1056 = vmatprep.subr.mxu0 0.0
        %1057 = vmatpush1.xpose.msra.mxu0 %v999
        %1058 = vmatprep.subr.mxu0 0.0
        %1059 = vmatpush1.xpose.msra.mxu0 %v996
        %1060 = vmatprep.subr.mxu0 0.0
        %1061 = vmatpush1.xpose.msra.mxu0 %v993
        %1062 = vmatprep.subr.mxu0 0.0
        %1063 = vmatpush1.xpose.msra.mxu0 %v990
        %1064 = vmatprep.subr.mxu0 0.0
        %1065 = vmatpush1.xpose.msra.mxu0 %v987
        %1066 = vmatprep.subr.mxu0 0.0
        %1067 = vmatpush2.xpose.msra.mxu0 0.0
        %1068 = vmatprep.subr.mxu0 0.0
        %1069 = vmatpush2.xpose.msra.mxu0 0.0
        %1070 = vmatprep.subr.mxu0 0.0
        %1071 = vmatpush2.xpose.msra.mxu0 0.0
        %1072 = vmatprep.subr.mxu0 0.0
        %1073 = vmatpush2.xpose.msra.mxu0 0.0
        %1074 = vmatprep.subr.mxu0 0.0
        %1075 = vmatpush2.xpose.msra.mxu0 0.0
        %1076 = vmatprep.subr.mxu0 0.0
        %1077 = vmatpush2.xpose.msra.mxu0 0.0
        %1078 = vmatprep.subr.mxu0 0.0
        %1079 = vmatpush2.xpose.msra.mxu0 0.0
        %1080 = vmatprep.subr.mxu0 0.0
        %1081 = vmatpush2.xpose.msra.mxu0 0.0
        %1082 = vmatprep.subr.mxu0 0.0
        %1083 = vmatpush2.xpose.msra.mxu0 0.0
        %1084 = vmatprep.subr.mxu0 0.0
        %1085 = vmatpush2.xpose.msra.mxu0 0.0
        %1086 = vmatprep.subr.mxu0 0.0
        %1087 = vmatpush2.xpose.msra.mxu0 0.0
        %1088 = vmatprep.subr.mxu0 0.0
        %1089 = vmatpush2.xpose.msra.mxu0 0.0
        %1090 = vmatprep.subr.mxu0 0.0
        %1091 = vmatpush2.xpose.msra.mxu0 0.0
        %1092 = vmatprep.subr.mxu0 0.0
        %1093 = vmatpush2.xpose.msra.mxu0 0.0
        %1094 = vmatprep.subr.mxu0 0.0
        %1095 = vmatpush2.xpose.msra.mxu0 0.0
        %1096 = vmatprep.subr.mxu0 0.0
        %1097 = vmatpush2.xpose.msra.mxu0 0.0
        %1098 = vmatprep.mubr.f32.mxu0 0.0
        %1099 = vmatmul.mubr.f32.gmra.mxu0 %v939
        %v1100 = vpop.f32.mrf.mxu0
        %v1101 = vadd.f32 %v921, %v1100
        %v1102 = vpop.f32.mrf.mxu0
        %1103 = vmatprep.mubr.f32.mxu0 0.0
        %1104 = vmatmul.mubr.f32.gmra.mxu0 %v942
        %v1105 = vpop.f32.mrf.mxu0
        %v1106 = vadd.f32 %v922, %v1105
        %v1107 = vpop.f32.mrf.mxu0
        %1108 = vmatprep.mubr.f32.mxu0 0.0
        %1109 = vmatmul.mubr.f32.gmra.mxu0 %v945
        %v1110 = vpop.f32.mrf.mxu0
        %v1111 = vadd.f32 %v923, %v1110
        %v1112 = vpop.f32.mrf.mxu0
        %1113 = vmatprep.mubr.f32.mxu0 0.0
        %1114 = vmatmul.mubr.f32.gmra.mxu0 %v948
        %v1115 = vpop.f32.mrf.mxu0
        %v1116 = vadd.f32 %v924, %v1115
        %v1117 = vpop.f32.mrf.mxu0
        %1118 = vmatprep.mubr.f32.mxu0 0.0
        %1119 = vmatmul.mubr.f32.gmra.mxu0 %v951
        %v1120 = vpop.f32.mrf.mxu0
        %v1121 = vadd.f32 %v925, %v1120
        %v1122 = vpop.f32.mrf.mxu0
        %1123 = vmatprep.mubr.f32.mxu0 0.0
        %1124 = vmatmul.mubr.f32.gmra.mxu0 %v954
        %v1125 = vpop.f32.mrf.mxu0
        %v1126 = vadd.f32 %v926, %v1125
        %v1127 = vpop.f32.mrf.mxu0
        %1128 = vmatprep.mubr.f32.mxu0 0.0
        %1129 = vmatmul.mubr.f32.gmra.mxu0 %v957
        %v1130 = vpop.f32.mrf.mxu0
        %v1131 = vadd.f32 %v927, %v1130
        %v1132 = vpop.f32.mrf.mxu0
        %1133 = vmatprep.mubr.f32.mxu0 0.0
        %1134 = vmatmul.mubr.f32.gmra.mxu0 %v960
        %v1135 = vpop.f32.mrf.mxu0
        %v1136 = vadd.f32 %v928, %v1135
        %v1137 = vpop.f32.mrf.mxu0
        %1138 = vmatprep.mubr.f32.mxu0 0.0
        %1139 = vmatmul.mubr.f32.gmra.mxu0 %v963
        %v1140 = vpop.f32.mrf.mxu0
        %v1141 = vadd.f32 %v929, %v1140
        %v1142 = vpop.f32.mrf.mxu0
        %1143 = vmatprep.mubr.f32.mxu0 0.0
        %1144 = vmatmul.mubr.f32.gmra.mxu0 %v966
        %v1145 = vpop.f32.mrf.mxu0
        %v1146 = vadd.f32 %v930, %v1145
        %v1147 = vpop.f32.mrf.mxu0
        %1148 = vmatprep.mubr.f32.mxu0 0.0
        %1149 = vmatmul.mubr.f32.gmra.mxu0 %v969
        %v1150 = vpop.f32.mrf.mxu0
        %v1151 = vadd.f32 %v931, %v1150
        %v1152 = vpop.f32.mrf.mxu0
        %1153 = vmatprep.mubr.f32.mxu0 0.0
        %1154 = vmatmul.mubr.f32.gmra.mxu0 %v972
        %v1155 = vpop.f32.mrf.mxu0
        %v1156 = vadd.f32 %v932, %v1155
        %v1157 = vpop.f32.mrf.mxu0
        %1158 = vmatprep.mubr.f32.mxu0 0.0
        %1159 = vmatmul.mubr.f32.gmra.mxu0 %v975
        %v1160 = vpop.f32.mrf.mxu0
        %v1161 = vadd.f32 %v933, %v1160
        %v1162 = vpop.f32.mrf.mxu0
        %1163 = vmatprep.mubr.f32.mxu0 0.0
        %1164 = vmatmul.mubr.f32.gmra.mxu0 %v978
        %v1165 = vpop.f32.mrf.mxu0
        %v1166 = vadd.f32 %v934, %v1165
        %v1167 = vpop.f32.mrf.mxu0
        %1168 = vmatprep.mubr.f32.mxu0 0.0
        %1169 = vmatmul.mubr.f32.gmra.mxu0 %v981
        %v1170 = vpop.f32.mrf.mxu0
        %v1171 = vadd.f32 %v935, %v1170
        %v1172 = vpop.f32.mrf.mxu0
        %1173 = vmatprep.mubr.f32.mxu0 0.0
        %1174 = vmatmul.mubr.f32.gmra.mxu0 %v984
        %v1175 = vpop.f32.mrf.mxu0
        %v1176 = vadd.f32 %v936, %v1175
        %v1177 = vpop.f32.mrf.mxu0
        %1178 = vdwg.mxu0
        %v1180 = vsel %vm937, %v870, 0
        %v1183 = vsel %vm937, %v871, 0
        %v1186 = vsel %vm937, %v872, 0
        %v1189 = vsel %vm937, %v873, 0
        %v1192 = vsel %vm937, %v874, 0
        %v1195 = vsel %vm937, %v875, 0
        %v1198 = vsel %vm937, %v876, 0
        %v1201 = vsel %vm937, %v877, 0
        %v1204 = vsel %vm937, %v878, 0
        %v1207 = vsel %vm937, %v879, 0
        %v1210 = vsel %vm937, %v880, 0
        %v1213 = vsel %vm937, %v881, 0
        %v1216 = vsel %vm937, %v882, 0
        %v1219 = vsel %vm937, %v883, 0
        %v1222 = vsel %vm937, %v884, 0
        %v1225 = vsel %vm937, %v885, 0
        %v1228 = vsel %vm937, %v537, 0
        %v1231 = vsel %vm937, %v543, 0
        %v1234 = vsel %vm937, %v549, 0
        %v1237 = vsel %vm937, %v555, 0
        %v1240 = vsel %vm937, %v561, 0
        %v1243 = vsel %vm937, %v567, 0
        %v1246 = vsel %vm937, %v573, 0
        %v1249 = vsel %vm937, %v579, 0
        %v1252 = vsel %vm937, %v585, 0
        %v1255 = vsel %vm937, %v591, 0
        %v1258 = vsel %vm937, %v597, 0
        %v1261 = vsel %vm937, %v603, 0
        %v1264 = vsel %vm937, %v609, 0
        %v1267 = vsel %vm937, %v615, 0
        %v1270 = vsel %vm937, %v621, 0
        %v1273 = vsel %vm937, %v627, 0
        %1275 = vmatprep.subr.mxu0 0.0
        %1276 = vmatpush1.xpose.msra.mxu0 %v1273
        %1277 = vmatprep.subr.mxu0 0.0
        %1278 = vmatpush1.xpose.msra.mxu0 %v1270
        %1279 = vmatprep.subr.mxu0 0.0
        %1280 = vmatpush1.xpose.msra.mxu0 %v1267
        %1281 = vmatprep.subr.mxu0 0.0
        %1282 = vmatpush1.xpose.msra.mxu0 %v1264
        %1283 = vmatprep.subr.mxu0 0.0
        %1284 = vmatpush1.xpose.msra.mxu0 %v1261
        %1285 = vmatprep.subr.mxu0 0.0
        %1286 = vmatpush1.xpose.msra.mxu0 %v1258
        %1287 = vmatprep.subr.mxu0 0.0
        %1288 = vmatpush1.xpose.msra.mxu0 %v1255
        %1289 = vmatprep.subr.mxu0 0.0
        %1290 = vmatpush1.xpose.msra.mxu0 %v1252
        %1291 = vmatprep.subr.mxu0 0.0
        %1292 = vmatpush1.xpose.msra.mxu0 %v1249
        %1293 = vmatprep.subr.mxu0 0.0
        %1294 = vmatpush1.xpose.msra.mxu0 %v1246
        %1295 = vmatprep.subr.mxu0 0.0
        %1296 = vmatpush1.xpose.msra.mxu0 %v1243
        %1297 = vmatprep.subr.mxu0 0.0
        %1298 = vmatpush1.xpose.msra.mxu0 %v1240
        %1299 = vmatprep.subr.mxu0 0.0
        %1300 = vmatpush1.xpose.msra.mxu0 %v1237
        %1301 = vmatprep.subr.mxu0 0.0
        %1302 = vmatpush1.xpose.msra.mxu0 %v1234
        %1303 = vmatprep.subr.mxu0 0.0
        %1304 = vmatpush1.xpose.msra.mxu0 %v1231
        %1305 = vmatprep.subr.mxu0 0.0
        %1306 = vmatpush1.xpose.msra.mxu0 %v1228
        %1307 = vmatprep.subr.mxu0 0.0
        %1308 = vmatpush2.xpose.msra.mxu0 0.0
        %1309 = vmatprep.subr.mxu0 0.0
        %1310 = vmatpush2.xpose.msra.mxu0 0.0
        %1311 = vmatprep.subr.mxu0 0.0
        %1312 = vmatpush2.xpose.msra.mxu0 0.0
        %1313 = vmatprep.subr.mxu0 0.0
        %1314 = vmatpush2.xpose.msra.mxu0 0.0
        %1315 = vmatprep.subr.mxu0 0.0
        %1316 = vmatpush2.xpose.msra.mxu0 0.0
        %1317 = vmatprep.subr.mxu0 0.0
        %1318 = vmatpush2.xpose.msra.mxu0 0.0
        %1319 = vmatprep.subr.mxu0 0.0
        %1320 = vmatpush2.xpose.msra.mxu0 0.0
        %1321 = vmatprep.subr.mxu0 0.0
        %1322 = vmatpush2.xpose.msra.mxu0 0.0
        %1323 = vmatprep.subr.mxu0 0.0
        %1324 = vmatpush2.xpose.msra.mxu0 0.0
        %1325 = vmatprep.subr.mxu0 0.0
        %1326 = vmatpush2.xpose.msra.mxu0 0.0
        %1327 = vmatprep.subr.mxu0 0.0
        %1328 = vmatpush2.xpose.msra.mxu0 0.0
        %1329 = vmatprep.subr.mxu0 0.0
        %1330 = vmatpush2.xpose.msra.mxu0 0.0
        %1331 = vmatprep.subr.mxu0 0.0
        %1332 = vmatpush2.xpose.msra.mxu0 0.0
        %1333 = vmatprep.subr.mxu0 0.0
        %1334 = vmatpush2.xpose.msra.mxu0 0.0
        %1335 = vmatprep.subr.mxu0 0.0
        %1336 = vmatpush2.xpose.msra.mxu0 0.0
        %1337 = vmatprep.subr.mxu0 0.0
        %1338 = vmatpush2.xpose.msra.mxu0 0.0
        %1339 = vmatprep.mubr.f32.mxu0 0.0
        %1340 = vmatmul.mubr.f32.gmra.mxu0 %v1180
        %v1341 = vpop.f32.mrf.mxu0
        %v1342 = vadd.f32 %v921, %v1341
        %v1343 = vpop.f32.mrf.mxu0
        %1344 = vmatprep.mubr.f32.mxu0 0.0
        %1345 = vmatmul.mubr.f32.gmra.mxu0 %v1183
        %v1346 = vpop.f32.mrf.mxu0
        %v1347 = vadd.f32 %v922, %v1346
        %v1348 = vpop.f32.mrf.mxu0
        %1349 = vmatprep.mubr.f32.mxu0 0.0
        %1350 = vmatmul.mubr.f32.gmra.mxu0 %v1186
        %v1351 = vpop.f32.mrf.mxu0
        %v1352 = vadd.f32 %v923, %v1351
        %v1353 = vpop.f32.mrf.mxu0
        %1354 = vmatprep.mubr.f32.mxu0 0.0
        %1355 = vmatmul.mubr.f32.gmra.mxu0 %v1189
        %v1356 = vpop.f32.mrf.mxu0
        %v1357 = vadd.f32 %v924, %v1356
        %v1358 = vpop.f32.mrf.mxu0
        %1359 = vmatprep.mubr.f32.mxu0 0.0
        %1360 = vmatmul.mubr.f32.gmra.mxu0 %v1192
        %v1361 = vpop.f32.mrf.mxu0
        %v1362 = vadd.f32 %v925, %v1361
        %v1363 = vpop.f32.mrf.mxu0
        %1364 = vmatprep.mubr.f32.mxu0 0.0
        %1365 = vmatmul.mubr.f32.gmra.mxu0 %v1195
        %v1366 = vpop.f32.mrf.mxu0
        %v1367 = vadd.f32 %v926, %v1366
        %v1368 = vpop.f32.mrf.mxu0
        %1369 = vmatprep.mubr.f32.mxu0 0.0
        %1370 = vmatmul.mubr.f32.gmra.mxu0 %v1198
        %v1371 = vpop.f32.mrf.mxu0
        %v1372 = vadd.f32 %v927, %v1371
        %v1373 = vpop.f32.mrf.mxu0
        %1374 = vmatprep.mubr.f32.mxu0 0.0
        %1375 = vmatmul.mubr.f32.gmra.mxu0 %v1201
        %v1376 = vpop.f32.mrf.mxu0
        %v1377 = vadd.f32 %v928, %v1376
        %v1378 = vpop.f32.mrf.mxu0
        %1379 = vmatprep.mubr.f32.mxu0 0.0
        %1380 = vmatmul.mubr.f32.gmra.mxu0 %v1204
        %v1381 = vpop.f32.mrf.mxu0
        %v1382 = vadd.f32 %v929, %v1381
        %v1383 = vpop.f32.mrf.mxu0
        %1384 = vmatprep.mubr.f32.mxu0 0.0
        %1385 = vmatmul.mubr.f32.gmra.mxu0 %v1207
        %v1386 = vpop.f32.mrf.mxu0
        %v1387 = vadd.f32 %v930, %v1386
        %v1388 = vpop.f32.mrf.mxu0
        %1389 = vmatprep.mubr.f32.mxu0 0.0
        %1390 = vmatmul.mubr.f32.gmra.mxu0 %v1210
        %v1391 = vpop.f32.mrf.mxu0
        %v1392 = vadd.f32 %v931, %v1391
        %v1393 = vpop.f32.mrf.mxu0
        %1394 = vmatprep.mubr.f32.mxu0 0.0
        %1395 = vmatmul.mubr.f32.gmra.mxu0 %v1213
        %v1396 = vpop.f32.mrf.mxu0
        %v1397 = vadd.f32 %v932, %v1396
        %v1398 = vpop.f32.mrf.mxu0
        %1399 = vmatprep.mubr.f32.mxu0 0.0
        %1400 = vmatmul.mubr.f32.gmra.mxu0 %v1216
        %v1401 = vpop.f32.mrf.mxu0
        %v1402 = vadd.f32 %v933, %v1401
        %v1403 = vpop.f32.mrf.mxu0
        %1404 = vmatprep.mubr.f32.mxu0 0.0
        %1405 = vmatmul.mubr.f32.gmra.mxu0 %v1219
        %v1406 = vpop.f32.mrf.mxu0
        %v1407 = vadd.f32 %v934, %v1406
        %v1408 = vpop.f32.mrf.mxu0
        %1409 = vmatprep.mubr.f32.mxu0 0.0
        %1410 = vmatmul.mubr.f32.gmra.mxu0 %v1222
        %v1411 = vpop.f32.mrf.mxu0
        %v1412 = vadd.f32 %v935, %v1411
        %v1413 = vpop.f32.mrf.mxu0
        %1414 = vmatprep.mubr.f32.mxu0 0.0
        %1415 = vmatmul.mubr.f32.gmra.mxu0 %v1225
        %v1416 = vpop.f32.mrf.mxu0
        %v1417 = vadd.f32 %v936, %v1416
        %v1418 = vpop.f32.mrf.mxu0
        %1419 = vdwg.mxu0
        %1420 = vmax.xlane.f32.xlu0 %v1101
        %v1421 = vpop.xlane.xlu0 %1420
        %1422 = vmax.xlane.f32.xlu0 %v1106
        %v1423 = vpop.xlane.xlu0 %1422
        %1424 = vmax.xlane.f32.xlu0 %v1111
        %v1425 = vpop.xlane.xlu0 %1424
        %1426 = vmax.xlane.f32.xlu0 %v1116
        %v1427 = vpop.xlane.xlu0 %1426
        %1428 = vmax.xlane.f32.xlu0 %v1121
        %v1429 = vpop.xlane.xlu0 %1428
        %1430 = vmax.xlane.f32.xlu0 %v1126
        %v1431 = vpop.xlane.xlu0 %1430
        %1432 = vmax.xlane.f32.xlu0 %v1131
        %v1433 = vpop.xlane.xlu0 %1432
        %1434 = vmax.xlane.f32.xlu0 %v1136
        %v1435 = vpop.xlane.xlu0 %1434
        %1436 = vmax.xlane.f32.xlu0 %v1141
        %v1437 = vpop.xlane.xlu0 %1436
        %1438 = vmax.xlane.f32.xlu0 %v1146
        %v1439 = vpop.xlane.xlu0 %1438
        %1440 = vmax.xlane.f32.xlu0 %v1151
        %v1441 = vpop.xlane.xlu0 %1440
        %1442 = vmax.xlane.f32.xlu0 %v1156
        %v1443 = vpop.xlane.xlu0 %1442
        %1444 = vmax.xlane.f32.xlu0 %v1161
        %v1445 = vpop.xlane.xlu0 %1444
        %1446 = vmax.xlane.f32.xlu0 %v1166
        %v1447 = vpop.xlane.xlu0 %1446
        %1448 = vmax.xlane.f32.xlu0 %v1171
        %v1449 = vpop.xlane.xlu0 %1448
        %1450 = vmax.xlane.f32.xlu0 %v1176
        %v1451 = vpop.xlane.xlu0 %1450
        %1452 = vmax.xlane.f32.xlu0 %v1342
        %v1453 = vpop.xlane.xlu0 %1452
        %1454 = vmax.xlane.f32.xlu0 %v1347
        %v1455 = vpop.xlane.xlu0 %1454
        %1456 = vmax.xlane.f32.xlu0 %v1352
        %v1457 = vpop.xlane.xlu0 %1456
        %1458 = vmax.xlane.f32.xlu0 %v1357
        %v1459 = vpop.xlane.xlu0 %1458
        %1460 = vmax.xlane.f32.xlu0 %v1362
        %v1461 = vpop.xlane.xlu0 %1460
        %1462 = vmax.xlane.f32.xlu0 %v1367
        %v1463 = vpop.xlane.xlu0 %1462
        %1464 = vmax.xlane.f32.xlu0 %v1372
        %v1465 = vpop.xlane.xlu0 %1464
        %1466 = vmax.xlane.f32.xlu0 %v1377
        %v1467 = vpop.xlane.xlu0 %1466
        %1468 = vmax.xlane.f32.xlu0 %v1382
        %v1469 = vpop.xlane.xlu0 %1468
        %1470 = vmax.xlane.f32.xlu0 %v1387
        %v1471 = vpop.xlane.xlu0 %1470
        %1472 = vmax.xlane.f32.xlu0 %v1392
        %v1473 = vpop.xlane.xlu0 %1472
        %1474 = vmax.xlane.f32.xlu0 %v1397
        %v1475 = vpop.xlane.xlu0 %1474
        %1476 = vmax.xlane.f32.xlu0 %v1402
        %v1477 = vpop.xlane.xlu0 %1476
        %1478 = vmax.xlane.f32.xlu0 %v1407
        %v1479 = vpop.xlane.xlu0 %1478
        %1480 = vmax.xlane.f32.xlu0 %v1412
        %v1481 = vpop.xlane.xlu0 %1480
        %1482 = vmax.xlane.f32.xlu0 %v1417
        %v1483 = vpop.xlane.xlu0 %1482
        %v1484 = vsub.f32 %v1101, %v1421
        %v1485 = vsub.f32 %v1106, %v1423
        %v1486 = vsub.f32 %v1111, %v1425
        %v1487 = vsub.f32 %v1116, %v1427
        %v1488 = vsub.f32 %v1121, %v1429
        %v1489 = vsub.f32 %v1126, %v1431
        %v1490 = vsub.f32 %v1131, %v1433
        %v1491 = vsub.f32 %v1136, %v1435
        %v1492 = vsub.f32 %v1141, %v1437
        %v1493 = vsub.f32 %v1146, %v1439
        %v1494 = vsub.f32 %v1151, %v1441
        %v1495 = vsub.f32 %v1156, %v1443
        %v1496 = vsub.f32 %v1161, %v1445
        %v1497 = vsub.f32 %v1166, %v1447
        %v1498 = vsub.f32 %v1171, %v1449
        %v1499 = vsub.f32 %v1176, %v1451
        %v1500 = vsub.f32 %v1342, %v1453
        %v1501 = vsub.f32 %v1347, %v1455
        %v1502 = vsub.f32 %v1352, %v1457
        %v1503 = vsub.f32 %v1357, %v1459
        %v1504 = vsub.f32 %v1362, %v1461
        %v1505 = vsub.f32 %v1367, %v1463
        %v1506 = vsub.f32 %v1372, %v1465
        %v1507 = vsub.f32 %v1377, %v1467
        %v1508 = vsub.f32 %v1382, %v1469
        %v1509 = vsub.f32 %v1387, %v1471
        %v1510 = vsub.f32 %v1392, %v1473
        %v1511 = vsub.f32 %v1397, %v1475
        %v1512 = vsub.f32 %v1402, %v1477
        %v1513 = vsub.f32 %v1407, %v1479
        %v1514 = vsub.f32 %v1412, %v1481
        %v1515 = vsub.f32 %v1417, %v1483
        %v1516 = vmul.f32 %v1484, 1.442695
        %v1517 = vpow.pop %v1516
        %v1518 = vmul.f32 %v1485, 1.442695
        %v1519 = vpow.pop %v1518
        %v1520 = vmul.f32 %v1486, 1.442695
        %v1521 = vpow.pop %v1520
        %v1522 = vmul.f32 %v1487, 1.442695
        %v1523 = vpow.pop %v1522
        %v1524 = vmul.f32 %v1488, 1.442695
        %v1525 = vpow.pop %v1524
        %v1526 = vmul.f32 %v1489, 1.442695
        %v1527 = vpow.pop %v1526
        %v1528 = vmul.f32 %v1490, 1.442695
        %v1529 = vpow.pop %v1528
        %v1530 = vmul.f32 %v1491, 1.442695
        %v1531 = vpow.pop %v1530
        %v1532 = vmul.f32 %v1492, 1.442695
        %v1533 = vpow.pop %v1532
        %v1534 = vmul.f32 %v1493, 1.442695
        %v1535 = vpow.pop %v1534
        %v1536 = vmul.f32 %v1494, 1.442695
        %v1537 = vpow.pop %v1536
        %v1538 = vmul.f32 %v1495, 1.442695
        %v1539 = vpow.pop %v1538
        %v1540 = vmul.f32 %v1496, 1.442695
        %v1541 = vpow.pop %v1540
        %v1542 = vmul.f32 %v1497, 1.442695
        %v1543 = vpow.pop %v1542
        %v1544 = vmul.f32 %v1498, 1.442695
        %v1545 = vpow.pop %v1544
        %v1546 = vmul.f32 %v1499, 1.442695
        %v1547 = vpow.pop %v1546
        %v1548 = vmul.f32 %v1500, 1.442695
        %v1549 = vpow.pop %v1548
        %v1550 = vmul.f32 %v1501, 1.442695
        %v1551 = vpow.pop %v1550
        %v1552 = vmul.f32 %v1502, 1.442695
        %v1553 = vpow.pop %v1552
        %v1554 = vmul.f32 %v1503, 1.442695
        %v1555 = vpow.pop %v1554
        %v1556 = vmul.f32 %v1504, 1.442695
        %v1557 = vpow.pop %v1556
        %v1558 = vmul.f32 %v1505, 1.442695
        %v1559 = vpow.pop %v1558
        %v1560 = vmul.f32 %v1506, 1.442695
        %v1561 = vpow.pop %v1560
        %v1562 = vmul.f32 %v1507, 1.442695
        %v1563 = vpow.pop %v1562
        %v1564 = vmul.f32 %v1508, 1.442695
        %v1565 = vpow.pop %v1564
        %v1566 = vmul.f32 %v1509, 1.442695
        %v1567 = vpow.pop %v1566
        %v1568 = vmul.f32 %v1510, 1.442695
        %v1569 = vpow.pop %v1568
        %v1570 = vmul.f32 %v1511, 1.442695
        %v1571 = vpow.pop %v1570
        %v1572 = vmul.f32 %v1512, 1.442695
        %v1573 = vpow.pop %v1572
        %v1574 = vmul.f32 %v1513, 1.442695
        %v1575 = vpow.pop %v1574
        %v1576 = vmul.f32 %v1514, 1.442695
        %v1577 = vpow.pop %v1576
        %v1578 = vmul.f32 %v1515, 1.442695
        %v1579 = vpow.pop %v1578
        %1580 = vadd.xlane.f32.xlu0 %v1517
        %v1581 = vpop.xlane.xlu0 %1580
        %1582 = vadd.xlane.f32.xlu0 %v1519
        %v1583 = vpop.xlane.xlu0 %1582
        %1584 = vadd.xlane.f32.xlu0 %v1521
        %v1585 = vpop.xlane.xlu0 %1584
        %1586 = vadd.xlane.f32.xlu0 %v1523
        %v1587 = vpop.xlane.xlu0 %1586
        %1588 = vadd.xlane.f32.xlu0 %v1525
        %v1589 = vpop.xlane.xlu0 %1588
        %1590 = vadd.xlane.f32.xlu0 %v1527
        %v1591 = vpop.xlane.xlu0 %1590
        %1592 = vadd.xlane.f32.xlu0 %v1529
        %v1593 = vpop.xlane.xlu0 %1592
        %1594 = vadd.xlane.f32.xlu0 %v1531
        %v1595 = vpop.xlane.xlu0 %1594
        %1596 = vadd.xlane.f32.xlu0 %v1533
        %v1597 = vpop.xlane.xlu0 %1596
        %1598 = vadd.xlane.f32.xlu0 %v1535
        %v1599 = vpop.xlane.xlu0 %1598
        %1600 = vadd.xlane.f32.xlu0 %v1537
        %v1601 = vpop.xlane.xlu0 %1600
        %1602 = vadd.xlane.f32.xlu0 %v1539
        %v1603 = vpop.xlane.xlu0 %1602
        %1604 = vadd.xlane.f32.xlu0 %v1541
        %v1605 = vpop.xlane.xlu0 %1604
        %1606 = vadd.xlane.f32.xlu0 %v1543
        %v1607 = vpop.xlane.xlu0 %1606
        %1608 = vadd.xlane.f32.xlu0 %v1545
        %v1609 = vpop.xlane.xlu0 %1608
        %1610 = vadd.xlane.f32.xlu0 %v1547
        %v1611 = vpop.xlane.xlu0 %1610
        %1612 = vadd.xlane.f32.xlu0 %v1549
        %v1613 = vpop.xlane.xlu0 %1612
        %1614 = vadd.xlane.f32.xlu0 %v1551
        %v1615 = vpop.xlane.xlu0 %1614
        %1616 = vadd.xlane.f32.xlu0 %v1553
        %v1617 = vpop.xlane.xlu0 %1616
        %1618 = vadd.xlane.f32.xlu0 %v1555
        %v1619 = vpop.xlane.xlu0 %1618
        %1620 = vadd.xlane.f32.xlu0 %v1557
        %v1621 = vpop.xlane.xlu0 %1620
        %1622 = vadd.xlane.f32.xlu0 %v1559
        %v1623 = vpop.xlane.xlu0 %1622
        %1624 = vadd.xlane.f32.xlu0 %v1561
        %v1625 = vpop.xlane.xlu0 %1624
        %1626 = vadd.xlane.f32.xlu0 %v1563
        %v1627 = vpop.xlane.xlu0 %1626
        %1628 = vadd.xlane.f32.xlu0 %v1565
        %v1629 = vpop.xlane.xlu0 %1628
        %1630 = vadd.xlane.f32.xlu0 %v1567
        %v1631 = vpop.xlane.xlu0 %1630
        %1632 = vadd.xlane.f32.xlu0 %v1569
        %v1633 = vpop.xlane.xlu0 %1632
        %1634 = vadd.xlane.f32.xlu0 %v1571
        %v1635 = vpop.xlane.xlu0 %1634
        %1636 = vadd.xlane.f32.xlu0 %v1573
        %v1637 = vpop.xlane.xlu0 %1636
        %1638 = vadd.xlane.f32.xlu0 %v1575
        %v1639 = vpop.xlane.xlu0 %1638
        %1640 = vadd.xlane.f32.xlu0 %v1577
        %v1641 = vpop.xlane.xlu0 %1640
        %1642 = vadd.xlane.f32.xlu0 %v1579
        %v1643 = vpop.xlane.xlu0 %1642
        %v1644 = vrcp.pop %v1581
        %v1645 = vrcp.pop %v1583
        %v1646 = vrcp.pop %v1585
        %v1647 = vrcp.pop %v1587
        %v1648 = vrcp.pop %v1589
        %v1649 = vrcp.pop %v1591
        %v1650 = vrcp.pop %v1593
        %v1651 = vrcp.pop %v1595
        %v1652 = vrcp.pop %v1597
        %v1653 = vrcp.pop %v1599
        %v1654 = vrcp.pop %v1601
        %v1655 = vrcp.pop %v1603
        %v1656 = vrcp.pop %v1605
        %v1657 = vrcp.pop %v1607
        %v1658 = vrcp.pop %v1609
        %v1659 = vrcp.pop %v1611
        %v1660 = vrcp.pop %v1613
        %v1661 = vrcp.pop %v1615
        %v1662 = vrcp.pop %v1617
        %v1663 = vrcp.pop %v1619
        %v1664 = vrcp.pop %v1621
        %v1665 = vrcp.pop %v1623
        %v1666 = vrcp.pop %v1625
        %v1667 = vrcp.pop %v1627
        %v1668 = vrcp.pop %v1629
        %v1669 = vrcp.pop %v1631
        %v1670 = vrcp.pop %v1633
        %v1671 = vrcp.pop %v1635
        %v1672 = vrcp.pop %v1637
        %v1673 = vrcp.pop %v1639
        %v1674 = vrcp.pop %v1641
        %v1675 = vrcp.pop %v1643
        %1676 = vmatprep.subr.mxu0 0.0
        %1677 = vmatpush1.msra.mxu0 %v771
        %1678 = vmatprep.subr.mxu0 0.0
        %1679 = vmatpush1.msra.mxu0 %v766
        %1680 = vmatprep.subr.mxu0 0.0
        %1681 = vmatpush1.msra.mxu0 %v761
        %1682 = vmatprep.subr.mxu0 0.0
        %1683 = vmatpush1.msra.mxu0 %v756
        %1684 = vmatprep.subr.mxu0 0.0
        %1685 = vmatpush1.msra.mxu0 %v751
        %1686 = vmatprep.subr.mxu0 0.0
        %1687 = vmatpush1.msra.mxu0 %v746
        %1688 = vmatprep.subr.mxu0 0.0
        %1689 = vmatpush1.msra.mxu0 %v741
        %1690 = vmatprep.subr.mxu0 0.0
        %1691 = vmatpush1.msra.mxu0 %v736
        %1692 = vmatprep.subr.mxu0 0.0
        %1693 = vmatpush1.msra.mxu0 %v731
        %1694 = vmatprep.subr.mxu0 0.0
        %1695 = vmatpush1.msra.mxu0 %v726
        %1696 = vmatprep.subr.mxu0 0.0
        %1697 = vmatpush1.msra.mxu0 %v721
        %1698 = vmatprep.subr.mxu0 0.0
        %1699 = vmatpush1.msra.mxu0 %v716
        %1700 = vmatprep.subr.mxu0 0.0
        %1701 = vmatpush1.msra.mxu0 %v711
        %1702 = vmatprep.subr.mxu0 0.0
        %1703 = vmatpush1.msra.mxu0 %v706
        %1704 = vmatprep.subr.mxu0 0.0
        %1705 = vmatpush1.msra.mxu0 %v701
        %1706 = vmatprep.subr.mxu0 0.0
        %1707 = vmatpush1.msra.mxu0 %v696
        %1708 = vmatprep.subr.mxu0 0.0
        %1709 = vmatpush2.msra.mxu0 0.0
        %1710 = vmatprep.subr.mxu0 0.0
        %1711 = vmatpush2.msra.mxu0 0.0
        %1712 = vmatprep.subr.mxu0 0.0
        %1713 = vmatpush2.msra.mxu0 0.0
        %1714 = vmatprep.subr.mxu0 0.0
        %1715 = vmatpush2.msra.mxu0 0.0
        %1716 = vmatprep.subr.mxu0 0.0
        %1717 = vmatpush2.msra.mxu0 0.0
        %1718 = vmatprep.subr.mxu0 0.0
        %1719 = vmatpush2.msra.mxu0 0.0
        %1720 = vmatprep.subr.mxu0 0.0
        %1721 = vmatpush2.msra.mxu0 0.0
        %1722 = vmatprep.subr.mxu0 0.0
        %1723 = vmatpush2.msra.mxu0 0.0
        %1724 = vmatprep.subr.mxu0 0.0
        %1725 = vmatpush2.msra.mxu0 0.0
        %1726 = vmatprep.subr.mxu0 0.0
        %1727 = vmatpush2.msra.mxu0 0.0
        %1728 = vmatprep.subr.mxu0 0.0
        %1729 = vmatpush2.msra.mxu0 0.0
        %1730 = vmatprep.subr.mxu0 0.0
        %1731 = vmatpush2.msra.mxu0 0.0
        %1732 = vmatprep.subr.mxu0 0.0
        %1733 = vmatpush2.msra.mxu0 0.0
        %1734 = vmatprep.subr.mxu0 0.0
        %1735 = vmatpush2.msra.mxu0 0.0
        %1736 = vmatprep.subr.mxu0 0.0
        %1737 = vmatpush2.msra.mxu0 0.0
        %1738 = vmatprep.subr.mxu0 0.0
        %1739 = vmatpush2.msra.mxu0 0.0
        %1740 = vmatprep.mubr.f32.mxu0 0.0
        %1741 = vmatmul.mubr.f32.gmra.mxu0 %v1517
        %v1742 = vpop.f32.mrf.mxu0
        %v1743 = vadd.f32 0.0, %v1742
        %v1744 = vpop.f32.mrf.mxu0
        %1745 = vmatprep.mubr.f32.mxu0 0.0
        %1746 = vmatmul.mubr.f32.gmra.mxu0 %v1519
        %v1747 = vpop.f32.mrf.mxu0
        %v1748 = vadd.f32 0.0, %v1747
        %v1749 = vpop.f32.mrf.mxu0
        %1750 = vmatprep.mubr.f32.mxu0 0.0
        %1751 = vmatmul.mubr.f32.gmra.mxu0 %v1521
        %v1752 = vpop.f32.mrf.mxu0
        %v1753 = vadd.f32 0.0, %v1752
        %v1754 = vpop.f32.mrf.mxu0
        %1755 = vmatprep.mubr.f32.mxu0 0.0
        %1756 = vmatmul.mubr.f32.gmra.mxu0 %v1523
        %v1757 = vpop.f32.mrf.mxu0
        %v1758 = vadd.f32 0.0, %v1757
        %v1759 = vpop.f32.mrf.mxu0
        %1760 = vmatprep.mubr.f32.mxu0 0.0
        %1761 = vmatmul.mubr.f32.gmra.mxu0 %v1525
        %v1762 = vpop.f32.mrf.mxu0
        %v1763 = vadd.f32 0.0, %v1762
        %v1764 = vpop.f32.mrf.mxu0
        %1765 = vmatprep.mubr.f32.mxu0 0.0
        %1766 = vmatmul.mubr.f32.gmra.mxu0 %v1527
        %v1767 = vpop.f32.mrf.mxu0
        %v1768 = vadd.f32 0.0, %v1767
        %v1769 = vpop.f32.mrf.mxu0
        %1770 = vmatprep.mubr.f32.mxu0 0.0
        %1771 = vmatmul.mubr.f32.gmra.mxu0 %v1529
        %v1772 = vpop.f32.mrf.mxu0
        %v1773 = vadd.f32 0.0, %v1772
        %v1774 = vpop.f32.mrf.mxu0
        %1775 = vmatprep.mubr.f32.mxu0 0.0
        %1776 = vmatmul.mubr.f32.gmra.mxu0 %v1531
        %v1777 = vpop.f32.mrf.mxu0
        %v1778 = vadd.f32 0.0, %v1777
        %v1779 = vpop.f32.mrf.mxu0
        %1780 = vmatprep.mubr.f32.mxu0 0.0
        %1781 = vmatmul.mubr.f32.gmra.mxu0 %v1533
        %v1782 = vpop.f32.mrf.mxu0
        %v1783 = vadd.f32 0.0, %v1782
        %v1784 = vpop.f32.mrf.mxu0
        %1785 = vmatprep.mubr.f32.mxu0 0.0
        %1786 = vmatmul.mubr.f32.gmra.mxu0 %v1535
        %v1787 = vpop.f32.mrf.mxu0
        %v1788 = vadd.f32 0.0, %v1787
        %v1789 = vpop.f32.mrf.mxu0
        %1790 = vmatprep.mubr.f32.mxu0 0.0
        %1791 = vmatmul.mubr.f32.gmra.mxu0 %v1537
        %v1792 = vpop.f32.mrf.mxu0
        %v1793 = vadd.f32 0.0, %v1792
        %v1794 = vpop.f32.mrf.mxu0
        %1795 = vmatprep.mubr.f32.mxu0 0.0
        %1796 = vmatmul.mubr.f32.gmra.mxu0 %v1539
        %v1797 = vpop.f32.mrf.mxu0
        %v1798 = vadd.f32 0.0, %v1797
        %v1799 = vpop.f32.mrf.mxu0
        %1800 = vmatprep.mubr.f32.mxu0 0.0
        %1801 = vmatmul.mubr.f32.gmra.mxu0 %v1541
        %v1802 = vpop.f32.mrf.mxu0
        %v1803 = vadd.f32 0.0, %v1802
        %v1804 = vpop.f32.mrf.mxu0
        %1805 = vmatprep.mubr.f32.mxu0 0.0
        %1806 = vmatmul.mubr.f32.gmra.mxu0 %v1543
        %v1807 = vpop.f32.mrf.mxu0
        %v1808 = vadd.f32 0.0, %v1807
        %v1809 = vpop.f32.mrf.mxu0
        %1810 = vmatprep.mubr.f32.mxu0 0.0
        %1811 = vmatmul.mubr.f32.gmra.mxu0 %v1545
        %v1812 = vpop.f32.mrf.mxu0
        %v1813 = vadd.f32 0.0, %v1812
        %v1814 = vpop.f32.mrf.mxu0
        %1815 = vmatprep.mubr.f32.mxu0 0.0
        %1816 = vmatmul.mubr.f32.gmra.mxu0 %v1547
        %v1817 = vpop.f32.mrf.mxu0
        %v1818 = vadd.f32 0.0, %v1817
        %v1819 = vpop.f32.mrf.mxu0
        %1820 = vdwg.mxu0
        %1821 = vmatprep.subr.mxu0 0.0
        %1822 = vmatpush1.msra.mxu0 %v851
        %1823 = vmatprep.subr.mxu0 0.0
        %1824 = vmatpush1.msra.mxu0 %v846
        %1825 = vmatprep.subr.mxu0 0.0
        %1826 = vmatpush1.msra.mxu0 %v841
        %1827 = vmatprep.subr.mxu0 0.0
        %1828 = vmatpush1.msra.mxu0 %v836
        %1829 = vmatprep.subr.mxu0 0.0
        %1830 = vmatpush1.msra.mxu0 %v831
        %1831 = vmatprep.subr.mxu0 0.0
        %1832 = vmatpush1.msra.mxu0 %v826
        %1833 = vmatprep.subr.mxu0 0.0
        %1834 = vmatpush1.msra.mxu0 %v821
        %1835 = vmatprep.subr.mxu0 0.0
        %1836 = vmatpush1.msra.mxu0 %v816
        %1837 = vmatprep.subr.mxu0 0.0
        %1838 = vmatpush1.msra.mxu0 %v811
        %1839 = vmatprep.subr.mxu0 0.0
        %1840 = vmatpush1.msra.mxu0 %v806
        %1841 = vmatprep.subr.mxu0 0.0
        %1842 = vmatpush1.msra.mxu0 %v801
        %1843 = vmatprep.subr.mxu0 0.0
        %1844 = vmatpush1.msra.mxu0 %v796
        %1845 = vmatprep.subr.mxu0 0.0
        %1846 = vmatpush1.msra.mxu0 %v791
        %1847 = vmatprep.subr.mxu0 0.0
        %1848 = vmatpush1.msra.mxu0 %v786
        %1849 = vmatprep.subr.mxu0 0.0
        %1850 = vmatpush1.msra.mxu0 %v781
        %1851 = vmatprep.subr.mxu0 0.0
        %1852 = vmatpush1.msra.mxu0 %v776
        %1853 = vmatprep.subr.mxu0 0.0
        %1854 = vmatpush2.msra.mxu0 0.0
        %1855 = vmatprep.subr.mxu0 0.0
        %1856 = vmatpush2.msra.mxu0 0.0
        %1857 = vmatprep.subr.mxu0 0.0
        %1858 = vmatpush2.msra.mxu0 0.0
        %1859 = vmatprep.subr.mxu0 0.0
        %1860 = vmatpush2.msra.mxu0 0.0
        %1861 = vmatprep.subr.mxu0 0.0
        %1862 = vmatpush2.msra.mxu0 0.0
        %1863 = vmatprep.subr.mxu0 0.0
        %1864 = vmatpush2.msra.mxu0 0.0
        %1865 = vmatprep.subr.mxu0 0.0
        %1866 = vmatpush2.msra.mxu0 0.0
        %1867 = vmatprep.subr.mxu0 0.0
        %1868 = vmatpush2.msra.mxu0 0.0
        %1869 = vmatprep.subr.mxu0 0.0
        %1870 = vmatpush2.msra.mxu0 0.0
        %1871 = vmatprep.subr.mxu0 0.0
        %1872 = vmatpush2.msra.mxu0 0.0
        %1873 = vmatprep.subr.mxu0 0.0
        %1874 = vmatpush2.msra.mxu0 0.0
        %1875 = vmatprep.subr.mxu0 0.0
        %1876 = vmatpush2.msra.mxu0 0.0
        %1877 = vmatprep.subr.mxu0 0.0
        %1878 = vmatpush2.msra.mxu0 0.0
        %1879 = vmatprep.subr.mxu0 0.0
        %1880 = vmatpush2.msra.mxu0 0.0
        %1881 = vmatprep.subr.mxu0 0.0
        %1882 = vmatpush2.msra.mxu0 0.0
        %1883 = vmatprep.subr.mxu0 0.0
        %1884 = vmatpush2.msra.mxu0 0.0
        %1885 = vmatprep.mubr.f32.mxu0 0.0
        %1886 = vmatmul.mubr.f32.gmra.mxu0 %v1549
        %v1887 = vpop.f32.mrf.mxu0
        %v1888 = vadd.f32 0.0, %v1887
        %v1889 = vpop.f32.mrf.mxu0
        %1890 = vmatprep.mubr.f32.mxu0 0.0
        %1891 = vmatmul.mubr.f32.gmra.mxu0 %v1551
        %v1892 = vpop.f32.mrf.mxu0
        %v1893 = vadd.f32 0.0, %v1892
        %v1894 = vpop.f32.mrf.mxu0
        %1895 = vmatprep.mubr.f32.mxu0 0.0
        %1896 = vmatmul.mubr.f32.gmra.mxu0 %v1553
        %v1897 = vpop.f32.mrf.mxu0
        %v1898 = vadd.f32 0.0, %v1897
        %v1899 = vpop.f32.mrf.mxu0
        %1900 = vmatprep.mubr.f32.mxu0 0.0
        %1901 = vmatmul.mubr.f32.gmra.mxu0 %v1555
        %v1902 = vpop.f32.mrf.mxu0
        %v1903 = vadd.f32 0.0, %v1902
        %v1904 = vpop.f32.mrf.mxu0
        %1905 = vmatprep.mubr.f32.mxu0 0.0
        %1906 = vmatmul.mubr.f32.gmra.mxu0 %v1557
        %v1907 = vpop.f32.mrf.mxu0
        %v1908 = vadd.f32 0.0, %v1907
        %v1909 = vpop.f32.mrf.mxu0
        %1910 = vmatprep.mubr.f32.mxu0 0.0
        %1911 = vmatmul.mubr.f32.gmra.mxu0 %v1559
        %v1912 = vpop.f32.mrf.mxu0
        %v1913 = vadd.f32 0.0, %v1912
        %v1914 = vpop.f32.mrf.mxu0
        %1915 = vmatprep.mubr.f32.mxu0 0.0
        %1916 = vmatmul.mubr.f32.gmra.mxu0 %v1561
        %v1917 = vpop.f32.mrf.mxu0
        %v1918 = vadd.f32 0.0, %v1917
        %v1919 = vpop.f32.mrf.mxu0
        %1920 = vmatprep.mubr.f32.mxu0 0.0
        %1921 = vmatmul.mubr.f32.gmra.mxu0 %v1563
        %v1922 = vpop.f32.mrf.mxu0
        %v1923 = vadd.f32 0.0, %v1922
        %v1924 = vpop.f32.mrf.mxu0
        %1925 = vmatprep.mubr.f32.mxu0 0.0
        %1926 = vmatmul.mubr.f32.gmra.mxu0 %v1565
        %v1927 = vpop.f32.mrf.mxu0
        %v1928 = vadd.f32 0.0, %v1927
        %v1929 = vpop.f32.mrf.mxu0
        %1930 = vmatprep.mubr.f32.mxu0 0.0
        %1931 = vmatmul.mubr.f32.gmra.mxu0 %v1567
        %v1932 = vpop.f32.mrf.mxu0
        %v1933 = vadd.f32 0.0, %v1932
        %v1934 = vpop.f32.mrf.mxu0
        %1935 = vmatprep.mubr.f32.mxu0 0.0
        %1936 = vmatmul.mubr.f32.gmra.mxu0 %v1569
        %v1937 = vpop.f32.mrf.mxu0
        %v1938 = vadd.f32 0.0, %v1937
        %v1939 = vpop.f32.mrf.mxu0
        %1940 = vmatprep.mubr.f32.mxu0 0.0
        %1941 = vmatmul.mubr.f32.gmra.mxu0 %v1571
        %v1942 = vpop.f32.mrf.mxu0
        %v1943 = vadd.f32 0.0, %v1942
        %v1944 = vpop.f32.mrf.mxu0
        %1945 = vmatprep.mubr.f32.mxu0 0.0
        %1946 = vmatmul.mubr.f32.gmra.mxu0 %v1573
        %v1947 = vpop.f32.mrf.mxu0
        %v1948 = vadd.f32 0.0, %v1947
        %v1949 = vpop.f32.mrf.mxu0
        %1950 = vmatprep.mubr.f32.mxu0 0.0
        %1951 = vmatmul.mubr.f32.gmra.mxu0 %v1575
        %v1952 = vpop.f32.mrf.mxu0
        %v1953 = vadd.f32 0.0, %v1952
        %v1954 = vpop.f32.mrf.mxu0
        %1955 = vmatprep.mubr.f32.mxu0 0.0
        %1956 = vmatmul.mubr.f32.gmra.mxu0 %v1577
        %v1957 = vpop.f32.mrf.mxu0
        %v1958 = vadd.f32 0.0, %v1957
        %v1959 = vpop.f32.mrf.mxu0
        %1960 = vmatprep.mubr.f32.mxu0 0.0
        %1961 = vmatmul.mubr.f32.gmra.mxu0 %v1579
        %v1962 = vpop.f32.mrf.mxu0
        %v1963 = vadd.f32 0.0, %v1962
        %v1964 = vpop.f32.mrf.mxu0
        %1965 = vdwg.mxu0
        %v1966 = vmul.f32 %v1743, %v1644
        %v1967 = vmul.f32 %v1748, %v1645
        %v1968 = vmul.f32 %v1753, %v1646
        %v1969 = vmul.f32 %v1758, %v1647
        %v1970 = vmul.f32 %v1763, %v1648
        %v1971 = vmul.f32 %v1768, %v1649
        %v1972 = vmul.f32 %v1773, %v1650
        %v1973 = vmul.f32 %v1778, %v1651
        %v1974 = vmul.f32 %v1783, %v1652
        %v1975 = vmul.f32 %v1788, %v1653
        %v1976 = vmul.f32 %v1793, %v1654
        %v1977 = vmul.f32 %v1798, %v1655
        %v1978 = vmul.f32 %v1803, %v1656
        %v1979 = vmul.f32 %v1808, %v1657
        %v1980 = vmul.f32 %v1813, %v1658
        %v1981 = vmul.f32 %v1818, %v1659
        %v1982 = vmul.f32 %v1888, %v1660
        %v1983 = vmul.f32 %v1893, %v1661
        %v1984 = vmul.f32 %v1898, %v1662
        %v1985 = vmul.f32 %v1903, %v1663
        %v1986 = vmul.f32 %v1908, %v1664
        %v1987 = vmul.f32 %v1913, %v1665
        %v1988 = vmul.f32 %v1918, %v1666
        %v1989 = vmul.f32 %v1923, %v1667
        %v1990 = vmul.f32 %v1928, %v1668
        %v1991 = vmul.f32 %v1933, %v1669
        %v1992 = vmul.f32 %v1938, %v1670
        %v1993 = vmul.f32 %v1943, %v1671
        %v1994 = vmul.f32 %v1948, %v1672
        %v1995 = vmul.f32 %v1953, %v1673
        %v1996 = vmul.f32 %v1958, %v1674
        %v1997 = vmul.f32 %v1963, %v1675
        %1998 = vst.msk [vmem:[#allocation2] sm:$0xff] %vm937, %v1966
        %1999 = vst.msk [vmem:[#allocation2 + $0x8] sm:$0xff] %vm937, %v1967
        %2000 = vst.msk [vmem:[#allocation2 + $0x10] sm:$0xff] %vm937, %v1968
        %2001 = vst.msk [vmem:[#allocation2 + $0x18] sm:$0xff] %vm937, %v1969
        %2002 = vst.msk [vmem:[#allocation2 + $0x20] sm:$0xff] %vm937, %v1970
        %2003 = vst.msk [vmem:[#allocation2 + $0x28] sm:$0xff] %vm937, %v1971
        %2004 = vst.msk [vmem:[#allocation2 + $0x30] sm:$0xff] %vm937, %v1972
        %2005 = vst.msk [vmem:[#allocation2 + $0x38] sm:$0xff] %vm937, %v1973
        %2006 = vst.msk [vmem:[#allocation2 + $0x40] sm:$0xff] %vm937, %v1974
        %2007 = vst.msk [vmem:[#allocation2 + $0x48] sm:$0xff] %vm937, %v1975
        %2008 = vst.msk [vmem:[#allocation2 + $0x50] sm:$0xff] %vm937, %v1976
        %2009 = vst.msk [vmem:[#allocation2 + $0x58] sm:$0xff] %vm937, %v1977
        %2010 = vst.msk [vmem:[#allocation2 + $0x60] sm:$0xff] %vm937, %v1978
        %2011 = vst.msk [vmem:[#allocation2 + $0x68] sm:$0xff] %vm937, %v1979
        %2012 = vst.msk [vmem:[#allocation2 + $0x70] sm:$0xff] %vm937, %v1980
        %2013 = vst.msk [vmem:[#allocation2 + $0x78] sm:$0xff] %vm937, %v1981
        %2014 = vst.msk [vmem:[#allocation2 + $0x80] sm:$0xff] %vm937, %v1982
        %2015 = vst.msk [vmem:[#allocation2 + $0x88] sm:$0xff] %vm937, %v1983
        %2016 = vst.msk [vmem:[#allocation2 + $0x90] sm:$0xff] %vm937, %v1984
        %2017 = vst.msk [vmem:[#allocation2 + $0x98] sm:$0xff] %vm937, %v1985
        %2018 = vst.msk [vmem:[#allocation2 + $0xa0] sm:$0xff] %vm937, %v1986
        %2019 = vst.msk [vmem:[#allocation2 + $0xa8] sm:$0xff] %vm937, %v1987
        %2020 = vst.msk [vmem:[#allocation2 + $0xb0] sm:$0xff] %vm937, %v1988
        %2021 = vst.msk [vmem:[#allocation2 + $0xb8] sm:$0xff] %vm937, %v1989
        %2022 = vst.msk [vmem:[#allocation2 + $0xc0] sm:$0xff] %vm937, %v1990
        %2023 = vst.msk [vmem:[#allocation2 + $0xc8] sm:$0xff] %vm937, %v1991
        %2024 = vst.msk [vmem:[#allocation2 + $0xd0] sm:$0xff] %vm937, %v1992
        %2025 = vst.msk [vmem:[#allocation2 + $0xd8] sm:$0xff] %vm937, %v1993
        %2026 = vst.msk [vmem:[#allocation2 + $0xe0] sm:$0xff] %vm937, %v1994
        %2027 = vst.msk [vmem:[#allocation2 + $0xe8] sm:$0xff] %vm937, %v1995
        %2028 = vst.msk [vmem:[#allocation2 + $0xf0] sm:$0xff] %vm937, %v1996
        %2029 = vst.msk [vmem:[#allocation2 + $0xf8] sm:$0xff] %vm937, %v1997
        %2030 = vrot.lane.b32.xlu0 %v854, 96
        %v2031 = vpop.permute.xlu0 %2030
        %2032 = vrot.lane.b32.xlu0 %v855, 96
        %v2033 = vpop.permute.xlu0 %2032
        %2034 = vrot.lane.b32.xlu0 %v856, 96
        %v2035 = vpop.permute.xlu0 %2034
        %2036 = vrot.lane.b32.xlu0 %v857, 96
        %v2037 = vpop.permute.xlu0 %2036
        %2038 = vrot.lane.b32.xlu0 %v858, 96
        %v2039 = vpop.permute.xlu0 %2038
        %2040 = vrot.lane.b32.xlu0 %v859, 96
        %v2041 = vpop.permute.xlu0 %2040
        %2042 = vrot.lane.b32.xlu0 %v860, 96
        %v2043 = vpop.permute.xlu0 %2042
        %2044 = vrot.lane.b32.xlu0 %v861, 96
        %v2045 = vpop.permute.xlu0 %2044
        %2046 = vrot.lane.b32.xlu0 %v862, 96
        %v2047 = vpop.permute.xlu0 %2046
        %2048 = vrot.lane.b32.xlu0 %v863, 96
        %v2049 = vpop.permute.xlu0 %2048
        %2050 = vrot.lane.b32.xlu0 %v864, 96
        %v2051 = vpop.permute.xlu0 %2050
        %2052 = vrot.lane.b32.xlu0 %v865, 96
        %v2053 = vpop.permute.xlu0 %2052
        %2054 = vrot.lane.b32.xlu0 %v866, 96
        %v2055 = vpop.permute.xlu0 %2054
        %2056 = vrot.lane.b32.xlu0 %v867, 96
        %v2057 = vpop.permute.xlu0 %2056
        %2058 = vrot.lane.b32.xlu0 %v868, 96
        %v2059 = vpop.permute.xlu0 %2058
        %2060 = vrot.lane.b32.xlu0 %v869, 96
        %v2061 = vpop.permute.xlu0 %2060
        %2062 = vrot.lane.b32.xlu0 %v441, 96
        %v2063 = vpop.permute.xlu0 %2062
        %2064 = vrot.lane.b32.xlu0 %v447, 96
        %v2065 = vpop.permute.xlu0 %2064
        %2066 = vrot.lane.b32.xlu0 %v453, 96
        %v2067 = vpop.permute.xlu0 %2066
        %2068 = vrot.lane.b32.xlu0 %v459, 96
        %v2069 = vpop.permute.xlu0 %2068
        %2070 = vrot.lane.b32.xlu0 %v465, 96
        %v2071 = vpop.permute.xlu0 %2070
        %2072 = vrot.lane.b32.xlu0 %v471, 96
        %v2073 = vpop.permute.xlu0 %2072
        %2074 = vrot.lane.b32.xlu0 %v477, 96
        %v2075 = vpop.permute.xlu0 %2074
        %2076 = vrot.lane.b32.xlu0 %v483, 96
        %v2077 = vpop.permute.xlu0 %2076
        %2078 = vrot.lane.b32.xlu0 %v489, 96
        %v2079 = vpop.permute.xlu0 %2078
        %2080 = vrot.lane.b32.xlu0 %v495, 96
        %v2081 = vpop.permute.xlu0 %2080
        %2082 = vrot.lane.b32.xlu0 %v501, 96
        %v2083 = vpop.permute.xlu0 %2082
        %2084 = vrot.lane.b32.xlu0 %v507, 96
        %v2085 = vpop.permute.xlu0 %2084
        %2086 = vrot.lane.b32.xlu0 %v513, 96
        %v2087 = vpop.permute.xlu0 %2086
        %2088 = vrot.lane.b32.xlu0 %v519, 96
        %v2089 = vpop.permute.xlu0 %2088
        %2090 = vrot.lane.b32.xlu0 %v525, 96
        %v2091 = vpop.permute.xlu0 %2090
        %2092 = vrot.lane.b32.xlu0 %v531, 96
        %v2093 = vpop.permute.xlu0 %2092
        %v2094 = vsel %vm937, %v2031, 0
        %v2096 = vsel %vm937, %v2033, 0
        %v2098 = vsel %vm937, %v2035, 0
        %v2100 = vsel %vm937, %v2037, 0
        %v2102 = vsel %vm937, %v2039, 0
        %v2104 = vsel %vm937, %v2041, 0
        %v2106 = vsel %vm937, %v2043, 0
        %v2108 = vsel %vm937, %v2045, 0
        %v2110 = vsel %vm937, %v2047, 0
        %v2112 = vsel %vm937, %v2049, 0
        %v2114 = vsel %vm937, %v2051, 0
        %v2116 = vsel %vm937, %v2053, 0
        %v2118 = vsel %vm937, %v2055, 0
        %v2120 = vsel %vm937, %v2057, 0
        %v2122 = vsel %vm937, %v2059, 0
        %v2124 = vsel %vm937, %v2061, 0
        %v2126 = vsel %vm937, %v2063, 0
        %v2128 = vsel %vm937, %v2065, 0
        %v2130 = vsel %vm937, %v2067, 0
        %v2132 = vsel %vm937, %v2069, 0
        %v2134 = vsel %vm937, %v2071, 0
        %v2136 = vsel %vm937, %v2073, 0
        %v2138 = vsel %vm937, %v2075, 0
        %v2140 = vsel %vm937, %v2077, 0
        %v2142 = vsel %vm937, %v2079, 0
        %v2144 = vsel %vm937, %v2081, 0
        %v2146 = vsel %vm937, %v2083, 0
        %v2148 = vsel %vm937, %v2085, 0
        %v2150 = vsel %vm937, %v2087, 0
        %v2152 = vsel %vm937, %v2089, 0
        %v2154 = vsel %vm937, %v2091, 0
        %v2156 = vsel %vm937, %v2093, 0
        %2158 = vmatprep.subr.mxu0 0.0
        %2159 = vmatpush1.xpose.msra.mxu0 %v2156
        %2160 = vmatprep.subr.mxu0 0.0
        %2161 = vmatpush1.xpose.msra.mxu0 %v2154
        %2162 = vmatprep.subr.mxu0 0.0
        %2163 = vmatpush1.xpose.msra.mxu0 %v2152
        %2164 = vmatprep.subr.mxu0 0.0
        %2165 = vmatpush1.xpose.msra.mxu0 %v2150
        %2166 = vmatprep.subr.mxu0 0.0
        %2167 = vmatpush1.xpose.msra.mxu0 %v2148
        %2168 = vmatprep.subr.mxu0 0.0
        %2169 = vmatpush1.xpose.msra.mxu0 %v2146
        %2170 = vmatprep.subr.mxu0 0.0
        %2171 = vmatpush1.xpose.msra.mxu0 %v2144
        %2172 = vmatprep.subr.mxu0 0.0
        %2173 = vmatpush1.xpose.msra.mxu0 %v2142
        %2174 = vmatprep.subr.mxu0 0.0
        %2175 = vmatpush1.xpose.msra.mxu0 %v2140
        %2176 = vmatprep.subr.mxu0 0.0
        %2177 = vmatpush1.xpose.msra.mxu0 %v2138
        %2178 = vmatprep.subr.mxu0 0.0
        %2179 = vmatpush1.xpose.msra.mxu0 %v2136
        %2180 = vmatprep.subr.mxu0 0.0
        %2181 = vmatpush1.xpose.msra.mxu0 %v2134
        %2182 = vmatprep.subr.mxu0 0.0
        %2183 = vmatpush1.xpose.msra.mxu0 %v2132
        %2184 = vmatprep.subr.mxu0 0.0
        %2185 = vmatpush1.xpose.msra.mxu0 %v2130
        %2186 = vmatprep.subr.mxu0 0.0
        %2187 = vmatpush1.xpose.msra.mxu0 %v2128
        %2188 = vmatprep.subr.mxu0 0.0
        %2189 = vmatpush1.xpose.msra.mxu0 %v2126
        %2190 = vmatprep.subr.mxu0 0.0
        %2191 = vmatpush2.xpose.msra.mxu0 0.0
        %2192 = vmatprep.subr.mxu0 0.0
        %2193 = vmatpush2.xpose.msra.mxu0 0.0
        %2194 = vmatprep.subr.mxu0 0.0
        %2195 = vmatpush2.xpose.msra.mxu0 0.0
        %2196 = vmatprep.subr.mxu0 0.0
        %2197 = vmatpush2.xpose.msra.mxu0 0.0
        %2198 = vmatprep.subr.mxu0 0.0
        %2199 = vmatpush2.xpose.msra.mxu0 0.0
        %2200 = vmatprep.subr.mxu0 0.0
        %2201 = vmatpush2.xpose.msra.mxu0 0.0
        %2202 = vmatprep.subr.mxu0 0.0
        %2203 = vmatpush2.xpose.msra.mxu0 0.0
        %2204 = vmatprep.subr.mxu0 0.0
        %2205 = vmatpush2.xpose.msra.mxu0 0.0
        %2206 = vmatprep.subr.mxu0 0.0
        %2207 = vmatpush2.xpose.msra.mxu0 0.0
        %2208 = vmatprep.subr.mxu0 0.0
        %2209 = vmatpush2.xpose.msra.mxu0 0.0
        %2210 = vmatprep.subr.mxu0 0.0
        %2211 = vmatpush2.xpose.msra.mxu0 0.0
        %2212 = vmatprep.subr.mxu0 0.0
        %2213 = vmatpush2.xpose.msra.mxu0 0.0
        %2214 = vmatprep.subr.mxu0 0.0
        %2215 = vmatpush2.xpose.msra.mxu0 0.0
        %2216 = vmatprep.subr.mxu0 0.0
        %2217 = vmatpush2.xpose.msra.mxu0 0.0
        %2218 = vmatprep.subr.mxu0 0.0
        %2219 = vmatpush2.xpose.msra.mxu0 0.0
        %2220 = vmatprep.subr.mxu0 0.0
        %2221 = vmatpush2.xpose.msra.mxu0 0.0
        %2222 = vmatprep.mubr.f32.mxu0 0.0
        %2223 = vmatmul.mubr.f32.gmra.mxu0 %v2094
        %v2224 = vpop.f32.mrf.mxu0
        %v2225 = vadd.f32 %v921, %v2224
        %v2226 = vpop.f32.mrf.mxu0
        %2227 = vmatprep.mubr.f32.mxu0 0.0
        %2228 = vmatmul.mubr.f32.gmra.mxu0 %v2096
        %v2229 = vpop.f32.mrf.mxu0
        %v2230 = vadd.f32 %v922, %v2229
        %v2231 = vpop.f32.mrf.mxu0
        %2232 = vmatprep.mubr.f32.mxu0 0.0
        %2233 = vmatmul.mubr.f32.gmra.mxu0 %v2098
        %v2234 = vpop.f32.mrf.mxu0
        %v2235 = vadd.f32 %v923, %v2234
        %v2236 = vpop.f32.mrf.mxu0
        %2237 = vmatprep.mubr.f32.mxu0 0.0
        %2238 = vmatmul.mubr.f32.gmra.mxu0 %v2100
        %v2239 = vpop.f32.mrf.mxu0
        %v2240 = vadd.f32 %v924, %v2239
        %v2241 = vpop.f32.mrf.mxu0
        %2242 = vmatprep.mubr.f32.mxu0 0.0
        %2243 = vmatmul.mubr.f32.gmra.mxu0 %v2102
        %v2244 = vpop.f32.mrf.mxu0
        %v2245 = vadd.f32 %v925, %v2244
        %v2246 = vpop.f32.mrf.mxu0
        %2247 = vmatprep.mubr.f32.mxu0 0.0
        %2248 = vmatmul.mubr.f32.gmra.mxu0 %v2104
        %v2249 = vpop.f32.mrf.mxu0
        %v2250 = vadd.f32 %v926, %v2249
        %v2251 = vpop.f32.mrf.mxu0
        %2252 = vmatprep.mubr.f32.mxu0 0.0
        %2253 = vmatmul.mubr.f32.gmra.mxu0 %v2106
        %v2254 = vpop.f32.mrf.mxu0
        %v2255 = vadd.f32 %v927, %v2254
        %v2256 = vpop.f32.mrf.mxu0
        %2257 = vmatprep.mubr.f32.mxu0 0.0
        %2258 = vmatmul.mubr.f32.gmra.mxu0 %v2108
        %v2259 = vpop.f32.mrf.mxu0
        %v2260 = vadd.f32 %v928, %v2259
        %v2261 = vpop.f32.mrf.mxu0
        %2262 = vmatprep.mubr.f32.mxu0 0.0
        %2263 = vmatmul.mubr.f32.gmra.mxu0 %v2110
        %v2264 = vpop.f32.mrf.mxu0
        %v2265 = vadd.f32 %v929, %v2264
        %v2266 = vpop.f32.mrf.mxu0
        %2267 = vmatprep.mubr.f32.mxu0 0.0
        %2268 = vmatmul.mubr.f32.gmra.mxu0 %v2112
        %v2269 = vpop.f32.mrf.mxu0
        %v2270 = vadd.f32 %v930, %v2269
        %v2271 = vpop.f32.mrf.mxu0
        %2272 = vmatprep.mubr.f32.mxu0 0.0
        %2273 = vmatmul.mubr.f32.gmra.mxu0 %v2114
        %v2274 = vpop.f32.mrf.mxu0
        %v2275 = vadd.f32 %v931, %v2274
        %v2276 = vpop.f32.mrf.mxu0
        %2277 = vmatprep.mubr.f32.mxu0 0.0
        %2278 = vmatmul.mubr.f32.gmra.mxu0 %v2116
        %v2279 = vpop.f32.mrf.mxu0
        %v2280 = vadd.f32 %v932, %v2279
        %v2281 = vpop.f32.mrf.mxu0
        %2282 = vmatprep.mubr.f32.mxu0 0.0
        %2283 = vmatmul.mubr.f32.gmra.mxu0 %v2118
        %v2284 = vpop.f32.mrf.mxu0
        %v2285 = vadd.f32 %v933, %v2284
        %v2286 = vpop.f32.mrf.mxu0
        %2287 = vmatprep.mubr.f32.mxu0 0.0
        %2288 = vmatmul.mubr.f32.gmra.mxu0 %v2120
        %v2289 = vpop.f32.mrf.mxu0
        %v2290 = vadd.f32 %v934, %v2289
        %v2291 = vpop.f32.mrf.mxu0
        %2292 = vmatprep.mubr.f32.mxu0 0.0
        %2293 = vmatmul.mubr.f32.gmra.mxu0 %v2122
        %v2294 = vpop.f32.mrf.mxu0
        %v2295 = vadd.f32 %v935, %v2294
        %v2296 = vpop.f32.mrf.mxu0
        %2297 = vmatprep.mubr.f32.mxu0 0.0
        %2298 = vmatmul.mubr.f32.gmra.mxu0 %v2124
        %v2299 = vpop.f32.mrf.mxu0
        %v2300 = vadd.f32 %v936, %v2299
        %v2301 = vpop.f32.mrf.mxu0
        %2302 = vdwg.mxu0
        %2303 = vrot.lane.b32.xlu0 %v870, 96
        %v2304 = vpop.permute.xlu0 %2303
        %2305 = vrot.lane.b32.xlu0 %v871, 96
        %v2306 = vpop.permute.xlu0 %2305
        %2307 = vrot.lane.b32.xlu0 %v872, 96
        %v2308 = vpop.permute.xlu0 %2307
        %2309 = vrot.lane.b32.xlu0 %v873, 96
        %v2310 = vpop.permute.xlu0 %2309
        %2311 = vrot.lane.b32.xlu0 %v874, 96
        %v2312 = vpop.permute.xlu0 %2311
        %2313 = vrot.lane.b32.xlu0 %v875, 96
        %v2314 = vpop.permute.xlu0 %2313
        %2315 = vrot.lane.b32.xlu0 %v876, 96
        %v2316 = vpop.permute.xlu0 %2315
        %2317 = vrot.lane.b32.xlu0 %v877, 96
        %v2318 = vpop.permute.xlu0 %2317
        %2319 = vrot.lane.b32.xlu0 %v878, 96
        %v2320 = vpop.permute.xlu0 %2319
        %2321 = vrot.lane.b32.xlu0 %v879, 96
        %v2322 = vpop.permute.xlu0 %2321
        %2323 = vrot.lane.b32.xlu0 %v880, 96
        %v2324 = vpop.permute.xlu0 %2323
        %2325 = vrot.lane.b32.xlu0 %v881, 96
        %v2326 = vpop.permute.xlu0 %2325
        %2327 = vrot.lane.b32.xlu0 %v882, 96
        %v2328 = vpop.permute.xlu0 %2327
        %2329 = vrot.lane.b32.xlu0 %v883, 96
        %v2330 = vpop.permute.xlu0 %2329
        %2331 = vrot.lane.b32.xlu0 %v884, 96
        %v2332 = vpop.permute.xlu0 %2331
        %2333 = vrot.lane.b32.xlu0 %v885, 96
        %v2334 = vpop.permute.xlu0 %2333
        %2335 = vrot.lane.b32.xlu0 %v537, 96
        %v2336 = vpop.permute.xlu0 %2335
        %2337 = vrot.lane.b32.xlu0 %v543, 96
        %v2338 = vpop.permute.xlu0 %2337
        %2339 = vrot.lane.b32.xlu0 %v549, 96
        %v2340 = vpop.permute.xlu0 %2339
        %2341 = vrot.lane.b32.xlu0 %v555, 96
        %v2342 = vpop.permute.xlu0 %2341
        %2343 = vrot.lane.b32.xlu0 %v561, 96
        %v2344 = vpop.permute.xlu0 %2343
        %2345 = vrot.lane.b32.xlu0 %v567, 96
        %v2346 = vpop.permute.xlu0 %2345
        %2347 = vrot.lane.b32.xlu0 %v573, 96
        %v2348 = vpop.permute.xlu0 %2347
        %2349 = vrot.lane.b32.xlu0 %v579, 96
        %v2350 = vpop.permute.xlu0 %2349
        %2351 = vrot.lane.b32.xlu0 %v585, 96
        %v2352 = vpop.permute.xlu0 %2351
        %2353 = vrot.lane.b32.xlu0 %v591, 96
        %v2354 = vpop.permute.xlu0 %2353
        %2355 = vrot.lane.b32.xlu0 %v597, 96
        %v2356 = vpop.permute.xlu0 %2355
        %2357 = vrot.lane.b32.xlu0 %v603, 96
        %v2358 = vpop.permute.xlu0 %2357
        %2359 = vrot.lane.b32.xlu0 %v609, 96
        %v2360 = vpop.permute.xlu0 %2359
        %2361 = vrot.lane.b32.xlu0 %v615, 96
        %v2362 = vpop.permute.xlu0 %2361
        %2363 = vrot.lane.b32.xlu0 %v621, 96
        %v2364 = vpop.permute.xlu0 %2363
        %2365 = vrot.lane.b32.xlu0 %v627, 96
        %v2366 = vpop.permute.xlu0 %2365
        %v2367 = vsel %vm937, %v2304, 0
        %v2369 = vsel %vm937, %v2306, 0
        %v2371 = vsel %vm937, %v2308, 0
        %v2373 = vsel %vm937, %v2310, 0
        %v2375 = vsel %vm937, %v2312, 0
        %v2377 = vsel %vm937, %v2314, 0
        %v2379 = vsel %vm937, %v2316, 0
        %v2381 = vsel %vm937, %v2318, 0
        %v2383 = vsel %vm937, %v2320, 0
        %v2385 = vsel %vm937, %v2322, 0
        %v2387 = vsel %vm937, %v2324, 0
        %v2389 = vsel %vm937, %v2326, 0
        %v2391 = vsel %vm937, %v2328, 0
        %v2393 = vsel %vm937, %v2330, 0
        %v2395 = vsel %vm937, %v2332, 0
        %v2397 = vsel %vm937, %v2334, 0
        %v2399 = vsel %vm937, %v2336, 0
        %v2401 = vsel %vm937, %v2338, 0
        %v2403 = vsel %vm937, %v2340, 0
        %v2405 = vsel %vm937, %v2342, 0
        %v2407 = vsel %vm937, %v2344, 0
        %v2409 = vsel %vm937, %v2346, 0
        %v2411 = vsel %vm937, %v2348, 0
        %v2413 = vsel %vm937, %v2350, 0
        %v2415 = vsel %vm937, %v2352, 0
        %v2417 = vsel %vm937, %v2354, 0
        %v2419 = vsel %vm937, %v2356, 0
        %v2421 = vsel %vm937, %v2358, 0
        %v2423 = vsel %vm937, %v2360, 0
        %v2425 = vsel %vm937, %v2362, 0
        %v2427 = vsel %vm937, %v2364, 0
        %v2429 = vsel %vm937, %v2366, 0
        %2431 = vmatprep.subr.mxu0 0.0
        %2432 = vmatpush1.xpose.msra.mxu0 %v2429
        %2433 = vmatprep.subr.mxu0 0.0
        %2434 = vmatpush1.xpose.msra.mxu0 %v2427
        %2435 = vmatprep.subr.mxu0 0.0
        %2436 = vmatpush1.xpose.msra.mxu0 %v2425
        %2437 = vmatprep.subr.mxu0 0.0
        %2438 = vmatpush1.xpose.msra.mxu0 %v2423
        %2439 = vmatprep.subr.mxu0 0.0
        %2440 = vmatpush1.xpose.msra.mxu0 %v2421
        %2441 = vmatprep.subr.mxu0 0.0
        %2442 = vmatpush1.xpose.msra.mxu0 %v2419
        %2443 = vmatprep.subr.mxu0 0.0
        %2444 = vmatpush1.xpose.msra.mxu0 %v2417
        %2445 = vmatprep.subr.mxu0 0.0
        %2446 = vmatpush1.xpose.msra.mxu0 %v2415
        %2447 = vmatprep.subr.mxu0 0.0
        %2448 = vmatpush1.xpose.msra.mxu0 %v2413
        %2449 = vmatprep.subr.mxu0 0.0
        %2450 = vmatpush1.xpose.msra.mxu0 %v2411
        %2451 = vmatprep.subr.mxu0 0.0
        %2452 = vmatpush1.xpose.msra.mxu0 %v2409
        %2453 = vmatprep.subr.mxu0 0.0
        %2454 = vmatpush1.xpose.msra.mxu0 %v2407
        %2455 = vmatprep.subr.mxu0 0.0
        %2456 = vmatpush1.xpose.msra.mxu0 %v2405
        %2457 = vmatprep.subr.mxu0 0.0
        %2458 = vmatpush1.xpose.msra.mxu0 %v2403
        %2459 = vmatprep.subr.mxu0 0.0
        %2460 = vmatpush1.xpose.msra.mxu0 %v2401
        %2461 = vmatprep.subr.mxu0 0.0
        %2462 = vmatpush1.xpose.msra.mxu0 %v2399
        %2463 = vmatprep.subr.mxu0 0.0
        %2464 = vmatpush2.xpose.msra.mxu0 0.0
        %2465 = vmatprep.subr.mxu0 0.0
        %2466 = vmatpush2.xpose.msra.mxu0 0.0
        %2467 = vmatprep.subr.mxu0 0.0
        %2468 = vmatpush2.xpose.msra.mxu0 0.0
        %2469 = vmatprep.subr.mxu0 0.0
        %2470 = vmatpush2.xpose.msra.mxu0 0.0
        %2471 = vmatprep.subr.mxu0 0.0
        %2472 = vmatpush2.xpose.msra.mxu0 0.0
        %2473 = vmatprep.subr.mxu0 0.0
        %2474 = vmatpush2.xpose.msra.mxu0 0.0
        %2475 = vmatprep.subr.mxu0 0.0
        %2476 = vmatpush2.xpose.msra.mxu0 0.0
        %2477 = vmatprep.subr.mxu0 0.0
        %2478 = vmatpush2.xpose.msra.mxu0 0.0
        %2479 = vmatprep.subr.mxu0 0.0
        %2480 = vmatpush2.xpose.msra.mxu0 0.0
        %2481 = vmatprep.subr.mxu0 0.0
        %2482 = vmatpush2.xpose.msra.mxu0 0.0
        %2483 = vmatprep.subr.mxu0 0.0
        %2484 = vmatpush2.xpose.msra.mxu0 0.0
        %2485 = vmatprep.subr.mxu0 0.0
        %2486 = vmatpush2.xpose.msra.mxu0 0.0
        %2487 = vmatprep.subr.mxu0 0.0
        %2488 = vmatpush2.xpose.msra.mxu0 0.0
        %2489 = vmatprep.subr.mxu0 0.0
        %2490 = vmatpush2.xpose.msra.mxu0 0.0
        %2491 = vmatprep.subr.mxu0 0.0
        %2492 = vmatpush2.xpose.msra.mxu0 0.0
        %2493 = vmatprep.subr.mxu0 0.0
        %2494 = vmatpush2.xpose.msra.mxu0 0.0
        %2495 = vmatprep.mubr.f32.mxu0 0.0
        %2496 = vmatmul.mubr.f32.gmra.mxu0 %v2367
        %v2497 = vpop.f32.mrf.mxu0
        %v2498 = vadd.f32 %v921, %v2497
        %v2499 = vpop.f32.mrf.mxu0
        %2500 = vmatprep.mubr.f32.mxu0 0.0
        %2501 = vmatmul.mubr.f32.gmra.mxu0 %v2369
        %v2502 = vpop.f32.mrf.mxu0
        %v2503 = vadd.f32 %v922, %v2502
        %v2504 = vpop.f32.mrf.mxu0
        %2505 = vmatprep.mubr.f32.mxu0 0.0
        %2506 = vmatmul.mubr.f32.gmra.mxu0 %v2371
        %v2507 = vpop.f32.mrf.mxu0
        %v2508 = vadd.f32 %v923, %v2507
        %v2509 = vpop.f32.mrf.mxu0
        %2510 = vmatprep.mubr.f32.mxu0 0.0
        %2511 = vmatmul.mubr.f32.gmra.mxu0 %v2373
        %v2512 = vpop.f32.mrf.mxu0
        %v2513 = vadd.f32 %v924, %v2512
        %v2514 = vpop.f32.mrf.mxu0
        %2515 = vmatprep.mubr.f32.mxu0 0.0
        %2516 = vmatmul.mubr.f32.gmra.mxu0 %v2375
        %v2517 = vpop.f32.mrf.mxu0
        %v2518 = vadd.f32 %v925, %v2517
        %v2519 = vpop.f32.mrf.mxu0
        %2520 = vmatprep.mubr.f32.mxu0 0.0
        %2521 = vmatmul.mubr.f32.gmra.mxu0 %v2377
        %v2522 = vpop.f32.mrf.mxu0
        %v2523 = vadd.f32 %v926, %v2522
        %v2524 = vpop.f32.mrf.mxu0
        %2525 = vmatprep.mubr.f32.mxu0 0.0
        %2526 = vmatmul.mubr.f32.gmra.mxu0 %v2379
        %v2527 = vpop.f32.mrf.mxu0
        %v2528 = vadd.f32 %v927, %v2527
        %v2529 = vpop.f32.mrf.mxu0
        %2530 = vmatprep.mubr.f32.mxu0 0.0
        %2531 = vmatmul.mubr.f32.gmra.mxu0 %v2381
        %v2532 = vpop.f32.mrf.mxu0
        %v2533 = vadd.f32 %v928, %v2532
        %v2534 = vpop.f32.mrf.mxu0
        %2535 = vmatprep.mubr.f32.mxu0 0.0
        %2536 = vmatmul.mubr.f32.gmra.mxu0 %v2383
        %v2537 = vpop.f32.mrf.mxu0
        %v2538 = vadd.f32 %v929, %v2537
        %v2539 = vpop.f32.mrf.mxu0
        %2540 = vmatprep.mubr.f32.mxu0 0.0
        %2541 = vmatmul.mubr.f32.gmra.mxu0 %v2385
        %v2542 = vpop.f32.mrf.mxu0
        %v2543 = vadd.f32 %v930, %v2542
        %v2544 = vpop.f32.mrf.mxu0
        %2545 = vmatprep.mubr.f32.mxu0 0.0
        %2546 = vmatmul.mubr.f32.gmra.mxu0 %v2387
        %v2547 = vpop.f32.mrf.mxu0
        %v2548 = vadd.f32 %v931, %v2547
        %v2549 = vpop.f32.mrf.mxu0
        %2550 = vmatprep.mubr.f32.mxu0 0.0
        %2551 = vmatmul.mubr.f32.gmra.mxu0 %v2389
        %v2552 = vpop.f32.mrf.mxu0
        %v2553 = vadd.f32 %v932, %v2552
        %v2554 = vpop.f32.mrf.mxu0
        %2555 = vmatprep.mubr.f32.mxu0 0.0
        %2556 = vmatmul.mubr.f32.gmra.mxu0 %v2391
        %v2557 = vpop.f32.mrf.mxu0
        %v2558 = vadd.f32 %v933, %v2557
        %v2559 = vpop.f32.mrf.mxu0
        %2560 = vmatprep.mubr.f32.mxu0 0.0
        %2561 = vmatmul.mubr.f32.gmra.mxu0 %v2393
        %v2562 = vpop.f32.mrf.mxu0
        %v2563 = vadd.f32 %v934, %v2562
        %v2564 = vpop.f32.mrf.mxu0
        %2565 = vmatprep.mubr.f32.mxu0 0.0
        %2566 = vmatmul.mubr.f32.gmra.mxu0 %v2395
        %v2567 = vpop.f32.mrf.mxu0
        %v2568 = vadd.f32 %v935, %v2567
        %v2569 = vpop.f32.mrf.mxu0
        %2570 = vmatprep.mubr.f32.mxu0 0.0
        %2571 = vmatmul.mubr.f32.gmra.mxu0 %v2397
        %v2572 = vpop.f32.mrf.mxu0
        %v2573 = vadd.f32 %v936, %v2572
        %v2574 = vpop.f32.mrf.mxu0
        %2575 = vdwg.mxu0
        %2576 = vmax.xlane.f32.xlu0 %v2225
        %v2577 = vpop.xlane.xlu0 %2576
        %2578 = vmax.xlane.f32.xlu0 %v2230
        %v2579 = vpop.xlane.xlu0 %2578
        %2580 = vmax.xlane.f32.xlu0 %v2235
        %v2581 = vpop.xlane.xlu0 %2580
        %2582 = vmax.xlane.f32.xlu0 %v2240
        %v2583 = vpop.xlane.xlu0 %2582
        %2584 = vmax.xlane.f32.xlu0 %v2245
        %v2585 = vpop.xlane.xlu0 %2584
        %2586 = vmax.xlane.f32.xlu0 %v2250
        %v2587 = vpop.xlane.xlu0 %2586
        %2588 = vmax.xlane.f32.xlu0 %v2255
        %v2589 = vpop.xlane.xlu0 %2588
        %2590 = vmax.xlane.f32.xlu0 %v2260
        %v2591 = vpop.xlane.xlu0 %2590
        %2592 = vmax.xlane.f32.xlu0 %v2265
        %v2593 = vpop.xlane.xlu0 %2592
        %2594 = vmax.xlane.f32.xlu0 %v2270
        %v2595 = vpop.xlane.xlu0 %2594
        %2596 = vmax.xlane.f32.xlu0 %v2275
        %v2597 = vpop.xlane.xlu0 %2596
        %2598 = vmax.xlane.f32.xlu0 %v2280
        %v2599 = vpop.xlane.xlu0 %2598
        %2600 = vmax.xlane.f32.xlu0 %v2285
        %v2601 = vpop.xlane.xlu0 %2600
        %2602 = vmax.xlane.f32.xlu0 %v2290
        %v2603 = vpop.xlane.xlu0 %2602
        %2604 = vmax.xlane.f32.xlu0 %v2295
        %v2605 = vpop.xlane.xlu0 %2604
        %2606 = vmax.xlane.f32.xlu0 %v2300
        %v2607 = vpop.xlane.xlu0 %2606
        %2608 = vmax.xlane.f32.xlu0 %v2498
        %v2609 = vpop.xlane.xlu0 %2608
        %2610 = vmax.xlane.f32.xlu0 %v2503
        %v2611 = vpop.xlane.xlu0 %2610
        %2612 = vmax.xlane.f32.xlu0 %v2508
        %v2613 = vpop.xlane.xlu0 %2612
        %2614 = vmax.xlane.f32.xlu0 %v2513
        %v2615 = vpop.xlane.xlu0 %2614
        %2616 = vmax.xlane.f32.xlu0 %v2518
        %v2617 = vpop.xlane.xlu0 %2616
        %2618 = vmax.xlane.f32.xlu0 %v2523
        %v2619 = vpop.xlane.xlu0 %2618
        %2620 = vmax.xlane.f32.xlu0 %v2528
        %v2621 = vpop.xlane.xlu0 %2620
        %2622 = vmax.xlane.f32.xlu0 %v2533
        %v2623 = vpop.xlane.xlu0 %2622
        %2624 = vmax.xlane.f32.xlu0 %v2538
        %v2625 = vpop.xlane.xlu0 %2624
        %2626 = vmax.xlane.f32.xlu0 %v2543
        %v2627 = vpop.xlane.xlu0 %2626
        %2628 = vmax.xlane.f32.xlu0 %v2548
        %v2629 = vpop.xlane.xlu0 %2628
        %2630 = vmax.xlane.f32.xlu0 %v2553
        %v2631 = vpop.xlane.xlu0 %2630
        %2632 = vmax.xlane.f32.xlu0 %v2558
        %v2633 = vpop.xlane.xlu0 %2632
        %2634 = vmax.xlane.f32.xlu0 %v2563
        %v2635 = vpop.xlane.xlu0 %2634
        %2636 = vmax.xlane.f32.xlu0 %v2568
        %v2637 = vpop.xlane.xlu0 %2636
        %2638 = vmax.xlane.f32.xlu0 %v2573
        %v2639 = vpop.xlane.xlu0 %2638
        %v2640 = vsub.f32 %v2225, %v2577
        %v2641 = vsub.f32 %v2230, %v2579
        %v2642 = vsub.f32 %v2235, %v2581
        %v2643 = vsub.f32 %v2240, %v2583
        %v2644 = vsub.f32 %v2245, %v2585
        %v2645 = vsub.f32 %v2250, %v2587
        %v2646 = vsub.f32 %v2255, %v2589
        %v2647 = vsub.f32 %v2260, %v2591
        %v2648 = vsub.f32 %v2265, %v2593
        %v2649 = vsub.f32 %v2270, %v2595
        %v2650 = vsub.f32 %v2275, %v2597
        %v2651 = vsub.f32 %v2280, %v2599
        %v2652 = vsub.f32 %v2285, %v2601
        %v2653 = vsub.f32 %v2290, %v2603
        %v2654 = vsub.f32 %v2295, %v2605
        %v2655 = vsub.f32 %v2300, %v2607
        %v2656 = vsub.f32 %v2498, %v2609
        %v2657 = vsub.f32 %v2503, %v2611
        %v2658 = vsub.f32 %v2508, %v2613
        %v2659 = vsub.f32 %v2513, %v2615
        %v2660 = vsub.f32 %v2518, %v2617
        %v2661 = vsub.f32 %v2523, %v2619
        %v2662 = vsub.f32 %v2528, %v2621
        %v2663 = vsub.f32 %v2533, %v2623
        %v2664 = vsub.f32 %v2538, %v2625
        %v2665 = vsub.f32 %v2543, %v2627
        %v2666 = vsub.f32 %v2548, %v2629
        %v2667 = vsub.f32 %v2553, %v2631
        %v2668 = vsub.f32 %v2558, %v2633
        %v2669 = vsub.f32 %v2563, %v2635
        %v2670 = vsub.f32 %v2568, %v2637
        %v2671 = vsub.f32 %v2573, %v2639
        %v2672 = vmul.f32 %v2640, 1.442695
        %v2673 = vpow.pop %v2672
        %v2674 = vmul.f32 %v2641, 1.442695
        %v2675 = vpow.pop %v2674
        %v2676 = vmul.f32 %v2642, 1.442695
        %v2677 = vpow.pop %v2676
        %v2678 = vmul.f32 %v2643, 1.442695
        %v2679 = vpow.pop %v2678
        %v2680 = vmul.f32 %v2644, 1.442695
        %v2681 = vpow.pop %v2680
        %v2682 = vmul.f32 %v2645, 1.442695
        %v2683 = vpow.pop %v2682
        %v2684 = vmul.f32 %v2646, 1.442695
        %v2685 = vpow.pop %v2684
        %v2686 = vmul.f32 %v2647, 1.442695
        %v2687 = vpow.pop %v2686
        %v2688 = vmul.f32 %v2648, 1.442695
        %v2689 = vpow.pop %v2688
        %v2690 = vmul.f32 %v2649, 1.442695
        %v2691 = vpow.pop %v2690
        %v2692 = vmul.f32 %v2650, 1.442695
        %v2693 = vpow.pop %v2692
        %v2694 = vmul.f32 %v2651, 1.442695
        %v2695 = vpow.pop %v2694
        %v2696 = vmul.f32 %v2652, 1.442695
        %v2697 = vpow.pop %v2696
        %v2698 = vmul.f32 %v2653, 1.442695
        %v2699 = vpow.pop %v2698
        %v2700 = vmul.f32 %v2654, 1.442695
        %v2701 = vpow.pop %v2700
        %v2702 = vmul.f32 %v2655, 1.442695
        %v2703 = vpow.pop %v2702
        %v2704 = vmul.f32 %v2656, 1.442695
        %v2705 = vpow.pop %v2704
        %v2706 = vmul.f32 %v2657, 1.442695
        %v2707 = vpow.pop %v2706
        %v2708 = vmul.f32 %v2658, 1.442695
        %v2709 = vpow.pop %v2708
        %v2710 = vmul.f32 %v2659, 1.442695
        %v2711 = vpow.pop %v2710
        %v2712 = vmul.f32 %v2660, 1.442695
        %v2713 = vpow.pop %v2712
        %v2714 = vmul.f32 %v2661, 1.442695
        %v2715 = vpow.pop %v2714
        %v2716 = vmul.f32 %v2662, 1.442695
        %v2717 = vpow.pop %v2716
        %v2718 = vmul.f32 %v2663, 1.442695
        %v2719 = vpow.pop %v2718
        %v2720 = vmul.f32 %v2664, 1.442695
        %v2721 = vpow.pop %v2720
        %v2722 = vmul.f32 %v2665, 1.442695
        %v2723 = vpow.pop %v2722
        %v2724 = vmul.f32 %v2666, 1.442695
        %v2725 = vpow.pop %v2724
        %v2726 = vmul.f32 %v2667, 1.442695
        %v2727 = vpow.pop %v2726
        %v2728 = vmul.f32 %v2668, 1.442695
        %v2729 = vpow.pop %v2728
        %v2730 = vmul.f32 %v2669, 1.442695
        %v2731 = vpow.pop %v2730
        %v2732 = vmul.f32 %v2670, 1.442695
        %v2733 = vpow.pop %v2732
        %v2734 = vmul.f32 %v2671, 1.442695
        %v2735 = vpow.pop %v2734
        %2736 = vadd.xlane.f32.xlu0 %v2673
        %v2737 = vpop.xlane.xlu0 %2736
        %2738 = vadd.xlane.f32.xlu0 %v2675
        %v2739 = vpop.xlane.xlu0 %2738
        %2740 = vadd.xlane.f32.xlu0 %v2677
        %v2741 = vpop.xlane.xlu0 %2740
        %2742 = vadd.xlane.f32.xlu0 %v2679
        %v2743 = vpop.xlane.xlu0 %2742
        %2744 = vadd.xlane.f32.xlu0 %v2681
        %v2745 = vpop.xlane.xlu0 %2744
        %2746 = vadd.xlane.f32.xlu0 %v2683
        %v2747 = vpop.xlane.xlu0 %2746
        %2748 = vadd.xlane.f32.xlu0 %v2685
        %v2749 = vpop.xlane.xlu0 %2748
        %2750 = vadd.xlane.f32.xlu0 %v2687
        %v2751 = vpop.xlane.xlu0 %2750
        %2752 = vadd.xlane.f32.xlu0 %v2689
        %v2753 = vpop.xlane.xlu0 %2752
        %2754 = vadd.xlane.f32.xlu0 %v2691
        %v2755 = vpop.xlane.xlu0 %2754
        %2756 = vadd.xlane.f32.xlu0 %v2693
        %v2757 = vpop.xlane.xlu0 %2756
        %2758 = vadd.xlane.f32.xlu0 %v2695
        %v2759 = vpop.xlane.xlu0 %2758
        %2760 = vadd.xlane.f32.xlu0 %v2697
        %v2761 = vpop.xlane.xlu0 %2760
        %2762 = vadd.xlane.f32.xlu0 %v2699
        %v2763 = vpop.xlane.xlu0 %2762
        %2764 = vadd.xlane.f32.xlu0 %v2701
        %v2765 = vpop.xlane.xlu0 %2764
        %2766 = vadd.xlane.f32.xlu0 %v2703
        %v2767 = vpop.xlane.xlu0 %2766
        %2768 = vadd.xlane.f32.xlu0 %v2705
        %v2769 = vpop.xlane.xlu0 %2768
        %2770 = vadd.xlane.f32.xlu0 %v2707
        %v2771 = vpop.xlane.xlu0 %2770
        %2772 = vadd.xlane.f32.xlu0 %v2709
        %v2773 = vpop.xlane.xlu0 %2772
        %2774 = vadd.xlane.f32.xlu0 %v2711
        %v2775 = vpop.xlane.xlu0 %2774
        %2776 = vadd.xlane.f32.xlu0 %v2713
        %v2777 = vpop.xlane.xlu0 %2776
        %2778 = vadd.xlane.f32.xlu0 %v2715
        %v2779 = vpop.xlane.xlu0 %2778
        %2780 = vadd.xlane.f32.xlu0 %v2717
        %v2781 = vpop.xlane.xlu0 %2780
        %2782 = vadd.xlane.f32.xlu0 %v2719
        %v2783 = vpop.xlane.xlu0 %2782
        %2784 = vadd.xlane.f32.xlu0 %v2721
        %v2785 = vpop.xlane.xlu0 %2784
        %2786 = vadd.xlane.f32.xlu0 %v2723
        %v2787 = vpop.xlane.xlu0 %2786
        %2788 = vadd.xlane.f32.xlu0 %v2725
        %v2789 = vpop.xlane.xlu0 %2788
        %2790 = vadd.xlane.f32.xlu0 %v2727
        %v2791 = vpop.xlane.xlu0 %2790
        %2792 = vadd.xlane.f32.xlu0 %v2729
        %v2793 = vpop.xlane.xlu0 %2792
        %2794 = vadd.xlane.f32.xlu0 %v2731
        %v2795 = vpop.xlane.xlu0 %2794
        %2796 = vadd.xlane.f32.xlu0 %v2733
        %v2797 = vpop.xlane.xlu0 %2796
        %2798 = vadd.xlane.f32.xlu0 %v2735
        %v2799 = vpop.xlane.xlu0 %2798
        %v2800 = vrcp.pop %v2737
        %v2801 = vrcp.pop %v2739
        %v2802 = vrcp.pop %v2741
        %v2803 = vrcp.pop %v2743
        %v2804 = vrcp.pop %v2745
        %v2805 = vrcp.pop %v2747
        %v2806 = vrcp.pop %v2749
        %v2807 = vrcp.pop %v2751
        %v2808 = vrcp.pop %v2753
        %v2809 = vrcp.pop %v2755
        %v2810 = vrcp.pop %v2757
        %v2811 = vrcp.pop %v2759
        %v2812 = vrcp.pop %v2761
        %v2813 = vrcp.pop %v2763
        %v2814 = vrcp.pop %v2765
        %v2815 = vrcp.pop %v2767
        %v2816 = vrcp.pop %v2769
        %v2817 = vrcp.pop %v2771
        %v2818 = vrcp.pop %v2773
        %v2819 = vrcp.pop %v2775
        %v2820 = vrcp.pop %v2777
        %v2821 = vrcp.pop %v2779
        %v2822 = vrcp.pop %v2781
        %v2823 = vrcp.pop %v2783
        %v2824 = vrcp.pop %v2785
        %v2825 = vrcp.pop %v2787
        %v2826 = vrcp.pop %v2789
        %v2827 = vrcp.pop %v2791
        %v2828 = vrcp.pop %v2793
        %v2829 = vrcp.pop %v2795
        %v2830 = vrcp.pop %v2797
        %v2831 = vrcp.pop %v2799
        %2848 = vrot.lane.b32.xlu0 %v696, 96
        %v2849 = vpop.permute.xlu0 %2848
        %2850 = vrot.lane.b32.xlu0 %v701, 96
        %v2851 = vpop.permute.xlu0 %2850
        %2852 = vrot.lane.b32.xlu0 %v706, 96
        %v2853 = vpop.permute.xlu0 %2852
        %2854 = vrot.lane.b32.xlu0 %v711, 96
        %v2855 = vpop.permute.xlu0 %2854
        %2856 = vrot.lane.b32.xlu0 %v716, 96
        %v2857 = vpop.permute.xlu0 %2856
        %2858 = vrot.lane.b32.xlu0 %v721, 96
        %v2859 = vpop.permute.xlu0 %2858
        %2860 = vrot.lane.b32.xlu0 %v726, 96
        %v2861 = vpop.permute.xlu0 %2860
        %2862 = vrot.lane.b32.xlu0 %v731, 96
        %v2863 = vpop.permute.xlu0 %2862
        %2864 = vrot.lane.b32.xlu0 %v736, 96
        %v2865 = vpop.permute.xlu0 %2864
        %2866 = vrot.lane.b32.xlu0 %v741, 96
        %v2867 = vpop.permute.xlu0 %2866
        %2868 = vrot.lane.b32.xlu0 %v746, 96
        %v2869 = vpop.permute.xlu0 %2868
        %2870 = vrot.lane.b32.xlu0 %v751, 96
        %v2871 = vpop.permute.xlu0 %2870
        %2872 = vrot.lane.b32.xlu0 %v756, 96
        %v2873 = vpop.permute.xlu0 %2872
        %2874 = vrot.lane.b32.xlu0 %v761, 96
        %v2875 = vpop.permute.xlu0 %2874
        %2876 = vrot.lane.b32.xlu0 %v766, 96
        %v2877 = vpop.permute.xlu0 %2876
        %2878 = vrot.lane.b32.xlu0 %v771, 96
        %v2879 = vpop.permute.xlu0 %2878
        %2896 = vmatprep.subr.mxu0 0.0
        %2897 = vmatpush1.msra.mxu0 %v2879
        %2898 = vmatprep.subr.mxu0 0.0
        %2899 = vmatpush1.msra.mxu0 %v2877
        %2900 = vmatprep.subr.mxu0 0.0
        %2901 = vmatpush1.msra.mxu0 %v2875
        %2902 = vmatprep.subr.mxu0 0.0
        %2903 = vmatpush1.msra.mxu0 %v2873
        %2904 = vmatprep.subr.mxu0 0.0
        %2905 = vmatpush1.msra.mxu0 %v2871
        %2906 = vmatprep.subr.mxu0 0.0
        %2907 = vmatpush1.msra.mxu0 %v2869
        %2908 = vmatprep.subr.mxu0 0.0
        %2909 = vmatpush1.msra.mxu0 %v2867
        %2910 = vmatprep.subr.mxu0 0.0
        %2911 = vmatpush1.msra.mxu0 %v2865
        %2912 = vmatprep.subr.mxu0 0.0
        %2913 = vmatpush1.msra.mxu0 %v2863
        %2914 = vmatprep.subr.mxu0 0.0
        %2915 = vmatpush1.msra.mxu0 %v2861
        %2916 = vmatprep.subr.mxu0 0.0
        %2917 = vmatpush1.msra.mxu0 %v2859
        %2918 = vmatprep.subr.mxu0 0.0
        %2919 = vmatpush1.msra.mxu0 %v2857
        %2920 = vmatprep.subr.mxu0 0.0
        %2921 = vmatpush1.msra.mxu0 %v2855
        %2922 = vmatprep.subr.mxu0 0.0
        %2923 = vmatpush1.msra.mxu0 %v2853
        %2924 = vmatprep.subr.mxu0 0.0
        %2925 = vmatpush1.msra.mxu0 %v2851
        %2926 = vmatprep.subr.mxu0 0.0
        %2927 = vmatpush1.msra.mxu0 %v2849
        %2928 = vmatprep.subr.mxu0 0.0
        %2929 = vmatpush2.msra.mxu0 0.0
        %2930 = vmatprep.subr.mxu0 0.0
        %2931 = vmatpush2.msra.mxu0 0.0
        %2932 = vmatprep.subr.mxu0 0.0
        %2933 = vmatpush2.msra.mxu0 0.0
        %2934 = vmatprep.subr.mxu0 0.0
        %2935 = vmatpush2.msra.mxu0 0.0
        %2936 = vmatprep.subr.mxu0 0.0
        %2937 = vmatpush2.msra.mxu0 0.0
        %2938 = vmatprep.subr.mxu0 0.0
        %2939 = vmatpush2.msra.mxu0 0.0
        %2940 = vmatprep.subr.mxu0 0.0
        %2941 = vmatpush2.msra.mxu0 0.0
        %2942 = vmatprep.subr.mxu0 0.0
        %2943 = vmatpush2.msra.mxu0 0.0
        %2944 = vmatprep.subr.mxu0 0.0
        %2945 = vmatpush2.msra.mxu0 0.0
        %2946 = vmatprep.subr.mxu0 0.0
        %2947 = vmatpush2.msra.mxu0 0.0
        %2948 = vmatprep.subr.mxu0 0.0
        %2949 = vmatpush2.msra.mxu0 0.0
        %2950 = vmatprep.subr.mxu0 0.0
        %2951 = vmatpush2.msra.mxu0 0.0
        %2952 = vmatprep.subr.mxu0 0.0
        %2953 = vmatpush2.msra.mxu0 0.0
        %2954 = vmatprep.subr.mxu0 0.0
        %2955 = vmatpush2.msra.mxu0 0.0
        %2956 = vmatprep.subr.mxu0 0.0
        %2957 = vmatpush2.msra.mxu0 0.0
        %2958 = vmatprep.subr.mxu0 0.0
        %2959 = vmatpush2.msra.mxu0 0.0
        %2960 = vmatprep.mubr.f32.mxu0 0.0
        %2961 = vmatmul.mubr.f32.gmra.mxu0 %v2673
        %v2962 = vpop.f32.mrf.mxu0
        %v2963 = vadd.f32 0.0, %v2962
        %v2964 = vpop.f32.mrf.mxu0
        %2965 = vmatprep.mubr.f32.mxu0 0.0
        %2966 = vmatmul.mubr.f32.gmra.mxu0 %v2675
        %v2967 = vpop.f32.mrf.mxu0
        %v2968 = vadd.f32 0.0, %v2967
        %v2969 = vpop.f32.mrf.mxu0
        %2970 = vmatprep.mubr.f32.mxu0 0.0
        %2971 = vmatmul.mubr.f32.gmra.mxu0 %v2677
        %v2972 = vpop.f32.mrf.mxu0
        %v2973 = vadd.f32 0.0, %v2972
        %v2974 = vpop.f32.mrf.mxu0
        %2975 = vmatprep.mubr.f32.mxu0 0.0
        %2976 = vmatmul.mubr.f32.gmra.mxu0 %v2679
        %v2977 = vpop.f32.mrf.mxu0
        %v2978 = vadd.f32 0.0, %v2977
        %v2979 = vpop.f32.mrf.mxu0
        %2980 = vmatprep.mubr.f32.mxu0 0.0
        %2981 = vmatmul.mubr.f32.gmra.mxu0 %v2681
        %v2982 = vpop.f32.mrf.mxu0
        %v2983 = vadd.f32 0.0, %v2982
        %v2984 = vpop.f32.mrf.mxu0
        %2985 = vmatprep.mubr.f32.mxu0 0.0
        %2986 = vmatmul.mubr.f32.gmra.mxu0 %v2683
        %v2987 = vpop.f32.mrf.mxu0
        %v2988 = vadd.f32 0.0, %v2987
        %v2989 = vpop.f32.mrf.mxu0
        %2990 = vmatprep.mubr.f32.mxu0 0.0
        %2991 = vmatmul.mubr.f32.gmra.mxu0 %v2685
        %v2992 = vpop.f32.mrf.mxu0
        %v2993 = vadd.f32 0.0, %v2992
        %v2994 = vpop.f32.mrf.mxu0
        %2995 = vmatprep.mubr.f32.mxu0 0.0
        %2996 = vmatmul.mubr.f32.gmra.mxu0 %v2687
        %v2997 = vpop.f32.mrf.mxu0
        %v2998 = vadd.f32 0.0, %v2997
        %v2999 = vpop.f32.mrf.mxu0
        %3000 = vmatprep.mubr.f32.mxu0 0.0
        %3001 = vmatmul.mubr.f32.gmra.mxu0 %v2689
        %v3002 = vpop.f32.mrf.mxu0
        %v3003 = vadd.f32 0.0, %v3002
        %v3004 = vpop.f32.mrf.mxu0
        %3005 = vmatprep.mubr.f32.mxu0 0.0
        %3006 = vmatmul.mubr.f32.gmra.mxu0 %v2691
        %v3007 = vpop.f32.mrf.mxu0
        %v3008 = vadd.f32 0.0, %v3007
        %v3009 = vpop.f32.mrf.mxu0
        %3010 = vmatprep.mubr.f32.mxu0 0.0
        %3011 = vmatmul.mubr.f32.gmra.mxu0 %v2693
        %v3012 = vpop.f32.mrf.mxu0
        %v3013 = vadd.f32 0.0, %v3012
        %v3014 = vpop.f32.mrf.mxu0
        %3015 = vmatprep.mubr.f32.mxu0 0.0
        %3016 = vmatmul.mubr.f32.gmra.mxu0 %v2695
        %v3017 = vpop.f32.mrf.mxu0
        %v3018 = vadd.f32 0.0, %v3017
        %v3019 = vpop.f32.mrf.mxu0
        %3020 = vmatprep.mubr.f32.mxu0 0.0
        %3021 = vmatmul.mubr.f32.gmra.mxu0 %v2697
        %v3022 = vpop.f32.mrf.mxu0
        %v3023 = vadd.f32 0.0, %v3022
        %v3024 = vpop.f32.mrf.mxu0
        %3025 = vmatprep.mubr.f32.mxu0 0.0
        %3026 = vmatmul.mubr.f32.gmra.mxu0 %v2699
        %v3027 = vpop.f32.mrf.mxu0
        %v3028 = vadd.f32 0.0, %v3027
        %v3029 = vpop.f32.mrf.mxu0
        %3030 = vmatprep.mubr.f32.mxu0 0.0
        %3031 = vmatmul.mubr.f32.gmra.mxu0 %v2701
        %v3032 = vpop.f32.mrf.mxu0
        %v3033 = vadd.f32 0.0, %v3032
        %v3034 = vpop.f32.mrf.mxu0
        %3035 = vmatprep.mubr.f32.mxu0 0.0
        %3036 = vmatmul.mubr.f32.gmra.mxu0 %v2703
        %v3037 = vpop.f32.mrf.mxu0
        %v3038 = vadd.f32 0.0, %v3037
        %v3039 = vpop.f32.mrf.mxu0
        %3040 = vdwg.mxu0
        %3057 = vrot.lane.b32.xlu0 %v776, 96
        %v3058 = vpop.permute.xlu0 %3057
        %3059 = vrot.lane.b32.xlu0 %v781, 96
        %v3060 = vpop.permute.xlu0 %3059
        %3061 = vrot.lane.b32.xlu0 %v786, 96
        %v3062 = vpop.permute.xlu0 %3061
        %3063 = vrot.lane.b32.xlu0 %v791, 96
        %v3064 = vpop.permute.xlu0 %3063
        %3065 = vrot.lane.b32.xlu0 %v796, 96
        %v3066 = vpop.permute.xlu0 %3065
        %3067 = vrot.lane.b32.xlu0 %v801, 96
        %v3068 = vpop.permute.xlu0 %3067
        %3069 = vrot.lane.b32.xlu0 %v806, 96
        %v3070 = vpop.permute.xlu0 %3069
        %3071 = vrot.lane.b32.xlu0 %v811, 96
        %v3072 = vpop.permute.xlu0 %3071
        %3073 = vrot.lane.b32.xlu0 %v816, 96
        %v3074 = vpop.permute.xlu0 %3073
        %3075 = vrot.lane.b32.xlu0 %v821, 96
        %v3076 = vpop.permute.xlu0 %3075
        %3077 = vrot.lane.b32.xlu0 %v826, 96
        %v3078 = vpop.permute.xlu0 %3077
        %3079 = vrot.lane.b32.xlu0 %v831, 96
        %v3080 = vpop.permute.xlu0 %3079
        %3081 = vrot.lane.b32.xlu0 %v836, 96
        %v3082 = vpop.permute.xlu0 %3081
        %3083 = vrot.lane.b32.xlu0 %v841, 96
        %v3084 = vpop.permute.xlu0 %3083
        %3085 = vrot.lane.b32.xlu0 %v846, 96
        %v3086 = vpop.permute.xlu0 %3085
        %3087 = vrot.lane.b32.xlu0 %v851, 96
        %v3088 = vpop.permute.xlu0 %3087
        %3105 = vmatprep.subr.mxu0 0.0
        %3106 = vmatpush1.msra.mxu0 %v3088
        %3107 = vmatprep.subr.mxu0 0.0
        %3108 = vmatpush1.msra.mxu0 %v3086
        %3109 = vmatprep.subr.mxu0 0.0
        %3110 = vmatpush1.msra.mxu0 %v3084
        %3111 = vmatprep.subr.mxu0 0.0
        %3112 = vmatpush1.msra.mxu0 %v3082
        %3113 = vmatprep.subr.mxu0 0.0
        %3114 = vmatpush1.msra.mxu0 %v3080
        %3115 = vmatprep.subr.mxu0 0.0
        %3116 = vmatpush1.msra.mxu0 %v3078
        %3117 = vmatprep.subr.mxu0 0.0
        %3118 = vmatpush1.msra.mxu0 %v3076
        %3119 = vmatprep.subr.mxu0 0.0
        %3120 = vmatpush1.msra.mxu0 %v3074
        %3121 = vmatprep.subr.mxu0 0.0
        %3122 = vmatpush1.msra.mxu0 %v3072
        %3123 = vmatprep.subr.mxu0 0.0
        %3124 = vmatpush1.msra.mxu0 %v3070
        %3125 = vmatprep.subr.mxu0 0.0
        %3126 = vmatpush1.msra.mxu0 %v3068
        %3127 = vmatprep.subr.mxu0 0.0
        %3128 = vmatpush1.msra.mxu0 %v3066
        %3129 = vmatprep.subr.mxu0 0.0
        %3130 = vmatpush1.msra.mxu0 %v3064
        %3131 = vmatprep.subr.mxu0 0.0
        %3132 = vmatpush1.msra.mxu0 %v3062
        %3133 = vmatprep.subr.mxu0 0.0
        %3134 = vmatpush1.msra.mxu0 %v3060
        %3135 = vmatprep.subr.mxu0 0.0
        %3136 = vmatpush1.msra.mxu0 %v3058
        %3137 = vmatprep.subr.mxu0 0.0
        %3138 = vmatpush2.msra.mxu0 0.0
        %3139 = vmatprep.subr.mxu0 0.0
        %3140 = vmatpush2.msra.mxu0 0.0
        %3141 = vmatprep.subr.mxu0 0.0
        %3142 = vmatpush2.msra.mxu0 0.0
        %3143 = vmatprep.subr.mxu0 0.0
        %3144 = vmatpush2.msra.mxu0 0.0
        %3145 = vmatprep.subr.mxu0 0.0
        %3146 = vmatpush2.msra.mxu0 0.0
        %3147 = vmatprep.subr.mxu0 0.0
        %3148 = vmatpush2.msra.mxu0 0.0
        %3149 = vmatprep.subr.mxu0 0.0
        %3150 = vmatpush2.msra.mxu0 0.0
        %3151 = vmatprep.subr.mxu0 0.0
        %3152 = vmatpush2.msra.mxu0 0.0
        %3153 = vmatprep.subr.mxu0 0.0
        %3154 = vmatpush2.msra.mxu0 0.0
        %3155 = vmatprep.subr.mxu0 0.0
        %3156 = vmatpush2.msra.mxu0 0.0
        %3157 = vmatprep.subr.mxu0 0.0
        %3158 = vmatpush2.msra.mxu0 0.0
        %3159 = vmatprep.subr.mxu0 0.0
        %3160 = vmatpush2.msra.mxu0 0.0
        %3161 = vmatprep.subr.mxu0 0.0
        %3162 = vmatpush2.msra.mxu0 0.0
        %3163 = vmatprep.subr.mxu0 0.0
        %3164 = vmatpush2.msra.mxu0 0.0
        %3165 = vmatprep.subr.mxu0 0.0
        %3166 = vmatpush2.msra.mxu0 0.0
        %3167 = vmatprep.subr.mxu0 0.0
        %3168 = vmatpush2.msra.mxu0 0.0
        %3169 = vmatprep.mubr.f32.mxu0 0.0
        %3170 = vmatmul.mubr.f32.gmra.mxu0 %v2705
        %v3171 = vpop.f32.mrf.mxu0
        %v3172 = vadd.f32 0.0, %v3171
        %v3173 = vpop.f32.mrf.mxu0
        %3174 = vmatprep.mubr.f32.mxu0 0.0
        %3175 = vmatmul.mubr.f32.gmra.mxu0 %v2707
        %v3176 = vpop.f32.mrf.mxu0
        %v3177 = vadd.f32 0.0, %v3176
        %v3178 = vpop.f32.mrf.mxu0
        %3179 = vmatprep.mubr.f32.mxu0 0.0
        %3180 = vmatmul.mubr.f32.gmra.mxu0 %v2709
        %v3181 = vpop.f32.mrf.mxu0
        %v3182 = vadd.f32 0.0, %v3181
        %v3183 = vpop.f32.mrf.mxu0
        %3184 = vmatprep.mubr.f32.mxu0 0.0
        %3185 = vmatmul.mubr.f32.gmra.mxu0 %v2711
        %v3186 = vpop.f32.mrf.mxu0
        %v3187 = vadd.f32 0.0, %v3186
        %v3188 = vpop.f32.mrf.mxu0
        %3189 = vmatprep.mubr.f32.mxu0 0.0
        %3190 = vmatmul.mubr.f32.gmra.mxu0 %v2713
        %v3191 = vpop.f32.mrf.mxu0
        %v3192 = vadd.f32 0.0, %v3191
        %v3193 = vpop.f32.mrf.mxu0
        %3194 = vmatprep.mubr.f32.mxu0 0.0
        %3195 = vmatmul.mubr.f32.gmra.mxu0 %v2715
        %v3196 = vpop.f32.mrf.mxu0
        %v3197 = vadd.f32 0.0, %v3196
        %v3198 = vpop.f32.mrf.mxu0
        %3199 = vmatprep.mubr.f32.mxu0 0.0
        %3200 = vmatmul.mubr.f32.gmra.mxu0 %v2717
        %v3201 = vpop.f32.mrf.mxu0
        %v3202 = vadd.f32 0.0, %v3201
        %v3203 = vpop.f32.mrf.mxu0
        %3204 = vmatprep.mubr.f32.mxu0 0.0
        %3205 = vmatmul.mubr.f32.gmra.mxu0 %v2719
        %v3206 = vpop.f32.mrf.mxu0
        %v3207 = vadd.f32 0.0, %v3206
        %v3208 = vpop.f32.mrf.mxu0
        %3209 = vmatprep.mubr.f32.mxu0 0.0
        %3210 = vmatmul.mubr.f32.gmra.mxu0 %v2721
        %v3211 = vpop.f32.mrf.mxu0
        %v3212 = vadd.f32 0.0, %v3211
        %v3213 = vpop.f32.mrf.mxu0
        %3214 = vmatprep.mubr.f32.mxu0 0.0
        %3215 = vmatmul.mubr.f32.gmra.mxu0 %v2723
        %v3216 = vpop.f32.mrf.mxu0
        %v3217 = vadd.f32 0.0, %v3216
        %v3218 = vpop.f32.mrf.mxu0
        %3219 = vmatprep.mubr.f32.mxu0 0.0
        %3220 = vmatmul.mubr.f32.gmra.mxu0 %v2725
        %v3221 = vpop.f32.mrf.mxu0
        %v3222 = vadd.f32 0.0, %v3221
        %v3223 = vpop.f32.mrf.mxu0
        %3224 = vmatprep.mubr.f32.mxu0 0.0
        %3225 = vmatmul.mubr.f32.gmra.mxu0 %v2727
        %v3226 = vpop.f32.mrf.mxu0
        %v3227 = vadd.f32 0.0, %v3226
        %v3228 = vpop.f32.mrf.mxu0
        %3229 = vmatprep.mubr.f32.mxu0 0.0
        %3230 = vmatmul.mubr.f32.gmra.mxu0 %v2729
        %v3231 = vpop.f32.mrf.mxu0
        %v3232 = vadd.f32 0.0, %v3231
        %v3233 = vpop.f32.mrf.mxu0
        %3234 = vmatprep.mubr.f32.mxu0 0.0
        %3235 = vmatmul.mubr.f32.gmra.mxu0 %v2731
        %v3236 = vpop.f32.mrf.mxu0
        %v3237 = vadd.f32 0.0, %v3236
        %v3238 = vpop.f32.mrf.mxu0
        %3239 = vmatprep.mubr.f32.mxu0 0.0
        %3240 = vmatmul.mubr.f32.gmra.mxu0 %v2733
        %v3241 = vpop.f32.mrf.mxu0
        %v3242 = vadd.f32 0.0, %v3241
        %v3243 = vpop.f32.mrf.mxu0
        %3244 = vmatprep.mubr.f32.mxu0 0.0
        %3245 = vmatmul.mubr.f32.gmra.mxu0 %v2735
        %v3246 = vpop.f32.mrf.mxu0
        %v3247 = vadd.f32 0.0, %v3246
        %v3248 = vpop.f32.mrf.mxu0
        %3249 = vdwg.mxu0
        %v3250 = vmul.f32 %v2963, %v2800
        %v3251 = vmul.f32 %v2968, %v2801
        %v3252 = vmul.f32 %v2973, %v2802
        %v3253 = vmul.f32 %v2978, %v2803
        %v3254 = vmul.f32 %v2983, %v2804
        %v3255 = vmul.f32 %v2988, %v2805
        %v3256 = vmul.f32 %v2993, %v2806
        %v3257 = vmul.f32 %v2998, %v2807
        %v3258 = vmul.f32 %v3003, %v2808
        %v3259 = vmul.f32 %v3008, %v2809
        %v3260 = vmul.f32 %v3013, %v2810
        %v3261 = vmul.f32 %v3018, %v2811
        %v3262 = vmul.f32 %v3023, %v2812
        %v3263 = vmul.f32 %v3028, %v2813
        %v3264 = vmul.f32 %v3033, %v2814
        %v3265 = vmul.f32 %v3038, %v2815
        %v3266 = vmul.f32 %v3172, %v2816
        %v3267 = vmul.f32 %v3177, %v2817
        %v3268 = vmul.f32 %v3182, %v2818
        %v3269 = vmul.f32 %v3187, %v2819
        %v3270 = vmul.f32 %v3192, %v2820
        %v3271 = vmul.f32 %v3197, %v2821
        %v3272 = vmul.f32 %v3202, %v2822
        %v3273 = vmul.f32 %v3207, %v2823
        %v3274 = vmul.f32 %v3212, %v2824
        %v3275 = vmul.f32 %v3217, %v2825
        %v3276 = vmul.f32 %v3222, %v2826
        %v3277 = vmul.f32 %v3227, %v2827
        %v3278 = vmul.f32 %v3232, %v2828
        %v3279 = vmul.f32 %v3237, %v2829
        %v3280 = vmul.f32 %v3242, %v2830
        %v3281 = vmul.f32 %v3247, %v2831
        %3314 = vrot.lane.b32.xlu0 %v3250, 32
        %v3315 = vpop.permute.xlu0 %3314
        %3316 = vrot.lane.b32.xlu0 %v3251, 32
        %v3317 = vpop.permute.xlu0 %3316
        %3318 = vrot.lane.b32.xlu0 %v3252, 32
        %v3319 = vpop.permute.xlu0 %3318
        %3320 = vrot.lane.b32.xlu0 %v3253, 32
        %v3321 = vpop.permute.xlu0 %3320
        %3322 = vrot.lane.b32.xlu0 %v3254, 32
        %v3323 = vpop.permute.xlu0 %3322
        %3324 = vrot.lane.b32.xlu0 %v3255, 32
        %v3325 = vpop.permute.xlu0 %3324
        %3326 = vrot.lane.b32.xlu0 %v3256, 32
        %v3327 = vpop.permute.xlu0 %3326
        %3328 = vrot.lane.b32.xlu0 %v3257, 32
        %v3329 = vpop.permute.xlu0 %3328
        %3330 = vrot.lane.b32.xlu0 %v3258, 32
        %v3331 = vpop.permute.xlu0 %3330
        %3332 = vrot.lane.b32.xlu0 %v3259, 32
        %v3333 = vpop.permute.xlu0 %3332
        %3334 = vrot.lane.b32.xlu0 %v3260, 32
        %v3335 = vpop.permute.xlu0 %3334
        %3336 = vrot.lane.b32.xlu0 %v3261, 32
        %v3337 = vpop.permute.xlu0 %3336
        %3338 = vrot.lane.b32.xlu0 %v3262, 32
        %v3339 = vpop.permute.xlu0 %3338
        %3340 = vrot.lane.b32.xlu0 %v3263, 32
        %v3341 = vpop.permute.xlu0 %3340
        %3342 = vrot.lane.b32.xlu0 %v3264, 32
        %v3343 = vpop.permute.xlu0 %3342
        %3344 = vrot.lane.b32.xlu0 %v3265, 32
        %v3345 = vpop.permute.xlu0 %3344
        %3346 = vrot.lane.b32.xlu0 %v3266, 32
        %v3347 = vpop.permute.xlu0 %3346
        %3348 = vrot.lane.b32.xlu0 %v3267, 32
        %v3349 = vpop.permute.xlu0 %3348
        %3350 = vrot.lane.b32.xlu0 %v3268, 32
        %v3351 = vpop.permute.xlu0 %3350
        %3352 = vrot.lane.b32.xlu0 %v3269, 32
        %v3353 = vpop.permute.xlu0 %3352
        %3354 = vrot.lane.b32.xlu0 %v3270, 32
        %v3355 = vpop.permute.xlu0 %3354
        %3356 = vrot.lane.b32.xlu0 %v3271, 32
        %v3357 = vpop.permute.xlu0 %3356
        %3358 = vrot.lane.b32.xlu0 %v3272, 32
        %v3359 = vpop.permute.xlu0 %3358
        %3360 = vrot.lane.b32.xlu0 %v3273, 32
        %v3361 = vpop.permute.xlu0 %3360
        %3362 = vrot.lane.b32.xlu0 %v3274, 32
        %v3363 = vpop.permute.xlu0 %3362
        %3364 = vrot.lane.b32.xlu0 %v3275, 32
        %v3365 = vpop.permute.xlu0 %3364
        %3366 = vrot.lane.b32.xlu0 %v3276, 32
        %v3367 = vpop.permute.xlu0 %3366
        %3368 = vrot.lane.b32.xlu0 %v3277, 32
        %v3369 = vpop.permute.xlu0 %3368
        %3370 = vrot.lane.b32.xlu0 %v3278, 32
        %v3371 = vpop.permute.xlu0 %3370
        %3372 = vrot.lane.b32.xlu0 %v3279, 32
        %v3373 = vpop.permute.xlu0 %3372
        %3374 = vrot.lane.b32.xlu0 %v3280, 32
        %v3375 = vpop.permute.xlu0 %3374
        %3376 = vrot.lane.b32.xlu0 %v3281, 32
        %v3377 = vpop.permute.xlu0 %3376
        %vm3410 = vcmask 523520
        %3411 = vst.msk [vmem:[#allocation2] sm:$0xff] %vm3410, %v3315
        %3412 = vst.msk [vmem:[#allocation2 + $0x8] sm:$0xff] %vm3410, %v3317
        %3413 = vst.msk [vmem:[#allocation2 + $0x10] sm:$0xff] %vm3410, %v3319
        %3414 = vst.msk [vmem:[#allocation2 + $0x18] sm:$0xff] %vm3410, %v3321
        %3415 = vst.msk [vmem:[#allocation2 + $0x20] sm:$0xff] %vm3410, %v3323
        %3416 = vst.msk [vmem:[#allocation2 + $0x28] sm:$0xff] %vm3410, %v3325
        %3417 = vst.msk [vmem:[#allocation2 + $0x30] sm:$0xff] %vm3410, %v3327
        %3418 = vst.msk [vmem:[#allocation2 + $0x38] sm:$0xff] %vm3410, %v3329
        %3419 = vst.msk [vmem:[#allocation2 + $0x40] sm:$0xff] %vm3410, %v3331
        %3420 = vst.msk [vmem:[#allocation2 + $0x48] sm:$0xff] %vm3410, %v3333
        %3421 = vst.msk [vmem:[#allocation2 + $0x50] sm:$0xff] %vm3410, %v3335
        %3422 = vst.msk [vmem:[#allocation2 + $0x58] sm:$0xff] %vm3410, %v3337
        %3423 = vst.msk [vmem:[#allocation2 + $0x60] sm:$0xff] %vm3410, %v3339
        %3424 = vst.msk [vmem:[#allocation2 + $0x68] sm:$0xff] %vm3410, %v3341
        %3425 = vst.msk [vmem:[#allocation2 + $0x70] sm:$0xff] %vm3410, %v3343
        %3426 = vst.msk [vmem:[#allocation2 + $0x78] sm:$0xff] %vm3410, %v3345
        %3427 = vst.msk [vmem:[#allocation2 + $0x80] sm:$0xff] %vm3410, %v3347
        %3428 = vst.msk [vmem:[#allocation2 + $0x88] sm:$0xff] %vm3410, %v3349
        %3429 = vst.msk [vmem:[#allocation2 + $0x90] sm:$0xff] %vm3410, %v3351
        %3430 = vst.msk [vmem:[#allocation2 + $0x98] sm:$0xff] %vm3410, %v3353
        %3431 = vst.msk [vmem:[#allocation2 + $0xa0] sm:$0xff] %vm3410, %v3355
        %3432 = vst.msk [vmem:[#allocation2 + $0xa8] sm:$0xff] %vm3410, %v3357
        %3433 = vst.msk [vmem:[#allocation2 + $0xb0] sm:$0xff] %vm3410, %v3359
        %3434 = vst.msk [vmem:[#allocation2 + $0xb8] sm:$0xff] %vm3410, %v3361
        %3435 = vst.msk [vmem:[#allocation2 + $0xc0] sm:$0xff] %vm3410, %v3363
        %3436 = vst.msk [vmem:[#allocation2 + $0xc8] sm:$0xff] %vm3410, %v3365
        %3437 = vst.msk [vmem:[#allocation2 + $0xd0] sm:$0xff] %vm3410, %v3367
        %3438 = vst.msk [vmem:[#allocation2 + $0xd8] sm:$0xff] %vm3410, %v3369
        %3439 = vst.msk [vmem:[#allocation2 + $0xe0] sm:$0xff] %vm3410, %v3371
        %3440 = vst.msk [vmem:[#allocation2 + $0xe8] sm:$0xff] %vm3410, %v3373
        %3441 = vst.msk [vmem:[#allocation2 + $0xf0] sm:$0xff] %vm3410, %v3375
        %3442 = vst.msk [vmem:[#allocation2 + $0xf8] sm:$0xff] %vm3410, %v3377
        %3443 = vrot.lane.b32.xlu0 %v854, 64
        %v3444 = vpop.permute.xlu0 %3443
        %3445 = vrot.lane.b32.xlu0 %v855, 64
        %v3446 = vpop.permute.xlu0 %3445
        %3447 = vrot.lane.b32.xlu0 %v856, 64
        %v3448 = vpop.permute.xlu0 %3447
        %3449 = vrot.lane.b32.xlu0 %v857, 64
        %v3450 = vpop.permute.xlu0 %3449
        %3451 = vrot.lane.b32.xlu0 %v858, 64
        %v3452 = vpop.permute.xlu0 %3451
        %3453 = vrot.lane.b32.xlu0 %v859, 64
        %v3454 = vpop.permute.xlu0 %3453
        %3455 = vrot.lane.b32.xlu0 %v860, 64
        %v3456 = vpop.permute.xlu0 %3455
        %3457 = vrot.lane.b32.xlu0 %v861, 64
        %v3458 = vpop.permute.xlu0 %3457
        %3459 = vrot.lane.b32.xlu0 %v862, 64
        %v3460 = vpop.permute.xlu0 %3459
        %3461 = vrot.lane.b32.xlu0 %v863, 64
        %v3462 = vpop.permute.xlu0 %3461
        %3463 = vrot.lane.b32.xlu0 %v864, 64
        %v3464 = vpop.permute.xlu0 %3463
        %3465 = vrot.lane.b32.xlu0 %v865, 64
        %v3466 = vpop.permute.xlu0 %3465
        %3467 = vrot.lane.b32.xlu0 %v866, 64
        %v3468 = vpop.permute.xlu0 %3467
        %3469 = vrot.lane.b32.xlu0 %v867, 64
        %v3470 = vpop.permute.xlu0 %3469
        %3471 = vrot.lane.b32.xlu0 %v868, 64
        %v3472 = vpop.permute.xlu0 %3471
        %3473 = vrot.lane.b32.xlu0 %v869, 64
        %v3474 = vpop.permute.xlu0 %3473
        %3475 = vrot.lane.b32.xlu0 %v441, 64
        %v3476 = vpop.permute.xlu0 %3475
        %3477 = vrot.lane.b32.xlu0 %v447, 64
        %v3478 = vpop.permute.xlu0 %3477
        %3479 = vrot.lane.b32.xlu0 %v453, 64
        %v3480 = vpop.permute.xlu0 %3479
        %3481 = vrot.lane.b32.xlu0 %v459, 64
        %v3482 = vpop.permute.xlu0 %3481
        %3483 = vrot.lane.b32.xlu0 %v465, 64
        %v3484 = vpop.permute.xlu0 %3483
        %3485 = vrot.lane.b32.xlu0 %v471, 64
        %v3486 = vpop.permute.xlu0 %3485
        %3487 = vrot.lane.b32.xlu0 %v477, 64
        %v3488 = vpop.permute.xlu0 %3487
        %3489 = vrot.lane.b32.xlu0 %v483, 64
        %v3490 = vpop.permute.xlu0 %3489
        %3491 = vrot.lane.b32.xlu0 %v489, 64
        %v3492 = vpop.permute.xlu0 %3491
        %3493 = vrot.lane.b32.xlu0 %v495, 64
        %v3494 = vpop.permute.xlu0 %3493
        %3495 = vrot.lane.b32.xlu0 %v501, 64
        %v3496 = vpop.permute.xlu0 %3495
        %3497 = vrot.lane.b32.xlu0 %v507, 64
        %v3498 = vpop.permute.xlu0 %3497
        %3499 = vrot.lane.b32.xlu0 %v513, 64
        %v3500 = vpop.permute.xlu0 %3499
        %3501 = vrot.lane.b32.xlu0 %v519, 64
        %v3502 = vpop.permute.xlu0 %3501
        %3503 = vrot.lane.b32.xlu0 %v525, 64
        %v3504 = vpop.permute.xlu0 %3503
        %3505 = vrot.lane.b32.xlu0 %v531, 64
        %v3506 = vpop.permute.xlu0 %3505
        %v3507 = vsel %vm937, %v3444, 0
        %v3509 = vsel %vm937, %v3446, 0
        %v3511 = vsel %vm937, %v3448, 0
        %v3513 = vsel %vm937, %v3450, 0
        %v3515 = vsel %vm937, %v3452, 0
        %v3517 = vsel %vm937, %v3454, 0
        %v3519 = vsel %vm937, %v3456, 0
        %v3521 = vsel %vm937, %v3458, 0
        %v3523 = vsel %vm937, %v3460, 0
        %v3525 = vsel %vm937, %v3462, 0
        %v3527 = vsel %vm937, %v3464, 0
        %v3529 = vsel %vm937, %v3466, 0
        %v3531 = vsel %vm937, %v3468, 0
        %v3533 = vsel %vm937, %v3470, 0
        %v3535 = vsel %vm937, %v3472, 0
        %v3537 = vsel %vm937, %v3474, 0
        %v3539 = vsel %vm937, %v3476, 0
        %v3541 = vsel %vm937, %v3478, 0
        %v3543 = vsel %vm937, %v3480, 0
        %v3545 = vsel %vm937, %v3482, 0
        %v3547 = vsel %vm937, %v3484, 0
        %v3549 = vsel %vm937, %v3486, 0
        %v3551 = vsel %vm937, %v3488, 0
        %v3553 = vsel %vm937, %v3490, 0
        %v3555 = vsel %vm937, %v3492, 0
        %v3557 = vsel %vm937, %v3494, 0
        %v3559 = vsel %vm937, %v3496, 0
        %v3561 = vsel %vm937, %v3498, 0
        %v3563 = vsel %vm937, %v3500, 0
        %v3565 = vsel %vm937, %v3502, 0
        %v3567 = vsel %vm937, %v3504, 0
        %v3569 = vsel %vm937, %v3506, 0
        %3571 = vmatprep.subr.mxu0 0.0
        %3572 = vmatpush1.xpose.msra.mxu0 %v3569
        %3573 = vmatprep.subr.mxu0 0.0
        %3574 = vmatpush1.xpose.msra.mxu0 %v3567
        %3575 = vmatprep.subr.mxu0 0.0
        %3576 = vmatpush1.xpose.msra.mxu0 %v3565
        %3577 = vmatprep.subr.mxu0 0.0
        %3578 = vmatpush1.xpose.msra.mxu0 %v3563
        %3579 = vmatprep.subr.mxu0 0.0
        %3580 = vmatpush1.xpose.msra.mxu0 %v3561
        %3581 = vmatprep.subr.mxu0 0.0
        %3582 = vmatpush1.xpose.msra.mxu0 %v3559
        %3583 = vmatprep.subr.mxu0 0.0
        %3584 = vmatpush1.xpose.msra.mxu0 %v3557
        %3585 = vmatprep.subr.mxu0 0.0
        %3586 = vmatpush1.xpose.msra.mxu0 %v3555
        %3587 = vmatprep.subr.mxu0 0.0
        %3588 = vmatpush1.xpose.msra.mxu0 %v3553
        %3589 = vmatprep.subr.mxu0 0.0
        %3590 = vmatpush1.xpose.msra.mxu0 %v3551
        %3591 = vmatprep.subr.mxu0 0.0
        %3592 = vmatpush1.xpose.msra.mxu0 %v3549
        %3593 = vmatprep.subr.mxu0 0.0
        %3594 = vmatpush1.xpose.msra.mxu0 %v3547
        %3595 = vmatprep.subr.mxu0 0.0
        %3596 = vmatpush1.xpose.msra.mxu0 %v3545
        %3597 = vmatprep.subr.mxu0 0.0
        %3598 = vmatpush1.xpose.msra.mxu0 %v3543
        %3599 = vmatprep.subr.mxu0 0.0
        %3600 = vmatpush1.xpose.msra.mxu0 %v3541
        %3601 = vmatprep.subr.mxu0 0.0
        %3602 = vmatpush1.xpose.msra.mxu0 %v3539
        %3603 = vmatprep.subr.mxu0 0.0
        %3604 = vmatpush2.xpose.msra.mxu0 0.0
        %3605 = vmatprep.subr.mxu0 0.0
        %3606 = vmatpush2.xpose.msra.mxu0 0.0
        %3607 = vmatprep.subr.mxu0 0.0
        %3608 = vmatpush2.xpose.msra.mxu0 0.0
        %3609 = vmatprep.subr.mxu0 0.0
        %3610 = vmatpush2.xpose.msra.mxu0 0.0
        %3611 = vmatprep.subr.mxu0 0.0
        %3612 = vmatpush2.xpose.msra.mxu0 0.0
        %3613 = vmatprep.subr.mxu0 0.0
        %3614 = vmatpush2.xpose.msra.mxu0 0.0
        %3615 = vmatprep.subr.mxu0 0.0
        %3616 = vmatpush2.xpose.msra.mxu0 0.0
        %3617 = vmatprep.subr.mxu0 0.0
        %3618 = vmatpush2.xpose.msra.mxu0 0.0
        %3619 = vmatprep.subr.mxu0 0.0
        %3620 = vmatpush2.xpose.msra.mxu0 0.0
        %3621 = vmatprep.subr.mxu0 0.0
        %3622 = vmatpush2.xpose.msra.mxu0 0.0
        %3623 = vmatprep.subr.mxu0 0.0
        %3624 = vmatpush2.xpose.msra.mxu0 0.0
        %3625 = vmatprep.subr.mxu0 0.0
        %3626 = vmatpush2.xpose.msra.mxu0 0.0
        %3627 = vmatprep.subr.mxu0 0.0
        %3628 = vmatpush2.xpose.msra.mxu0 0.0
        %3629 = vmatprep.subr.mxu0 0.0
        %3630 = vmatpush2.xpose.msra.mxu0 0.0
        %3631 = vmatprep.subr.mxu0 0.0
        %3632 = vmatpush2.xpose.msra.mxu0 0.0
        %3633 = vmatprep.subr.mxu0 0.0
        %3634 = vmatpush2.xpose.msra.mxu0 0.0
        %3635 = vmatprep.mubr.f32.mxu0 0.0
        %3636 = vmatmul.mubr.f32.gmra.mxu0 %v3507
        %v3637 = vpop.f32.mrf.mxu0
        %v3638 = vadd.f32 %v921, %v3637
        %v3639 = vpop.f32.mrf.mxu0
        %3640 = vmatprep.mubr.f32.mxu0 0.0
        %3641 = vmatmul.mubr.f32.gmra.mxu0 %v3509
        %v3642 = vpop.f32.mrf.mxu0
        %v3643 = vadd.f32 %v922, %v3642
        %v3644 = vpop.f32.mrf.mxu0
        %3645 = vmatprep.mubr.f32.mxu0 0.0
        %3646 = vmatmul.mubr.f32.gmra.mxu0 %v3511
        %v3647 = vpop.f32.mrf.mxu0
        %v3648 = vadd.f32 %v923, %v3647
        %v3649 = vpop.f32.mrf.mxu0
        %3650 = vmatprep.mubr.f32.mxu0 0.0
        %3651 = vmatmul.mubr.f32.gmra.mxu0 %v3513
        %v3652 = vpop.f32.mrf.mxu0
        %v3653 = vadd.f32 %v924, %v3652
        %v3654 = vpop.f32.mrf.mxu0
        %3655 = vmatprep.mubr.f32.mxu0 0.0
        %3656 = vmatmul.mubr.f32.gmra.mxu0 %v3515
        %v3657 = vpop.f32.mrf.mxu0
        %v3658 = vadd.f32 %v925, %v3657
        %v3659 = vpop.f32.mrf.mxu0
        %3660 = vmatprep.mubr.f32.mxu0 0.0
        %3661 = vmatmul.mubr.f32.gmra.mxu0 %v3517
        %v3662 = vpop.f32.mrf.mxu0
        %v3663 = vadd.f32 %v926, %v3662
        %v3664 = vpop.f32.mrf.mxu0
        %3665 = vmatprep.mubr.f32.mxu0 0.0
        %3666 = vmatmul.mubr.f32.gmra.mxu0 %v3519
        %v3667 = vpop.f32.mrf.mxu0
        %v3668 = vadd.f32 %v927, %v3667
        %v3669 = vpop.f32.mrf.mxu0
        %3670 = vmatprep.mubr.f32.mxu0 0.0
        %3671 = vmatmul.mubr.f32.gmra.mxu0 %v3521
        %v3672 = vpop.f32.mrf.mxu0
        %v3673 = vadd.f32 %v928, %v3672
        %v3674 = vpop.f32.mrf.mxu0
        %3675 = vmatprep.mubr.f32.mxu0 0.0
        %3676 = vmatmul.mubr.f32.gmra.mxu0 %v3523
        %v3677 = vpop.f32.mrf.mxu0
        %v3678 = vadd.f32 %v929, %v3677
        %v3679 = vpop.f32.mrf.mxu0
        %3680 = vmatprep.mubr.f32.mxu0 0.0
        %3681 = vmatmul.mubr.f32.gmra.mxu0 %v3525
        %v3682 = vpop.f32.mrf.mxu0
        %v3683 = vadd.f32 %v930, %v3682
        %v3684 = vpop.f32.mrf.mxu0
        %3685 = vmatprep.mubr.f32.mxu0 0.0
        %3686 = vmatmul.mubr.f32.gmra.mxu0 %v3527
        %v3687 = vpop.f32.mrf.mxu0
        %v3688 = vadd.f32 %v931, %v3687
        %v3689 = vpop.f32.mrf.mxu0
        %3690 = vmatprep.mubr.f32.mxu0 0.0
        %3691 = vmatmul.mubr.f32.gmra.mxu0 %v3529
        %v3692 = vpop.f32.mrf.mxu0
        %v3693 = vadd.f32 %v932, %v3692
        %v3694 = vpop.f32.mrf.mxu0
        %3695 = vmatprep.mubr.f32.mxu0 0.0
        %3696 = vmatmul.mubr.f32.gmra.mxu0 %v3531
        %v3697 = vpop.f32.mrf.mxu0
        %v3698 = vadd.f32 %v933, %v3697
        %v3699 = vpop.f32.mrf.mxu0
        %3700 = vmatprep.mubr.f32.mxu0 0.0
        %3701 = vmatmul.mubr.f32.gmra.mxu0 %v3533
        %v3702 = vpop.f32.mrf.mxu0
        %v3703 = vadd.f32 %v934, %v3702
        %v3704 = vpop.f32.mrf.mxu0
        %3705 = vmatprep.mubr.f32.mxu0 0.0
        %3706 = vmatmul.mubr.f32.gmra.mxu0 %v3535
        %v3707 = vpop.f32.mrf.mxu0
        %v3708 = vadd.f32 %v935, %v3707
        %v3709 = vpop.f32.mrf.mxu0
        %3710 = vmatprep.mubr.f32.mxu0 0.0
        %3711 = vmatmul.mubr.f32.gmra.mxu0 %v3537
        %v3712 = vpop.f32.mrf.mxu0
        %v3713 = vadd.f32 %v936, %v3712
        %v3714 = vpop.f32.mrf.mxu0
        %3715 = vdwg.mxu0
        %3716 = vrot.lane.b32.xlu0 %v870, 64
        %v3717 = vpop.permute.xlu0 %3716
        %3718 = vrot.lane.b32.xlu0 %v871, 64
        %v3719 = vpop.permute.xlu0 %3718
        %3720 = vrot.lane.b32.xlu0 %v872, 64
        %v3721 = vpop.permute.xlu0 %3720
        %3722 = vrot.lane.b32.xlu0 %v873, 64
        %v3723 = vpop.permute.xlu0 %3722
        %3724 = vrot.lane.b32.xlu0 %v874, 64
        %v3725 = vpop.permute.xlu0 %3724
        %3726 = vrot.lane.b32.xlu0 %v875, 64
        %v3727 = vpop.permute.xlu0 %3726
        %3728 = vrot.lane.b32.xlu0 %v876, 64
        %v3729 = vpop.permute.xlu0 %3728
        %3730 = vrot.lane.b32.xlu0 %v877, 64
        %v3731 = vpop.permute.xlu0 %3730
        %3732 = vrot.lane.b32.xlu0 %v878, 64
        %v3733 = vpop.permute.xlu0 %3732
        %3734 = vrot.lane.b32.xlu0 %v879, 64
        %v3735 = vpop.permute.xlu0 %3734
        %3736 = vrot.lane.b32.xlu0 %v880, 64
        %v3737 = vpop.permute.xlu0 %3736
        %3738 = vrot.lane.b32.xlu0 %v881, 64
        %v3739 = vpop.permute.xlu0 %3738
        %3740 = vrot.lane.b32.xlu0 %v882, 64
        %v3741 = vpop.permute.xlu0 %3740
        %3742 = vrot.lane.b32.xlu0 %v883, 64
        %v3743 = vpop.permute.xlu0 %3742
        %3744 = vrot.lane.b32.xlu0 %v884, 64
        %v3745 = vpop.permute.xlu0 %3744
        %3746 = vrot.lane.b32.xlu0 %v885, 64
        %v3747 = vpop.permute.xlu0 %3746
        %3748 = vrot.lane.b32.xlu0 %v537, 64
        %v3749 = vpop.permute.xlu0 %3748
        %3750 = vrot.lane.b32.xlu0 %v543, 64
        %v3751 = vpop.permute.xlu0 %3750
        %3752 = vrot.lane.b32.xlu0 %v549, 64
        %v3753 = vpop.permute.xlu0 %3752
        %3754 = vrot.lane.b32.xlu0 %v555, 64
        %v3755 = vpop.permute.xlu0 %3754
        %3756 = vrot.lane.b32.xlu0 %v561, 64
        %v3757 = vpop.permute.xlu0 %3756
        %3758 = vrot.lane.b32.xlu0 %v567, 64
        %v3759 = vpop.permute.xlu0 %3758
        %3760 = vrot.lane.b32.xlu0 %v573, 64
        %v3761 = vpop.permute.xlu0 %3760
        %3762 = vrot.lane.b32.xlu0 %v579, 64
        %v3763 = vpop.permute.xlu0 %3762
        %3764 = vrot.lane.b32.xlu0 %v585, 64
        %v3765 = vpop.permute.xlu0 %3764
        %3766 = vrot.lane.b32.xlu0 %v591, 64
        %v3767 = vpop.permute.xlu0 %3766
        %3768 = vrot.lane.b32.xlu0 %v597, 64
        %v3769 = vpop.permute.xlu0 %3768
        %3770 = vrot.lane.b32.xlu0 %v603, 64
        %v3771 = vpop.permute.xlu0 %3770
        %3772 = vrot.lane.b32.xlu0 %v609, 64
        %v3773 = vpop.permute.xlu0 %3772
        %3774 = vrot.lane.b32.xlu0 %v615, 64
        %v3775 = vpop.permute.xlu0 %3774
        %3776 = vrot.lane.b32.xlu0 %v621, 64
        %v3777 = vpop.permute.xlu0 %3776
        %3778 = vrot.lane.b32.xlu0 %v627, 64
        %v3779 = vpop.permute.xlu0 %3778
        %v3780 = vsel %vm937, %v3717, 0
        %v3782 = vsel %vm937, %v3719, 0
        %v3784 = vsel %vm937, %v3721, 0
        %v3786 = vsel %vm937, %v3723, 0
        %v3788 = vsel %vm937, %v3725, 0
        %v3790 = vsel %vm937, %v3727, 0
        %v3792 = vsel %vm937, %v3729, 0
        %v3794 = vsel %vm937, %v3731, 0
        %v3796 = vsel %vm937, %v3733, 0
        %v3798 = vsel %vm937, %v3735, 0
        %v3800 = vsel %vm937, %v3737, 0
        %v3802 = vsel %vm937, %v3739, 0
        %v3804 = vsel %vm937, %v3741, 0
        %v3806 = vsel %vm937, %v3743, 0
        %v3808 = vsel %vm937, %v3745, 0
        %v3810 = vsel %vm937, %v3747, 0
        %v3812 = vsel %vm937, %v3749, 0
        %v3814 = vsel %vm937, %v3751, 0
        %v3816 = vsel %vm937, %v3753, 0
        %v3818 = vsel %vm937, %v3755, 0
        %v3820 = vsel %vm937, %v3757, 0
        %v3822 = vsel %vm937, %v3759, 0
        %v3824 = vsel %vm937, %v3761, 0
        %v3826 = vsel %vm937, %v3763, 0
        %v3828 = vsel %vm937, %v3765, 0
        %v3830 = vsel %vm937, %v3767, 0
        %v3832 = vsel %vm937, %v3769, 0
        %v3834 = vsel %vm937, %v3771, 0
        %v3836 = vsel %vm937, %v3773, 0
        %v3838 = vsel %vm937, %v3775, 0
        %v3840 = vsel %vm937, %v3777, 0
        %v3842 = vsel %vm937, %v3779, 0
        %3844 = vmatprep.subr.mxu0 0.0
        %3845 = vmatpush1.xpose.msra.mxu0 %v3842
        %3846 = vmatprep.subr.mxu0 0.0
        %3847 = vmatpush1.xpose.msra.mxu0 %v3840
        %3848 = vmatprep.subr.mxu0 0.0
        %3849 = vmatpush1.xpose.msra.mxu0 %v3838
        %3850 = vmatprep.subr.mxu0 0.0
        %3851 = vmatpush1.xpose.msra.mxu0 %v3836
        %3852 = vmatprep.subr.mxu0 0.0
        %3853 = vmatpush1.xpose.msra.mxu0 %v3834
        %3854 = vmatprep.subr.mxu0 0.0
        %3855 = vmatpush1.xpose.msra.mxu0 %v3832
        %3856 = vmatprep.subr.mxu0 0.0
        %3857 = vmatpush1.xpose.msra.mxu0 %v3830
        %3858 = vmatprep.subr.mxu0 0.0
        %3859 = vmatpush1.xpose.msra.mxu0 %v3828
        %3860 = vmatprep.subr.mxu0 0.0
        %3861 = vmatpush1.xpose.msra.mxu0 %v3826
        %3862 = vmatprep.subr.mxu0 0.0
        %3863 = vmatpush1.xpose.msra.mxu0 %v3824
        %3864 = vmatprep.subr.mxu0 0.0
        %3865 = vmatpush1.xpose.msra.mxu0 %v3822
        %3866 = vmatprep.subr.mxu0 0.0
        %3867 = vmatpush1.xpose.msra.mxu0 %v3820
        %3868 = vmatprep.subr.mxu0 0.0
        %3869 = vmatpush1.xpose.msra.mxu0 %v3818
        %3870 = vmatprep.subr.mxu0 0.0
        %3871 = vmatpush1.xpose.msra.mxu0 %v3816
        %3872 = vmatprep.subr.mxu0 0.0
        %3873 = vmatpush1.xpose.msra.mxu0 %v3814
        %3874 = vmatprep.subr.mxu0 0.0
        %3875 = vmatpush1.xpose.msra.mxu0 %v3812
        %3876 = vmatprep.subr.mxu0 0.0
        %3877 = vmatpush2.xpose.msra.mxu0 0.0
        %3878 = vmatprep.subr.mxu0 0.0
        %3879 = vmatpush2.xpose.msra.mxu0 0.0
        %3880 = vmatprep.subr.mxu0 0.0
        %3881 = vmatpush2.xpose.msra.mxu0 0.0
        %3882 = vmatprep.subr.mxu0 0.0
        %3883 = vmatpush2.xpose.msra.mxu0 0.0
        %3884 = vmatprep.subr.mxu0 0.0
        %3885 = vmatpush2.xpose.msra.mxu0 0.0
        %3886 = vmatprep.subr.mxu0 0.0
        %3887 = vmatpush2.xpose.msra.mxu0 0.0
        %3888 = vmatprep.subr.mxu0 0.0
        %3889 = vmatpush2.xpose.msra.mxu0 0.0
        %3890 = vmatprep.subr.mxu0 0.0
        %3891 = vmatpush2.xpose.msra.mxu0 0.0
        %3892 = vmatprep.subr.mxu0 0.0
        %3893 = vmatpush2.xpose.msra.mxu0 0.0
        %3894 = vmatprep.subr.mxu0 0.0
        %3895 = vmatpush2.xpose.msra.mxu0 0.0
        %3896 = vmatprep.subr.mxu0 0.0
        %3897 = vmatpush2.xpose.msra.mxu0 0.0
        %3898 = vmatprep.subr.mxu0 0.0
        %3899 = vmatpush2.xpose.msra.mxu0 0.0
        %3900 = vmatprep.subr.mxu0 0.0
        %3901 = vmatpush2.xpose.msra.mxu0 0.0
        %3902 = vmatprep.subr.mxu0 0.0
        %3903 = vmatpush2.xpose.msra.mxu0 0.0
        %3904 = vmatprep.subr.mxu0 0.0
        %3905 = vmatpush2.xpose.msra.mxu0 0.0
        %3906 = vmatprep.subr.mxu0 0.0
        %3907 = vmatpush2.xpose.msra.mxu0 0.0
        %3908 = vmatprep.mubr.f32.mxu0 0.0
        %3909 = vmatmul.mubr.f32.gmra.mxu0 %v3780
        %v3910 = vpop.f32.mrf.mxu0
        %v3911 = vadd.f32 %v921, %v3910
        %v3912 = vpop.f32.mrf.mxu0
        %3913 = vmatprep.mubr.f32.mxu0 0.0
        %3914 = vmatmul.mubr.f32.gmra.mxu0 %v3782
        %v3915 = vpop.f32.mrf.mxu0
        %v3916 = vadd.f32 %v922, %v3915
        %v3917 = vpop.f32.mrf.mxu0
        %3918 = vmatprep.mubr.f32.mxu0 0.0
        %3919 = vmatmul.mubr.f32.gmra.mxu0 %v3784
        %v3920 = vpop.f32.mrf.mxu0
        %v3921 = vadd.f32 %v923, %v3920
        %v3922 = vpop.f32.mrf.mxu0
        %3923 = vmatprep.mubr.f32.mxu0 0.0
        %3924 = vmatmul.mubr.f32.gmra.mxu0 %v3786
        %v3925 = vpop.f32.mrf.mxu0
        %v3926 = vadd.f32 %v924, %v3925
        %v3927 = vpop.f32.mrf.mxu0
        %3928 = vmatprep.mubr.f32.mxu0 0.0
        %3929 = vmatmul.mubr.f32.gmra.mxu0 %v3788
        %v3930 = vpop.f32.mrf.mxu0
        %v3931 = vadd.f32 %v925, %v3930
        %v3932 = vpop.f32.mrf.mxu0
        %3933 = vmatprep.mubr.f32.mxu0 0.0
        %3934 = vmatmul.mubr.f32.gmra.mxu0 %v3790
        %v3935 = vpop.f32.mrf.mxu0
        %v3936 = vadd.f32 %v926, %v3935
        %v3937 = vpop.f32.mrf.mxu0
        %3938 = vmatprep.mubr.f32.mxu0 0.0
        %3939 = vmatmul.mubr.f32.gmra.mxu0 %v3792
        %v3940 = vpop.f32.mrf.mxu0
        %v3941 = vadd.f32 %v927, %v3940
        %v3942 = vpop.f32.mrf.mxu0
        %3943 = vmatprep.mubr.f32.mxu0 0.0
        %3944 = vmatmul.mubr.f32.gmra.mxu0 %v3794
        %v3945 = vpop.f32.mrf.mxu0
        %v3946 = vadd.f32 %v928, %v3945
        %v3947 = vpop.f32.mrf.mxu0
        %3948 = vmatprep.mubr.f32.mxu0 0.0
        %3949 = vmatmul.mubr.f32.gmra.mxu0 %v3796
        %v3950 = vpop.f32.mrf.mxu0
        %v3951 = vadd.f32 %v929, %v3950
        %v3952 = vpop.f32.mrf.mxu0
        %3953 = vmatprep.mubr.f32.mxu0 0.0
        %3954 = vmatmul.mubr.f32.gmra.mxu0 %v3798
        %v3955 = vpop.f32.mrf.mxu0
        %v3956 = vadd.f32 %v930, %v3955
        %v3957 = vpop.f32.mrf.mxu0
        %3958 = vmatprep.mubr.f32.mxu0 0.0
        %3959 = vmatmul.mubr.f32.gmra.mxu0 %v3800
        %v3960 = vpop.f32.mrf.mxu0
        %v3961 = vadd.f32 %v931, %v3960
        %v3962 = vpop.f32.mrf.mxu0
        %3963 = vmatprep.mubr.f32.mxu0 0.0
        %3964 = vmatmul.mubr.f32.gmra.mxu0 %v3802
        %v3965 = vpop.f32.mrf.mxu0
        %v3966 = vadd.f32 %v932, %v3965
        %v3967 = vpop.f32.mrf.mxu0
        %3968 = vmatprep.mubr.f32.mxu0 0.0
        %3969 = vmatmul.mubr.f32.gmra.mxu0 %v3804
        %v3970 = vpop.f32.mrf.mxu0
        %v3971 = vadd.f32 %v933, %v3970
        %v3972 = vpop.f32.mrf.mxu0
        %3973 = vmatprep.mubr.f32.mxu0 0.0
        %3974 = vmatmul.mubr.f32.gmra.mxu0 %v3806
        %v3975 = vpop.f32.mrf.mxu0
        %v3976 = vadd.f32 %v934, %v3975
        %v3977 = vpop.f32.mrf.mxu0
        %3978 = vmatprep.mubr.f32.mxu0 0.0
        %3979 = vmatmul.mubr.f32.gmra.mxu0 %v3808
        %v3980 = vpop.f32.mrf.mxu0
        %v3981 = vadd.f32 %v935, %v3980
        %v3982 = vpop.f32.mrf.mxu0
        %3983 = vmatprep.mubr.f32.mxu0 0.0
        %3984 = vmatmul.mubr.f32.gmra.mxu0 %v3810
        %v3985 = vpop.f32.mrf.mxu0
        %v3986 = vadd.f32 %v936, %v3985
        %v3987 = vpop.f32.mrf.mxu0
        %3988 = vdwg.mxu0
        %3989 = vmax.xlane.f32.xlu0 %v3638
        %v3990 = vpop.xlane.xlu0 %3989
        %3991 = vmax.xlane.f32.xlu0 %v3643
        %v3992 = vpop.xlane.xlu0 %3991
        %3993 = vmax.xlane.f32.xlu0 %v3648
        %v3994 = vpop.xlane.xlu0 %3993
        %3995 = vmax.xlane.f32.xlu0 %v3653
        %v3996 = vpop.xlane.xlu0 %3995
        %3997 = vmax.xlane.f32.xlu0 %v3658
        %v3998 = vpop.xlane.xlu0 %3997
        %3999 = vmax.xlane.f32.xlu0 %v3663
        %v4000 = vpop.xlane.xlu0 %3999
        %4001 = vmax.xlane.f32.xlu0 %v3668
        %v4002 = vpop.xlane.xlu0 %4001
        %4003 = vmax.xlane.f32.xlu0 %v3673
        %v4004 = vpop.xlane.xlu0 %4003
        %4005 = vmax.xlane.f32.xlu0 %v3678
        %v4006 = vpop.xlane.xlu0 %4005
        %4007 = vmax.xlane.f32.xlu0 %v3683
        %v4008 = vpop.xlane.xlu0 %4007
        %4009 = vmax.xlane.f32.xlu0 %v3688
        %v4010 = vpop.xlane.xlu0 %4009
        %4011 = vmax.xlane.f32.xlu0 %v3693
        %v4012 = vpop.xlane.xlu0 %4011
        %4013 = vmax.xlane.f32.xlu0 %v3698
        %v4014 = vpop.xlane.xlu0 %4013
        %4015 = vmax.xlane.f32.xlu0 %v3703
        %v4016 = vpop.xlane.xlu0 %4015
        %4017 = vmax.xlane.f32.xlu0 %v3708
        %v4018 = vpop.xlane.xlu0 %4017
        %4019 = vmax.xlane.f32.xlu0 %v3713
        %v4020 = vpop.xlane.xlu0 %4019
        %4021 = vmax.xlane.f32.xlu0 %v3911
        %v4022 = vpop.xlane.xlu0 %4021
        %4023 = vmax.xlane.f32.xlu0 %v3916
        %v4024 = vpop.xlane.xlu0 %4023
        %4025 = vmax.xlane.f32.xlu0 %v3921
        %v4026 = vpop.xlane.xlu0 %4025
        %4027 = vmax.xlane.f32.xlu0 %v3926
        %v4028 = vpop.xlane.xlu0 %4027
        %4029 = vmax.xlane.f32.xlu0 %v3931
        %v4030 = vpop.xlane.xlu0 %4029
        %4031 = vmax.xlane.f32.xlu0 %v3936
        %v4032 = vpop.xlane.xlu0 %4031
        %4033 = vmax.xlane.f32.xlu0 %v3941
        %v4034 = vpop.xlane.xlu0 %4033
        %4035 = vmax.xlane.f32.xlu0 %v3946
        %v4036 = vpop.xlane.xlu0 %4035
        %4037 = vmax.xlane.f32.xlu0 %v3951
        %v4038 = vpop.xlane.xlu0 %4037
        %4039 = vmax.xlane.f32.xlu0 %v3956
        %v4040 = vpop.xlane.xlu0 %4039
        %4041 = vmax.xlane.f32.xlu0 %v3961
        %v4042 = vpop.xlane.xlu0 %4041
        %4043 = vmax.xlane.f32.xlu0 %v3966
        %v4044 = vpop.xlane.xlu0 %4043
        %4045 = vmax.xlane.f32.xlu0 %v3971
        %v4046 = vpop.xlane.xlu0 %4045
        %4047 = vmax.xlane.f32.xlu0 %v3976
        %v4048 = vpop.xlane.xlu0 %4047
        %4049 = vmax.xlane.f32.xlu0 %v3981
        %v4050 = vpop.xlane.xlu0 %4049
        %4051 = vmax.xlane.f32.xlu0 %v3986
        %v4052 = vpop.xlane.xlu0 %4051
        %v4053 = vsub.f32 %v3638, %v3990
        %v4054 = vsub.f32 %v3643, %v3992
        %v4055 = vsub.f32 %v3648, %v3994
        %v4056 = vsub.f32 %v3653, %v3996
        %v4057 = vsub.f32 %v3658, %v3998
        %v4058 = vsub.f32 %v3663, %v4000
        %v4059 = vsub.f32 %v3668, %v4002
        %v4060 = vsub.f32 %v3673, %v4004
        %v4061 = vsub.f32 %v3678, %v4006
        %v4062 = vsub.f32 %v3683, %v4008
        %v4063 = vsub.f32 %v3688, %v4010
        %v4064 = vsub.f32 %v3693, %v4012
        %v4065 = vsub.f32 %v3698, %v4014
        %v4066 = vsub.f32 %v3703, %v4016
        %v4067 = vsub.f32 %v3708, %v4018
        %v4068 = vsub.f32 %v3713, %v4020
        %v4069 = vsub.f32 %v3911, %v4022
        %v4070 = vsub.f32 %v3916, %v4024
        %v4071 = vsub.f32 %v3921, %v4026
        %v4072 = vsub.f32 %v3926, %v4028
        %v4073 = vsub.f32 %v3931, %v4030
        %v4074 = vsub.f32 %v3936, %v4032
        %v4075 = vsub.f32 %v3941, %v4034
        %v4076 = vsub.f32 %v3946, %v4036
        %v4077 = vsub.f32 %v3951, %v4038
        %v4078 = vsub.f32 %v3956, %v4040
        %v4079 = vsub.f32 %v3961, %v4042
        %v4080 = vsub.f32 %v3966, %v4044
        %v4081 = vsub.f32 %v3971, %v4046
        %v4082 = vsub.f32 %v3976, %v4048
        %v4083 = vsub.f32 %v3981, %v4050
        %v4084 = vsub.f32 %v3986, %v4052
        %v4085 = vmul.f32 %v4053, 1.442695
        %v4086 = vpow.pop %v4085
        %v4087 = vmul.f32 %v4054, 1.442695
        %v4088 = vpow.pop %v4087
        %v4089 = vmul.f32 %v4055, 1.442695
        %v4090 = vpow.pop %v4089
        %v4091 = vmul.f32 %v4056, 1.442695
        %v4092 = vpow.pop %v4091
        %v4093 = vmul.f32 %v4057, 1.442695
        %v4094 = vpow.pop %v4093
        %v4095 = vmul.f32 %v4058, 1.442695
        %v4096 = vpow.pop %v4095
        %v4097 = vmul.f32 %v4059, 1.442695
        %v4098 = vpow.pop %v4097
        %v4099 = vmul.f32 %v4060, 1.442695
        %v4100 = vpow.pop %v4099
        %v4101 = vmul.f32 %v4061, 1.442695
        %v4102 = vpow.pop %v4101
        %v4103 = vmul.f32 %v4062, 1.442695
        %v4104 = vpow.pop %v4103
        %v4105 = vmul.f32 %v4063, 1.442695
        %v4106 = vpow.pop %v4105
        %v4107 = vmul.f32 %v4064, 1.442695
        %v4108 = vpow.pop %v4107
        %v4109 = vmul.f32 %v4065, 1.442695
        %v4110 = vpow.pop %v4109
        %v4111 = vmul.f32 %v4066, 1.442695
        %v4112 = vpow.pop %v4111
        %v4113 = vmul.f32 %v4067, 1.442695
        %v4114 = vpow.pop %v4113
        %v4115 = vmul.f32 %v4068, 1.442695
        %v4116 = vpow.pop %v4115
        %v4117 = vmul.f32 %v4069, 1.442695
        %v4118 = vpow.pop %v4117
        %v4119 = vmul.f32 %v4070, 1.442695
        %v4120 = vpow.pop %v4119
        %v4121 = vmul.f32 %v4071, 1.442695
        %v4122 = vpow.pop %v4121
        %v4123 = vmul.f32 %v4072, 1.442695
        %v4124 = vpow.pop %v4123
        %v4125 = vmul.f32 %v4073, 1.442695
        %v4126 = vpow.pop %v4125
        %v4127 = vmul.f32 %v4074, 1.442695
        %v4128 = vpow.pop %v4127
        %v4129 = vmul.f32 %v4075, 1.442695
        %v4130 = vpow.pop %v4129
        %v4131 = vmul.f32 %v4076, 1.442695
        %v4132 = vpow.pop %v4131
        %v4133 = vmul.f32 %v4077, 1.442695
        %v4134 = vpow.pop %v4133
        %v4135 = vmul.f32 %v4078, 1.442695
        %v4136 = vpow.pop %v4135
        %v4137 = vmul.f32 %v4079, 1.442695
        %v4138 = vpow.pop %v4137
        %v4139 = vmul.f32 %v4080, 1.442695
        %v4140 = vpow.pop %v4139
        %v4141 = vmul.f32 %v4081, 1.442695
        %v4142 = vpow.pop %v4141
        %v4143 = vmul.f32 %v4082, 1.442695
        %v4144 = vpow.pop %v4143
        %v4145 = vmul.f32 %v4083, 1.442695
        %v4146 = vpow.pop %v4145
        %v4147 = vmul.f32 %v4084, 1.442695
        %v4148 = vpow.pop %v4147
        %4149 = vadd.xlane.f32.xlu0 %v4086
        %v4150 = vpop.xlane.xlu0 %4149
        %4151 = vadd.xlane.f32.xlu0 %v4088
        %v4152 = vpop.xlane.xlu0 %4151
        %4153 = vadd.xlane.f32.xlu0 %v4090
        %v4154 = vpop.xlane.xlu0 %4153
        %4155 = vadd.xlane.f32.xlu0 %v4092
        %v4156 = vpop.xlane.xlu0 %4155
        %4157 = vadd.xlane.f32.xlu0 %v4094
        %v4158 = vpop.xlane.xlu0 %4157
        %4159 = vadd.xlane.f32.xlu0 %v4096
        %v4160 = vpop.xlane.xlu0 %4159
        %4161 = vadd.xlane.f32.xlu0 %v4098
        %v4162 = vpop.xlane.xlu0 %4161
        %4163 = vadd.xlane.f32.xlu0 %v4100
        %v4164 = vpop.xlane.xlu0 %4163
        %4165 = vadd.xlane.f32.xlu0 %v4102
        %v4166 = vpop.xlane.xlu0 %4165
        %4167 = vadd.xlane.f32.xlu0 %v4104
        %v4168 = vpop.xlane.xlu0 %4167
        %4169 = vadd.xlane.f32.xlu0 %v4106
        %v4170 = vpop.xlane.xlu0 %4169
        %4171 = vadd.xlane.f32.xlu0 %v4108
        %v4172 = vpop.xlane.xlu0 %4171
        %4173 = vadd.xlane.f32.xlu0 %v4110
        %v4174 = vpop.xlane.xlu0 %4173
        %4175 = vadd.xlane.f32.xlu0 %v4112
        %v4176 = vpop.xlane.xlu0 %4175
        %4177 = vadd.xlane.f32.xlu0 %v4114
        %v4178 = vpop.xlane.xlu0 %4177
        %4179 = vadd.xlane.f32.xlu0 %v4116
        %v4180 = vpop.xlane.xlu0 %4179
        %4181 = vadd.xlane.f32.xlu0 %v4118
        %v4182 = vpop.xlane.xlu0 %4181
        %4183 = vadd.xlane.f32.xlu0 %v4120
        %v4184 = vpop.xlane.xlu0 %4183
        %4185 = vadd.xlane.f32.xlu0 %v4122
        %v4186 = vpop.xlane.xlu0 %4185
        %4187 = vadd.xlane.f32.xlu0 %v4124
        %v4188 = vpop.xlane.xlu0 %4187
        %4189 = vadd.xlane.f32.xlu0 %v4126
        %v4190 = vpop.xlane.xlu0 %4189
        %4191 = vadd.xlane.f32.xlu0 %v4128
        %v4192 = vpop.xlane.xlu0 %4191
        %4193 = vadd.xlane.f32.xlu0 %v4130
        %v4194 = vpop.xlane.xlu0 %4193
        %4195 = vadd.xlane.f32.xlu0 %v4132
        %v4196 = vpop.xlane.xlu0 %4195
        %4197 = vadd.xlane.f32.xlu0 %v4134
        %v4198 = vpop.xlane.xlu0 %4197
        %4199 = vadd.xlane.f32.xlu0 %v4136
        %v4200 = vpop.xlane.xlu0 %4199
        %4201 = vadd.xlane.f32.xlu0 %v4138
        %v4202 = vpop.xlane.xlu0 %4201
        %4203 = vadd.xlane.f32.xlu0 %v4140
        %v4204 = vpop.xlane.xlu0 %4203
        %4205 = vadd.xlane.f32.xlu0 %v4142
        %v4206 = vpop.xlane.xlu0 %4205
        %4207 = vadd.xlane.f32.xlu0 %v4144
        %v4208 = vpop.xlane.xlu0 %4207
        %4209 = vadd.xlane.f32.xlu0 %v4146
        %v4210 = vpop.xlane.xlu0 %4209
        %4211 = vadd.xlane.f32.xlu0 %v4148
        %v4212 = vpop.xlane.xlu0 %4211
        %v4213 = vrcp.pop %v4150
        %v4214 = vrcp.pop %v4152
        %v4215 = vrcp.pop %v4154
        %v4216 = vrcp.pop %v4156
        %v4217 = vrcp.pop %v4158
        %v4218 = vrcp.pop %v4160
        %v4219 = vrcp.pop %v4162
        %v4220 = vrcp.pop %v4164
        %v4221 = vrcp.pop %v4166
        %v4222 = vrcp.pop %v4168
        %v4223 = vrcp.pop %v4170
        %v4224 = vrcp.pop %v4172
        %v4225 = vrcp.pop %v4174
        %v4226 = vrcp.pop %v4176
        %v4227 = vrcp.pop %v4178
        %v4228 = vrcp.pop %v4180
        %v4229 = vrcp.pop %v4182
        %v4230 = vrcp.pop %v4184
        %v4231 = vrcp.pop %v4186
        %v4232 = vrcp.pop %v4188
        %v4233 = vrcp.pop %v4190
        %v4234 = vrcp.pop %v4192
        %v4235 = vrcp.pop %v4194
        %v4236 = vrcp.pop %v4196
        %v4237 = vrcp.pop %v4198
        %v4238 = vrcp.pop %v4200
        %v4239 = vrcp.pop %v4202
        %v4240 = vrcp.pop %v4204
        %v4241 = vrcp.pop %v4206
        %v4242 = vrcp.pop %v4208
        %v4243 = vrcp.pop %v4210
        %v4244 = vrcp.pop %v4212
        %4245 = vrot.lane.b32.xlu0 %v696, 64
        %v4246 = vpop.permute.xlu0 %4245
        %4247 = vrot.lane.b32.xlu0 %v701, 64
        %v4248 = vpop.permute.xlu0 %4247
        %4249 = vrot.lane.b32.xlu0 %v706, 64
        %v4250 = vpop.permute.xlu0 %4249
        %4251 = vrot.lane.b32.xlu0 %v711, 64
        %v4252 = vpop.permute.xlu0 %4251
        %4253 = vrot.lane.b32.xlu0 %v716, 64
        %v4254 = vpop.permute.xlu0 %4253
        %4255 = vrot.lane.b32.xlu0 %v721, 64
        %v4256 = vpop.permute.xlu0 %4255
        %4257 = vrot.lane.b32.xlu0 %v726, 64
        %v4258 = vpop.permute.xlu0 %4257
        %4259 = vrot.lane.b32.xlu0 %v731, 64
        %v4260 = vpop.permute.xlu0 %4259
        %4261 = vrot.lane.b32.xlu0 %v736, 64
        %v4262 = vpop.permute.xlu0 %4261
        %4263 = vrot.lane.b32.xlu0 %v741, 64
        %v4264 = vpop.permute.xlu0 %4263
        %4265 = vrot.lane.b32.xlu0 %v746, 64
        %v4266 = vpop.permute.xlu0 %4265
        %4267 = vrot.lane.b32.xlu0 %v751, 64
        %v4268 = vpop.permute.xlu0 %4267
        %4269 = vrot.lane.b32.xlu0 %v756, 64
        %v4270 = vpop.permute.xlu0 %4269
        %4271 = vrot.lane.b32.xlu0 %v761, 64
        %v4272 = vpop.permute.xlu0 %4271
        %4273 = vrot.lane.b32.xlu0 %v766, 64
        %v4274 = vpop.permute.xlu0 %4273
        %4275 = vrot.lane.b32.xlu0 %v771, 64
        %v4276 = vpop.permute.xlu0 %4275
        %4293 = vmatprep.subr.mxu0 0.0
        %4294 = vmatpush1.msra.mxu0 %v4276
        %4295 = vmatprep.subr.mxu0 0.0
        %4296 = vmatpush1.msra.mxu0 %v4274
        %4297 = vmatprep.subr.mxu0 0.0
        %4298 = vmatpush1.msra.mxu0 %v4272
        %4299 = vmatprep.subr.mxu0 0.0
        %4300 = vmatpush1.msra.mxu0 %v4270
        %4301 = vmatprep.subr.mxu0 0.0
        %4302 = vmatpush1.msra.mxu0 %v4268
        %4303 = vmatprep.subr.mxu0 0.0
        %4304 = vmatpush1.msra.mxu0 %v4266
        %4305 = vmatprep.subr.mxu0 0.0
        %4306 = vmatpush1.msra.mxu0 %v4264
        %4307 = vmatprep.subr.mxu0 0.0
        %4308 = vmatpush1.msra.mxu0 %v4262
        %4309 = vmatprep.subr.mxu0 0.0
        %4310 = vmatpush1.msra.mxu0 %v4260
        %4311 = vmatprep.subr.mxu0 0.0
        %4312 = vmatpush1.msra.mxu0 %v4258
        %4313 = vmatprep.subr.mxu0 0.0
        %4314 = vmatpush1.msra.mxu0 %v4256
        %4315 = vmatprep.subr.mxu0 0.0
        %4316 = vmatpush1.msra.mxu0 %v4254
        %4317 = vmatprep.subr.mxu0 0.0
        %4318 = vmatpush1.msra.mxu0 %v4252
        %4319 = vmatprep.subr.mxu0 0.0
        %4320 = vmatpush1.msra.mxu0 %v4250
        %4321 = vmatprep.subr.mxu0 0.0
        %4322 = vmatpush1.msra.mxu0 %v4248
        %4323 = vmatprep.subr.mxu0 0.0
        %4324 = vmatpush1.msra.mxu0 %v4246
        %4325 = vmatprep.subr.mxu0 0.0
        %4326 = vmatpush2.msra.mxu0 0.0
        %4327 = vmatprep.subr.mxu0 0.0
        %4328 = vmatpush2.msra.mxu0 0.0
        %4329 = vmatprep.subr.mxu0 0.0
        %4330 = vmatpush2.msra.mxu0 0.0
        %4331 = vmatprep.subr.mxu0 0.0
        %4332 = vmatpush2.msra.mxu0 0.0
        %4333 = vmatprep.subr.mxu0 0.0
        %4334 = vmatpush2.msra.mxu0 0.0
        %4335 = vmatprep.subr.mxu0 0.0
        %4336 = vmatpush2.msra.mxu0 0.0
        %4337 = vmatprep.subr.mxu0 0.0
        %4338 = vmatpush2.msra.mxu0 0.0
        %4339 = vmatprep.subr.mxu0 0.0
        %4340 = vmatpush2.msra.mxu0 0.0
        %4341 = vmatprep.subr.mxu0 0.0
        %4342 = vmatpush2.msra.mxu0 0.0
        %4343 = vmatprep.subr.mxu0 0.0
        %4344 = vmatpush2.msra.mxu0 0.0
        %4345 = vmatprep.subr.mxu0 0.0
        %4346 = vmatpush2.msra.mxu0 0.0
        %4347 = vmatprep.subr.mxu0 0.0
        %4348 = vmatpush2.msra.mxu0 0.0
        %4349 = vmatprep.subr.mxu0 0.0
        %4350 = vmatpush2.msra.mxu0 0.0
        %4351 = vmatprep.subr.mxu0 0.0
        %4352 = vmatpush2.msra.mxu0 0.0
        %4353 = vmatprep.subr.mxu0 0.0
        %4354 = vmatpush2.msra.mxu0 0.0
        %4355 = vmatprep.subr.mxu0 0.0
        %4356 = vmatpush2.msra.mxu0 0.0
        %4357 = vmatprep.mubr.f32.mxu0 0.0
        %4358 = vmatmul.mubr.f32.gmra.mxu0 %v4086
        %v4359 = vpop.f32.mrf.mxu0
        %v4360 = vadd.f32 0.0, %v4359
        %v4361 = vpop.f32.mrf.mxu0
        %4362 = vmatprep.mubr.f32.mxu0 0.0
        %4363 = vmatmul.mubr.f32.gmra.mxu0 %v4088
        %v4364 = vpop.f32.mrf.mxu0
        %v4365 = vadd.f32 0.0, %v4364
        %v4366 = vpop.f32.mrf.mxu0
        %4367 = vmatprep.mubr.f32.mxu0 0.0
        %4368 = vmatmul.mubr.f32.gmra.mxu0 %v4090
        %v4369 = vpop.f32.mrf.mxu0
        %v4370 = vadd.f32 0.0, %v4369
        %v4371 = vpop.f32.mrf.mxu0
        %4372 = vmatprep.mubr.f32.mxu0 0.0
        %4373 = vmatmul.mubr.f32.gmra.mxu0 %v4092
        %v4374 = vpop.f32.mrf.mxu0
        %v4375 = vadd.f32 0.0, %v4374
        %v4376 = vpop.f32.mrf.mxu0
        %4377 = vmatprep.mubr.f32.mxu0 0.0
        %4378 = vmatmul.mubr.f32.gmra.mxu0 %v4094
        %v4379 = vpop.f32.mrf.mxu0
        %v4380 = vadd.f32 0.0, %v4379
        %v4381 = vpop.f32.mrf.mxu0
        %4382 = vmatprep.mubr.f32.mxu0 0.0
        %4383 = vmatmul.mubr.f32.gmra.mxu0 %v4096
        %v4384 = vpop.f32.mrf.mxu0
        %v4385 = vadd.f32 0.0, %v4384
        %v4386 = vpop.f32.mrf.mxu0
        %4387 = vmatprep.mubr.f32.mxu0 0.0
        %4388 = vmatmul.mubr.f32.gmra.mxu0 %v4098
        %v4389 = vpop.f32.mrf.mxu0
        %v4390 = vadd.f32 0.0, %v4389
        %v4391 = vpop.f32.mrf.mxu0
        %4392 = vmatprep.mubr.f32.mxu0 0.0
        %4393 = vmatmul.mubr.f32.gmra.mxu0 %v4100
        %v4394 = vpop.f32.mrf.mxu0
        %v4395 = vadd.f32 0.0, %v4394
        %v4396 = vpop.f32.mrf.mxu0
        %4397 = vmatprep.mubr.f32.mxu0 0.0
        %4398 = vmatmul.mubr.f32.gmra.mxu0 %v4102
        %v4399 = vpop.f32.mrf.mxu0
        %v4400 = vadd.f32 0.0, %v4399
        %v4401 = vpop.f32.mrf.mxu0
        %4402 = vmatprep.mubr.f32.mxu0 0.0
        %4403 = vmatmul.mubr.f32.gmra.mxu0 %v4104
        %v4404 = vpop.f32.mrf.mxu0
        %v4405 = vadd.f32 0.0, %v4404
        %v4406 = vpop.f32.mrf.mxu0
        %4407 = vmatprep.mubr.f32.mxu0 0.0
        %4408 = vmatmul.mubr.f32.gmra.mxu0 %v4106
        %v4409 = vpop.f32.mrf.mxu0
        %v4410 = vadd.f32 0.0, %v4409
        %v4411 = vpop.f32.mrf.mxu0
        %4412 = vmatprep.mubr.f32.mxu0 0.0
        %4413 = vmatmul.mubr.f32.gmra.mxu0 %v4108
        %v4414 = vpop.f32.mrf.mxu0
        %v4415 = vadd.f32 0.0, %v4414
        %v4416 = vpop.f32.mrf.mxu0
        %4417 = vmatprep.mubr.f32.mxu0 0.0
        %4418 = vmatmul.mubr.f32.gmra.mxu0 %v4110
        %v4419 = vpop.f32.mrf.mxu0
        %v4420 = vadd.f32 0.0, %v4419
        %v4421 = vpop.f32.mrf.mxu0
        %4422 = vmatprep.mubr.f32.mxu0 0.0
        %4423 = vmatmul.mubr.f32.gmra.mxu0 %v4112
        %v4424 = vpop.f32.mrf.mxu0
        %v4425 = vadd.f32 0.0, %v4424
        %v4426 = vpop.f32.mrf.mxu0
        %4427 = vmatprep.mubr.f32.mxu0 0.0
        %4428 = vmatmul.mubr.f32.gmra.mxu0 %v4114
        %v4429 = vpop.f32.mrf.mxu0
        %v4430 = vadd.f32 0.0, %v4429
        %v4431 = vpop.f32.mrf.mxu0
        %4432 = vmatprep.mubr.f32.mxu0 0.0
        %4433 = vmatmul.mubr.f32.gmra.mxu0 %v4116
        %v4434 = vpop.f32.mrf.mxu0
        %v4435 = vadd.f32 0.0, %v4434
        %v4436 = vpop.f32.mrf.mxu0
        %4437 = vdwg.mxu0
        %4438 = vrot.lane.b32.xlu0 %v776, 64
        %v4439 = vpop.permute.xlu0 %4438
        %4440 = vrot.lane.b32.xlu0 %v781, 64
        %v4441 = vpop.permute.xlu0 %4440
        %4442 = vrot.lane.b32.xlu0 %v786, 64
        %v4443 = vpop.permute.xlu0 %4442
        %4444 = vrot.lane.b32.xlu0 %v791, 64
        %v4445 = vpop.permute.xlu0 %4444
        %4446 = vrot.lane.b32.xlu0 %v796, 64
        %v4447 = vpop.permute.xlu0 %4446
        %4448 = vrot.lane.b32.xlu0 %v801, 64
        %v4449 = vpop.permute.xlu0 %4448
        %4450 = vrot.lane.b32.xlu0 %v806, 64
        %v4451 = vpop.permute.xlu0 %4450
        %4452 = vrot.lane.b32.xlu0 %v811, 64
        %v4453 = vpop.permute.xlu0 %4452
        %4454 = vrot.lane.b32.xlu0 %v816, 64
        %v4455 = vpop.permute.xlu0 %4454
        %4456 = vrot.lane.b32.xlu0 %v821, 64
        %v4457 = vpop.permute.xlu0 %4456
        %4458 = vrot.lane.b32.xlu0 %v826, 64
        %v4459 = vpop.permute.xlu0 %4458
        %4460 = vrot.lane.b32.xlu0 %v831, 64
        %v4461 = vpop.permute.xlu0 %4460
        %4462 = vrot.lane.b32.xlu0 %v836, 64
        %v4463 = vpop.permute.xlu0 %4462
        %4464 = vrot.lane.b32.xlu0 %v841, 64
        %v4465 = vpop.permute.xlu0 %4464
        %4466 = vrot.lane.b32.xlu0 %v846, 64
        %v4467 = vpop.permute.xlu0 %4466
        %4468 = vrot.lane.b32.xlu0 %v851, 64
        %v4469 = vpop.permute.xlu0 %4468
        %4486 = vmatprep.subr.mxu0 0.0
        %4487 = vmatpush1.msra.mxu0 %v4469
        %4488 = vmatprep.subr.mxu0 0.0
        %4489 = vmatpush1.msra.mxu0 %v4467
        %4490 = vmatprep.subr.mxu0 0.0
        %4491 = vmatpush1.msra.mxu0 %v4465
        %4492 = vmatprep.subr.mxu0 0.0
        %4493 = vmatpush1.msra.mxu0 %v4463
        %4494 = vmatprep.subr.mxu0 0.0
        %4495 = vmatpush1.msra.mxu0 %v4461
        %4496 = vmatprep.subr.mxu0 0.0
        %4497 = vmatpush1.msra.mxu0 %v4459
        %4498 = vmatprep.subr.mxu0 0.0
        %4499 = vmatpush1.msra.mxu0 %v4457
        %4500 = vmatprep.subr.mxu0 0.0
        %4501 = vmatpush1.msra.mxu0 %v4455
        %4502 = vmatprep.subr.mxu0 0.0
        %4503 = vmatpush1.msra.mxu0 %v4453
        %4504 = vmatprep.subr.mxu0 0.0
        %4505 = vmatpush1.msra.mxu0 %v4451
        %4506 = vmatprep.subr.mxu0 0.0
        %4507 = vmatpush1.msra.mxu0 %v4449
        %4508 = vmatprep.subr.mxu0 0.0
        %4509 = vmatpush1.msra.mxu0 %v4447
        %4510 = vmatprep.subr.mxu0 0.0
        %4511 = vmatpush1.msra.mxu0 %v4445
        %4512 = vmatprep.subr.mxu0 0.0
        %4513 = vmatpush1.msra.mxu0 %v4443
        %4514 = vmatprep.subr.mxu0 0.0
        %4515 = vmatpush1.msra.mxu0 %v4441
        %4516 = vmatprep.subr.mxu0 0.0
        %4517 = vmatpush1.msra.mxu0 %v4439
        %4518 = vmatprep.subr.mxu0 0.0
        %4519 = vmatpush2.msra.mxu0 0.0
        %4520 = vmatprep.subr.mxu0 0.0
        %4521 = vmatpush2.msra.mxu0 0.0
        %4522 = vmatprep.subr.mxu0 0.0
        %4523 = vmatpush2.msra.mxu0 0.0
        %4524 = vmatprep.subr.mxu0 0.0
        %4525 = vmatpush2.msra.mxu0 0.0
        %4526 = vmatprep.subr.mxu0 0.0
        %4527 = vmatpush2.msra.mxu0 0.0
        %4528 = vmatprep.subr.mxu0 0.0
        %4529 = vmatpush2.msra.mxu0 0.0
        %4530 = vmatprep.subr.mxu0 0.0
        %4531 = vmatpush2.msra.mxu0 0.0
        %4532 = vmatprep.subr.mxu0 0.0
        %4533 = vmatpush2.msra.mxu0 0.0
        %4534 = vmatprep.subr.mxu0 0.0
        %4535 = vmatpush2.msra.mxu0 0.0
        %4536 = vmatprep.subr.mxu0 0.0
        %4537 = vmatpush2.msra.mxu0 0.0
        %4538 = vmatprep.subr.mxu0 0.0
        %4539 = vmatpush2.msra.mxu0 0.0
        %4540 = vmatprep.subr.mxu0 0.0
        %4541 = vmatpush2.msra.mxu0 0.0
        %4542 = vmatprep.subr.mxu0 0.0
        %4543 = vmatpush2.msra.mxu0 0.0
        %4544 = vmatprep.subr.mxu0 0.0
        %4545 = vmatpush2.msra.mxu0 0.0
        %4546 = vmatprep.subr.mxu0 0.0
        %4547 = vmatpush2.msra.mxu0 0.0
        %4548 = vmatprep.subr.mxu0 0.0
        %4549 = vmatpush2.msra.mxu0 0.0
        %4550 = vmatprep.mubr.f32.mxu0 0.0
        %4551 = vmatmul.mubr.f32.gmra.mxu0 %v4118
        %v4552 = vpop.f32.mrf.mxu0
        %v4553 = vadd.f32 0.0, %v4552
        %v4554 = vpop.f32.mrf.mxu0
        %4555 = vmatprep.mubr.f32.mxu0 0.0
        %4556 = vmatmul.mubr.f32.gmra.mxu0 %v4120
        %v4557 = vpop.f32.mrf.mxu0
        %v4558 = vadd.f32 0.0, %v4557
        %v4559 = vpop.f32.mrf.mxu0
        %4560 = vmatprep.mubr.f32.mxu0 0.0
        %4561 = vmatmul.mubr.f32.gmra.mxu0 %v4122
        %v4562 = vpop.f32.mrf.mxu0
        %v4563 = vadd.f32 0.0, %v4562
        %v4564 = vpop.f32.mrf.mxu0
        %4565 = vmatprep.mubr.f32.mxu0 0.0
        %4566 = vmatmul.mubr.f32.gmra.mxu0 %v4124
        %v4567 = vpop.f32.mrf.mxu0
        %v4568 = vadd.f32 0.0, %v4567
        %v4569 = vpop.f32.mrf.mxu0
        %4570 = vmatprep.mubr.f32.mxu0 0.0
        %4571 = vmatmul.mubr.f32.gmra.mxu0 %v4126
        %v4572 = vpop.f32.mrf.mxu0
        %v4573 = vadd.f32 0.0, %v4572
        %v4574 = vpop.f32.mrf.mxu0
        %4575 = vmatprep.mubr.f32.mxu0 0.0
        %4576 = vmatmul.mubr.f32.gmra.mxu0 %v4128
        %v4577 = vpop.f32.mrf.mxu0
        %v4578 = vadd.f32 0.0, %v4577
        %v4579 = vpop.f32.mrf.mxu0
        %4580 = vmatprep.mubr.f32.mxu0 0.0
        %4581 = vmatmul.mubr.f32.gmra.mxu0 %v4130
        %v4582 = vpop.f32.mrf.mxu0
        %v4583 = vadd.f32 0.0, %v4582
        %v4584 = vpop.f32.mrf.mxu0
        %4585 = vmatprep.mubr.f32.mxu0 0.0
        %4586 = vmatmul.mubr.f32.gmra.mxu0 %v4132
        %v4587 = vpop.f32.mrf.mxu0
        %v4588 = vadd.f32 0.0, %v4587
        %v4589 = vpop.f32.mrf.mxu0
        %4590 = vmatprep.mubr.f32.mxu0 0.0
        %4591 = vmatmul.mubr.f32.gmra.mxu0 %v4134
        %v4592 = vpop.f32.mrf.mxu0
        %v4593 = vadd.f32 0.0, %v4592
        %v4594 = vpop.f32.mrf.mxu0
        %4595 = vmatprep.mubr.f32.mxu0 0.0
        %4596 = vmatmul.mubr.f32.gmra.mxu0 %v4136
        %v4597 = vpop.f32.mrf.mxu0
        %v4598 = vadd.f32 0.0, %v4597
        %v4599 = vpop.f32.mrf.mxu0
        %4600 = vmatprep.mubr.f32.mxu0 0.0
        %4601 = vmatmul.mubr.f32.gmra.mxu0 %v4138
        %v4602 = vpop.f32.mrf.mxu0
        %v4603 = vadd.f32 0.0, %v4602
        %v4604 = vpop.f32.mrf.mxu0
        %4605 = vmatprep.mubr.f32.mxu0 0.0
        %4606 = vmatmul.mubr.f32.gmra.mxu0 %v4140
        %v4607 = vpop.f32.mrf.mxu0
        %v4608 = vadd.f32 0.0, %v4607
        %v4609 = vpop.f32.mrf.mxu0
        %4610 = vmatprep.mubr.f32.mxu0 0.0
        %4611 = vmatmul.mubr.f32.gmra.mxu0 %v4142
        %v4612 = vpop.f32.mrf.mxu0
        %v4613 = vadd.f32 0.0, %v4612
        %v4614 = vpop.f32.mrf.mxu0
        %4615 = vmatprep.mubr.f32.mxu0 0.0
        %4616 = vmatmul.mubr.f32.gmra.mxu0 %v4144
        %v4617 = vpop.f32.mrf.mxu0
        %v4618 = vadd.f32 0.0, %v4617
        %v4619 = vpop.f32.mrf.mxu0
        %4620 = vmatprep.mubr.f32.mxu0 0.0
        %4621 = vmatmul.mubr.f32.gmra.mxu0 %v4146
        %v4622 = vpop.f32.mrf.mxu0
        %v4623 = vadd.f32 0.0, %v4622
        %v4624 = vpop.f32.mrf.mxu0
        %4625 = vmatprep.mubr.f32.mxu0 0.0
        %4626 = vmatmul.mubr.f32.gmra.mxu0 %v4148
        %v4627 = vpop.f32.mrf.mxu0
        %v4628 = vadd.f32 0.0, %v4627
        %v4629 = vpop.f32.mrf.mxu0
        %4630 = vdwg.mxu0
        %v4631 = vmul.f32 %v4360, %v4213
        %v4632 = vmul.f32 %v4365, %v4214
        %v4633 = vmul.f32 %v4370, %v4215
        %v4634 = vmul.f32 %v4375, %v4216
        %v4635 = vmul.f32 %v4380, %v4217
        %v4636 = vmul.f32 %v4385, %v4218
        %v4637 = vmul.f32 %v4390, %v4219
        %v4638 = vmul.f32 %v4395, %v4220
        %v4639 = vmul.f32 %v4400, %v4221
        %v4640 = vmul.f32 %v4405, %v4222
        %v4641 = vmul.f32 %v4410, %v4223
        %v4642 = vmul.f32 %v4415, %v4224
        %v4643 = vmul.f32 %v4420, %v4225
        %v4644 = vmul.f32 %v4425, %v4226
        %v4645 = vmul.f32 %v4430, %v4227
        %v4646 = vmul.f32 %v4435, %v4228
        %v4647 = vmul.f32 %v4553, %v4229
        %v4648 = vmul.f32 %v4558, %v4230
        %v4649 = vmul.f32 %v4563, %v4231
        %v4650 = vmul.f32 %v4568, %v4232
        %v4651 = vmul.f32 %v4573, %v4233
        %v4652 = vmul.f32 %v4578, %v4234
        %v4653 = vmul.f32 %v4583, %v4235
        %v4654 = vmul.f32 %v4588, %v4236
        %v4655 = vmul.f32 %v4593, %v4237
        %v4656 = vmul.f32 %v4598, %v4238
        %v4657 = vmul.f32 %v4603, %v4239
        %v4658 = vmul.f32 %v4608, %v4240
        %v4659 = vmul.f32 %v4613, %v4241
        %v4660 = vmul.f32 %v4618, %v4242
        %v4661 = vmul.f32 %v4623, %v4243
        %v4662 = vmul.f32 %v4628, %v4244
        %4695 = vrot.lane.b32.xlu0 %v4631, 64
        %v4696 = vpop.permute.xlu0 %4695
        %4697 = vrot.lane.b32.xlu0 %v4632, 64
        %v4698 = vpop.permute.xlu0 %4697
        %4699 = vrot.lane.b32.xlu0 %v4633, 64
        %v4700 = vpop.permute.xlu0 %4699
        %4701 = vrot.lane.b32.xlu0 %v4634, 64
        %v4702 = vpop.permute.xlu0 %4701
        %4703 = vrot.lane.b32.xlu0 %v4635, 64
        %v4704 = vpop.permute.xlu0 %4703
        %4705 = vrot.lane.b32.xlu0 %v4636, 64
        %v4706 = vpop.permute.xlu0 %4705
        %4707 = vrot.lane.b32.xlu0 %v4637, 64
        %v4708 = vpop.permute.xlu0 %4707
        %4709 = vrot.lane.b32.xlu0 %v4638, 64
        %v4710 = vpop.permute.xlu0 %4709
        %4711 = vrot.lane.b32.xlu0 %v4639, 64
        %v4712 = vpop.permute.xlu0 %4711
        %4713 = vrot.lane.b32.xlu0 %v4640, 64
        %v4714 = vpop.permute.xlu0 %4713
        %4715 = vrot.lane.b32.xlu0 %v4641, 64
        %v4716 = vpop.permute.xlu0 %4715
        %4717 = vrot.lane.b32.xlu0 %v4642, 64
        %v4718 = vpop.permute.xlu0 %4717
        %4719 = vrot.lane.b32.xlu0 %v4643, 64
        %v4720 = vpop.permute.xlu0 %4719
        %4721 = vrot.lane.b32.xlu0 %v4644, 64
        %v4722 = vpop.permute.xlu0 %4721
        %4723 = vrot.lane.b32.xlu0 %v4645, 64
        %v4724 = vpop.permute.xlu0 %4723
        %4725 = vrot.lane.b32.xlu0 %v4646, 64
        %v4726 = vpop.permute.xlu0 %4725
        %4727 = vrot.lane.b32.xlu0 %v4647, 64
        %v4728 = vpop.permute.xlu0 %4727
        %4729 = vrot.lane.b32.xlu0 %v4648, 64
        %v4730 = vpop.permute.xlu0 %4729
        %4731 = vrot.lane.b32.xlu0 %v4649, 64
        %v4732 = vpop.permute.xlu0 %4731
        %4733 = vrot.lane.b32.xlu0 %v4650, 64
        %v4734 = vpop.permute.xlu0 %4733
        %4735 = vrot.lane.b32.xlu0 %v4651, 64
        %v4736 = vpop.permute.xlu0 %4735
        %4737 = vrot.lane.b32.xlu0 %v4652, 64
        %v4738 = vpop.permute.xlu0 %4737
        %4739 = vrot.lane.b32.xlu0 %v4653, 64
        %v4740 = vpop.permute.xlu0 %4739
        %4741 = vrot.lane.b32.xlu0 %v4654, 64
        %v4742 = vpop.permute.xlu0 %4741
        %4743 = vrot.lane.b32.xlu0 %v4655, 64
        %v4744 = vpop.permute.xlu0 %4743
        %4745 = vrot.lane.b32.xlu0 %v4656, 64
        %v4746 = vpop.permute.xlu0 %4745
        %4747 = vrot.lane.b32.xlu0 %v4657, 64
        %v4748 = vpop.permute.xlu0 %4747
        %4749 = vrot.lane.b32.xlu0 %v4658, 64
        %v4750 = vpop.permute.xlu0 %4749
        %4751 = vrot.lane.b32.xlu0 %v4659, 64
        %v4752 = vpop.permute.xlu0 %4751
        %4753 = vrot.lane.b32.xlu0 %v4660, 64
        %v4754 = vpop.permute.xlu0 %4753
        %4755 = vrot.lane.b32.xlu0 %v4661, 64
        %v4756 = vpop.permute.xlu0 %4755
        %4757 = vrot.lane.b32.xlu0 %v4662, 64
        %v4758 = vpop.permute.xlu0 %4757
        %vm4791 = vcmask 785920
        %4792 = vst.msk [vmem:[#allocation2] sm:$0xff] %vm4791, %v4696
        %4793 = vst.msk [vmem:[#allocation2 + $0x8] sm:$0xff] %vm4791, %v4698
        %4794 = vst.msk [vmem:[#allocation2 + $0x10] sm:$0xff] %vm4791, %v4700
        %4795 = vst.msk [vmem:[#allocation2 + $0x18] sm:$0xff] %vm4791, %v4702
        %4796 = vst.msk [vmem:[#allocation2 + $0x20] sm:$0xff] %vm4791, %v4704
        %4797 = vst.msk [vmem:[#allocation2 + $0x28] sm:$0xff] %vm4791, %v4706
        %4798 = vst.msk [vmem:[#allocation2 + $0x30] sm:$0xff] %vm4791, %v4708
        %4799 = vst.msk [vmem:[#allocation2 + $0x38] sm:$0xff] %vm4791, %v4710
        %4800 = vst.msk [vmem:[#allocation2 + $0x40] sm:$0xff] %vm4791, %v4712
        %4801 = vst.msk [vmem:[#allocation2 + $0x48] sm:$0xff] %vm4791, %v4714
        %4802 = vst.msk [vmem:[#allocation2 + $0x50] sm:$0xff] %vm4791, %v4716
        %4803 = vst.msk [vmem:[#allocation2 + $0x58] sm:$0xff] %vm4791, %v4718
        %4804 = vst.msk [vmem:[#allocation2 + $0x60] sm:$0xff] %vm4791, %v4720
        %4805 = vst.msk [vmem:[#allocation2 + $0x68] sm:$0xff] %vm4791, %v4722
        %4806 = vst.msk [vmem:[#allocation2 + $0x70] sm:$0xff] %vm4791, %v4724
        %4807 = vst.msk [vmem:[#allocation2 + $0x78] sm:$0xff] %vm4791, %v4726
        %4808 = vst.msk [vmem:[#allocation2 + $0x80] sm:$0xff] %vm4791, %v4728
        %4809 = vst.msk [vmem:[#allocation2 + $0x88] sm:$0xff] %vm4791, %v4730
        %4810 = vst.msk [vmem:[#allocation2 + $0x90] sm:$0xff] %vm4791, %v4732
        %4811 = vst.msk [vmem:[#allocation2 + $0x98] sm:$0xff] %vm4791, %v4734
        %4812 = vst.msk [vmem:[#allocation2 + $0xa0] sm:$0xff] %vm4791, %v4736
        %4813 = vst.msk [vmem:[#allocation2 + $0xa8] sm:$0xff] %vm4791, %v4738
        %4814 = vst.msk [vmem:[#allocation2 + $0xb0] sm:$0xff] %vm4791, %v4740
        %4815 = vst.msk [vmem:[#allocation2 + $0xb8] sm:$0xff] %vm4791, %v4742
        %4816 = vst.msk [vmem:[#allocation2 + $0xc0] sm:$0xff] %vm4791, %v4744
        %4817 = vst.msk [vmem:[#allocation2 + $0xc8] sm:$0xff] %vm4791, %v4746
        %4818 = vst.msk [vmem:[#allocation2 + $0xd0] sm:$0xff] %vm4791, %v4748
        %4819 = vst.msk [vmem:[#allocation2 + $0xd8] sm:$0xff] %vm4791, %v4750
        %4820 = vst.msk [vmem:[#allocation2 + $0xe0] sm:$0xff] %vm4791, %v4752
        %4821 = vst.msk [vmem:[#allocation2 + $0xe8] sm:$0xff] %vm4791, %v4754
        %4822 = vst.msk [vmem:[#allocation2 + $0xf0] sm:$0xff] %vm4791, %v4756
        %4823 = vst.msk [vmem:[#allocation2 + $0xf8] sm:$0xff] %vm4791, %v4758
        %4824 = vrot.lane.b32.xlu0 %v854, 32
        %v4825 = vpop.permute.xlu0 %4824
        %4826 = vrot.lane.b32.xlu0 %v855, 32
        %v4827 = vpop.permute.xlu0 %4826
        %4828 = vrot.lane.b32.xlu0 %v856, 32
        %v4829 = vpop.permute.xlu0 %4828
        %4830 = vrot.lane.b32.xlu0 %v857, 32
        %v4831 = vpop.permute.xlu0 %4830
        %4832 = vrot.lane.b32.xlu0 %v858, 32
        %v4833 = vpop.permute.xlu0 %4832
        %4834 = vrot.lane.b32.xlu0 %v859, 32
        %v4835 = vpop.permute.xlu0 %4834
        %4836 = vrot.lane.b32.xlu0 %v860, 32
        %v4837 = vpop.permute.xlu0 %4836
        %4838 = vrot.lane.b32.xlu0 %v861, 32
        %v4839 = vpop.permute.xlu0 %4838
        %4840 = vrot.lane.b32.xlu0 %v862, 32
        %v4841 = vpop.permute.xlu0 %4840
        %4842 = vrot.lane.b32.xlu0 %v863, 32
        %v4843 = vpop.permute.xlu0 %4842
        %4844 = vrot.lane.b32.xlu0 %v864, 32
        %v4845 = vpop.permute.xlu0 %4844
        %4846 = vrot.lane.b32.xlu0 %v865, 32
        %v4847 = vpop.permute.xlu0 %4846
        %4848 = vrot.lane.b32.xlu0 %v866, 32
        %v4849 = vpop.permute.xlu0 %4848
        %4850 = vrot.lane.b32.xlu0 %v867, 32
        %v4851 = vpop.permute.xlu0 %4850
        %4852 = vrot.lane.b32.xlu0 %v868, 32
        %v4853 = vpop.permute.xlu0 %4852
        %4854 = vrot.lane.b32.xlu0 %v869, 32
        %v4855 = vpop.permute.xlu0 %4854
        %4856 = vrot.lane.b32.xlu0 %v441, 32
        %v4857 = vpop.permute.xlu0 %4856
        %4858 = vrot.lane.b32.xlu0 %v447, 32
        %v4859 = vpop.permute.xlu0 %4858
        %4860 = vrot.lane.b32.xlu0 %v453, 32
        %v4861 = vpop.permute.xlu0 %4860
        %4862 = vrot.lane.b32.xlu0 %v459, 32
        %v4863 = vpop.permute.xlu0 %4862
        %4864 = vrot.lane.b32.xlu0 %v465, 32
        %v4865 = vpop.permute.xlu0 %4864
        %4866 = vrot.lane.b32.xlu0 %v471, 32
        %v4867 = vpop.permute.xlu0 %4866
        %4868 = vrot.lane.b32.xlu0 %v477, 32
        %v4869 = vpop.permute.xlu0 %4868
        %4870 = vrot.lane.b32.xlu0 %v483, 32
        %v4871 = vpop.permute.xlu0 %4870
        %4872 = vrot.lane.b32.xlu0 %v489, 32
        %v4873 = vpop.permute.xlu0 %4872
        %4874 = vrot.lane.b32.xlu0 %v495, 32
        %v4875 = vpop.permute.xlu0 %4874
        %4876 = vrot.lane.b32.xlu0 %v501, 32
        %v4877 = vpop.permute.xlu0 %4876
        %4878 = vrot.lane.b32.xlu0 %v507, 32
        %v4879 = vpop.permute.xlu0 %4878
        %4880 = vrot.lane.b32.xlu0 %v513, 32
        %v4881 = vpop.permute.xlu0 %4880
        %4882 = vrot.lane.b32.xlu0 %v519, 32
        %v4883 = vpop.permute.xlu0 %4882
        %4884 = vrot.lane.b32.xlu0 %v525, 32
        %v4885 = vpop.permute.xlu0 %4884
        %4886 = vrot.lane.b32.xlu0 %v531, 32
        %v4887 = vpop.permute.xlu0 %4886
        %v4888 = vsel %vm937, %v4825, 0
        %v4890 = vsel %vm937, %v4827, 0
        %v4892 = vsel %vm937, %v4829, 0
        %v4894 = vsel %vm937, %v4831, 0
        %v4896 = vsel %vm937, %v4833, 0
        %v4898 = vsel %vm937, %v4835, 0
        %v4900 = vsel %vm937, %v4837, 0
        %v4902 = vsel %vm937, %v4839, 0
        %v4904 = vsel %vm937, %v4841, 0
        %v4906 = vsel %vm937, %v4843, 0
        %v4908 = vsel %vm937, %v4845, 0
        %v4910 = vsel %vm937, %v4847, 0
        %v4912 = vsel %vm937, %v4849, 0
        %v4914 = vsel %vm937, %v4851, 0
        %v4916 = vsel %vm937, %v4853, 0
        %v4918 = vsel %vm937, %v4855, 0
        %v4920 = vsel %vm937, %v4857, 0
        %v4922 = vsel %vm937, %v4859, 0
        %v4924 = vsel %vm937, %v4861, 0
        %v4926 = vsel %vm937, %v4863, 0
        %v4928 = vsel %vm937, %v4865, 0
        %v4930 = vsel %vm937, %v4867, 0
        %v4932 = vsel %vm937, %v4869, 0
        %v4934 = vsel %vm937, %v4871, 0
        %v4936 = vsel %vm937, %v4873, 0
        %v4938 = vsel %vm937, %v4875, 0
        %v4940 = vsel %vm937, %v4877, 0
        %v4942 = vsel %vm937, %v4879, 0
        %v4944 = vsel %vm937, %v4881, 0
        %v4946 = vsel %vm937, %v4883, 0
        %v4948 = vsel %vm937, %v4885, 0
        %v4950 = vsel %vm937, %v4887, 0
        %4952 = vmatprep.subr.mxu0 0.0
        %4953 = vmatpush1.xpose.msra.mxu0 %v4950
        %4954 = vmatprep.subr.mxu0 0.0
        %4955 = vmatpush1.xpose.msra.mxu0 %v4948
        %4956 = vmatprep.subr.mxu0 0.0
        %4957 = vmatpush1.xpose.msra.mxu0 %v4946
        %4958 = vmatprep.subr.mxu0 0.0
        %4959 = vmatpush1.xpose.msra.mxu0 %v4944
        %4960 = vmatprep.subr.mxu0 0.0
        %4961 = vmatpush1.xpose.msra.mxu0 %v4942
        %4962 = vmatprep.subr.mxu0 0.0
        %4963 = vmatpush1.xpose.msra.mxu0 %v4940
        %4964 = vmatprep.subr.mxu0 0.0
        %4965 = vmatpush1.xpose.msra.mxu0 %v4938
        %4966 = vmatprep.subr.mxu0 0.0
        %4967 = vmatpush1.xpose.msra.mxu0 %v4936
        %4968 = vmatprep.subr.mxu0 0.0
        %4969 = vmatpush1.xpose.msra.mxu0 %v4934
        %4970 = vmatprep.subr.mxu0 0.0
        %4971 = vmatpush1.xpose.msra.mxu0 %v4932
        %4972 = vmatprep.subr.mxu0 0.0
        %4973 = vmatpush1.xpose.msra.mxu0 %v4930
        %4974 = vmatprep.subr.mxu0 0.0
        %4975 = vmatpush1.xpose.msra.mxu0 %v4928
        %4976 = vmatprep.subr.mxu0 0.0
        %4977 = vmatpush1.xpose.msra.mxu0 %v4926
        %4978 = vmatprep.subr.mxu0 0.0
        %4979 = vmatpush1.xpose.msra.mxu0 %v4924
        %4980 = vmatprep.subr.mxu0 0.0
        %4981 = vmatpush1.xpose.msra.mxu0 %v4922
        %4982 = vmatprep.subr.mxu0 0.0
        %4983 = vmatpush1.xpose.msra.mxu0 %v4920
        %4984 = vmatprep.subr.mxu0 0.0
        %4985 = vmatpush2.xpose.msra.mxu0 0.0
        %4986 = vmatprep.subr.mxu0 0.0
        %4987 = vmatpush2.xpose.msra.mxu0 0.0
        %4988 = vmatprep.subr.mxu0 0.0
        %4989 = vmatpush2.xpose.msra.mxu0 0.0
        %4990 = vmatprep.subr.mxu0 0.0
        %4991 = vmatpush2.xpose.msra.mxu0 0.0
        %4992 = vmatprep.subr.mxu0 0.0
        %4993 = vmatpush2.xpose.msra.mxu0 0.0
        %4994 = vmatprep.subr.mxu0 0.0
        %4995 = vmatpush2.xpose.msra.mxu0 0.0
        %4996 = vmatprep.subr.mxu0 0.0
        %4997 = vmatpush2.xpose.msra.mxu0 0.0
        %4998 = vmatprep.subr.mxu0 0.0
        %4999 = vmatpush2.xpose.msra.mxu0 0.0
        %5000 = vmatprep.subr.mxu0 0.0
        %5001 = vmatpush2.xpose.msra.mxu0 0.0
        %5002 = vmatprep.subr.mxu0 0.0
        %5003 = vmatpush2.xpose.msra.mxu0 0.0
        %5004 = vmatprep.subr.mxu0 0.0
        %5005 = vmatpush2.xpose.msra.mxu0 0.0
        %5006 = vmatprep.subr.mxu0 0.0
        %5007 = vmatpush2.xpose.msra.mxu0 0.0
        %5008 = vmatprep.subr.mxu0 0.0
        %5009 = vmatpush2.xpose.msra.mxu0 0.0
        %5010 = vmatprep.subr.mxu0 0.0
        %5011 = vmatpush2.xpose.msra.mxu0 0.0
        %5012 = vmatprep.subr.mxu0 0.0
        %5013 = vmatpush2.xpose.msra.mxu0 0.0
        %5014 = vmatprep.subr.mxu0 0.0
        %5015 = vmatpush2.xpose.msra.mxu0 0.0
        %5016 = vmatprep.mubr.f32.mxu0 0.0
        %5017 = vmatmul.mubr.f32.gmra.mxu0 %v4888
        %v5018 = vpop.f32.mrf.mxu0
        %v5019 = vadd.f32 %v921, %v5018
        %v5020 = vpop.f32.mrf.mxu0
        %5021 = vmatprep.mubr.f32.mxu0 0.0
        %5022 = vmatmul.mubr.f32.gmra.mxu0 %v4890
        %v5023 = vpop.f32.mrf.mxu0
        %v5024 = vadd.f32 %v922, %v5023
        %v5025 = vpop.f32.mrf.mxu0
        %5026 = vmatprep.mubr.f32.mxu0 0.0
        %5027 = vmatmul.mubr.f32.gmra.mxu0 %v4892
        %v5028 = vpop.f32.mrf.mxu0
        %v5029 = vadd.f32 %v923, %v5028
        %v5030 = vpop.f32.mrf.mxu0
        %5031 = vmatprep.mubr.f32.mxu0 0.0
        %5032 = vmatmul.mubr.f32.gmra.mxu0 %v4894
        %v5033 = vpop.f32.mrf.mxu0
        %v5034 = vadd.f32 %v924, %v5033
        %v5035 = vpop.f32.mrf.mxu0
        %5036 = vmatprep.mubr.f32.mxu0 0.0
        %5037 = vmatmul.mubr.f32.gmra.mxu0 %v4896
        %v5038 = vpop.f32.mrf.mxu0
        %v5039 = vadd.f32 %v925, %v5038
        %v5040 = vpop.f32.mrf.mxu0
        %5041 = vmatprep.mubr.f32.mxu0 0.0
        %5042 = vmatmul.mubr.f32.gmra.mxu0 %v4898
        %v5043 = vpop.f32.mrf.mxu0
        %v5044 = vadd.f32 %v926, %v5043
        %v5045 = vpop.f32.mrf.mxu0
        %5046 = vmatprep.mubr.f32.mxu0 0.0
        %5047 = vmatmul.mubr.f32.gmra.mxu0 %v4900
        %v5048 = vpop.f32.mrf.mxu0
        %v5049 = vadd.f32 %v927, %v5048
        %v5050 = vpop.f32.mrf.mxu0
        %5051 = vmatprep.mubr.f32.mxu0 0.0
        %5052 = vmatmul.mubr.f32.gmra.mxu0 %v4902
        %v5053 = vpop.f32.mrf.mxu0
        %v5054 = vadd.f32 %v928, %v5053
        %v5055 = vpop.f32.mrf.mxu0
        %5056 = vmatprep.mubr.f32.mxu0 0.0
        %5057 = vmatmul.mubr.f32.gmra.mxu0 %v4904
        %v5058 = vpop.f32.mrf.mxu0
        %v5059 = vadd.f32 %v929, %v5058
        %v5060 = vpop.f32.mrf.mxu0
        %5061 = vmatprep.mubr.f32.mxu0 0.0
        %5062 = vmatmul.mubr.f32.gmra.mxu0 %v4906
        %v5063 = vpop.f32.mrf.mxu0
        %v5064 = vadd.f32 %v930, %v5063
        %v5065 = vpop.f32.mrf.mxu0
        %5066 = vmatprep.mubr.f32.mxu0 0.0
        %5067 = vmatmul.mubr.f32.gmra.mxu0 %v4908
        %v5068 = vpop.f32.mrf.mxu0
        %v5069 = vadd.f32 %v931, %v5068
        %v5070 = vpop.f32.mrf.mxu0
        %5071 = vmatprep.mubr.f32.mxu0 0.0
        %5072 = vmatmul.mubr.f32.gmra.mxu0 %v4910
        %v5073 = vpop.f32.mrf.mxu0
        %v5074 = vadd.f32 %v932, %v5073
        %v5075 = vpop.f32.mrf.mxu0
        %5076 = vmatprep.mubr.f32.mxu0 0.0
        %5077 = vmatmul.mubr.f32.gmra.mxu0 %v4912
        %v5078 = vpop.f32.mrf.mxu0
        %v5079 = vadd.f32 %v933, %v5078
        %v5080 = vpop.f32.mrf.mxu0
        %5081 = vmatprep.mubr.f32.mxu0 0.0
        %5082 = vmatmul.mubr.f32.gmra.mxu0 %v4914
        %v5083 = vpop.f32.mrf.mxu0
        %v5084 = vadd.f32 %v934, %v5083
        %v5085 = vpop.f32.mrf.mxu0
        %5086 = vmatprep.mubr.f32.mxu0 0.0
        %5087 = vmatmul.mubr.f32.gmra.mxu0 %v4916
        %v5088 = vpop.f32.mrf.mxu0
        %v5089 = vadd.f32 %v935, %v5088
        %v5090 = vpop.f32.mrf.mxu0
        %5091 = vmatprep.mubr.f32.mxu0 0.0
        %5092 = vmatmul.mubr.f32.gmra.mxu0 %v4918
        %v5093 = vpop.f32.mrf.mxu0
        %v5094 = vadd.f32 %v936, %v5093
        %v5095 = vpop.f32.mrf.mxu0
        %5096 = vdwg.mxu0
        %5097 = vrot.lane.b32.xlu0 %v870, 32
        %v5098 = vpop.permute.xlu0 %5097
        %5099 = vrot.lane.b32.xlu0 %v871, 32
        %v5100 = vpop.permute.xlu0 %5099
        %5101 = vrot.lane.b32.xlu0 %v872, 32
        %v5102 = vpop.permute.xlu0 %5101
        %5103 = vrot.lane.b32.xlu0 %v873, 32
        %v5104 = vpop.permute.xlu0 %5103
        %5105 = vrot.lane.b32.xlu0 %v874, 32
        %v5106 = vpop.permute.xlu0 %5105
        %5107 = vrot.lane.b32.xlu0 %v875, 32
        %v5108 = vpop.permute.xlu0 %5107
        %5109 = vrot.lane.b32.xlu0 %v876, 32
        %v5110 = vpop.permute.xlu0 %5109
        %5111 = vrot.lane.b32.xlu0 %v877, 32
        %v5112 = vpop.permute.xlu0 %5111
        %5113 = vrot.lane.b32.xlu0 %v878, 32
        %v5114 = vpop.permute.xlu0 %5113
        %5115 = vrot.lane.b32.xlu0 %v879, 32
        %v5116 = vpop.permute.xlu0 %5115
        %5117 = vrot.lane.b32.xlu0 %v880, 32
        %v5118 = vpop.permute.xlu0 %5117
        %5119 = vrot.lane.b32.xlu0 %v881, 32
        %v5120 = vpop.permute.xlu0 %5119
        %5121 = vrot.lane.b32.xlu0 %v882, 32
        %v5122 = vpop.permute.xlu0 %5121
        %5123 = vrot.lane.b32.xlu0 %v883, 32
        %v5124 = vpop.permute.xlu0 %5123
        %5125 = vrot.lane.b32.xlu0 %v884, 32
        %v5126 = vpop.permute.xlu0 %5125
        %5127 = vrot.lane.b32.xlu0 %v885, 32
        %v5128 = vpop.permute.xlu0 %5127
        %5129 = vrot.lane.b32.xlu0 %v537, 32
        %v5130 = vpop.permute.xlu0 %5129
        %5131 = vrot.lane.b32.xlu0 %v543, 32
        %v5132 = vpop.permute.xlu0 %5131
        %5133 = vrot.lane.b32.xlu0 %v549, 32
        %v5134 = vpop.permute.xlu0 %5133
        %5135 = vrot.lane.b32.xlu0 %v555, 32
        %v5136 = vpop.permute.xlu0 %5135
        %5137 = vrot.lane.b32.xlu0 %v561, 32
        %v5138 = vpop.permute.xlu0 %5137
        %5139 = vrot.lane.b32.xlu0 %v567, 32
        %v5140 = vpop.permute.xlu0 %5139
        %5141 = vrot.lane.b32.xlu0 %v573, 32
        %v5142 = vpop.permute.xlu0 %5141
        %5143 = vrot.lane.b32.xlu0 %v579, 32
        %v5144 = vpop.permute.xlu0 %5143
        %5145 = vrot.lane.b32.xlu0 %v585, 32
        %v5146 = vpop.permute.xlu0 %5145
        %5147 = vrot.lane.b32.xlu0 %v591, 32
        %v5148 = vpop.permute.xlu0 %5147
        %5149 = vrot.lane.b32.xlu0 %v597, 32
        %v5150 = vpop.permute.xlu0 %5149
        %5151 = vrot.lane.b32.xlu0 %v603, 32
        %v5152 = vpop.permute.xlu0 %5151
        %5153 = vrot.lane.b32.xlu0 %v609, 32
        %v5154 = vpop.permute.xlu0 %5153
        %5155 = vrot.lane.b32.xlu0 %v615, 32
        %v5156 = vpop.permute.xlu0 %5155
        %5157 = vrot.lane.b32.xlu0 %v621, 32
        %v5158 = vpop.permute.xlu0 %5157
        %5159 = vrot.lane.b32.xlu0 %v627, 32
        %v5160 = vpop.permute.xlu0 %5159
        %v5161 = vsel %vm937, %v5098, 0
        %v5163 = vsel %vm937, %v5100, 0
        %v5165 = vsel %vm937, %v5102, 0
        %v5167 = vsel %vm937, %v5104, 0
        %v5169 = vsel %vm937, %v5106, 0
        %v5171 = vsel %vm937, %v5108, 0
        %v5173 = vsel %vm937, %v5110, 0
        %v5175 = vsel %vm937, %v5112, 0
        %v5177 = vsel %vm937, %v5114, 0
        %v5179 = vsel %vm937, %v5116, 0
        %v5181 = vsel %vm937, %v5118, 0
        %v5183 = vsel %vm937, %v5120, 0
        %v5185 = vsel %vm937, %v5122, 0
        %v5187 = vsel %vm937, %v5124, 0
        %v5189 = vsel %vm937, %v5126, 0
        %v5191 = vsel %vm937, %v5128, 0
        %v5193 = vsel %vm937, %v5130, 0
        %v5195 = vsel %vm937, %v5132, 0
        %v5197 = vsel %vm937, %v5134, 0
        %v5199 = vsel %vm937, %v5136, 0
        %v5201 = vsel %vm937, %v5138, 0
        %v5203 = vsel %vm937, %v5140, 0
        %v5205 = vsel %vm937, %v5142, 0
        %v5207 = vsel %vm937, %v5144, 0
        %v5209 = vsel %vm937, %v5146, 0
        %v5211 = vsel %vm937, %v5148, 0
        %v5213 = vsel %vm937, %v5150, 0
        %v5215 = vsel %vm937, %v5152, 0
        %v5217 = vsel %vm937, %v5154, 0
        %v5219 = vsel %vm937, %v5156, 0
        %v5221 = vsel %vm937, %v5158, 0
        %v5223 = vsel %vm937, %v5160, 0
        %5225 = vmatprep.subr.mxu0 0.0
        %5226 = vmatpush1.xpose.msra.mxu0 %v5223
        %5227 = vmatprep.subr.mxu0 0.0
        %5228 = vmatpush1.xpose.msra.mxu0 %v5221
        %5229 = vmatprep.subr.mxu0 0.0
        %5230 = vmatpush1.xpose.msra.mxu0 %v5219
        %5231 = vmatprep.subr.mxu0 0.0
        %5232 = vmatpush1.xpose.msra.mxu0 %v5217
        %5233 = vmatprep.subr.mxu0 0.0
        %5234 = vmatpush1.xpose.msra.mxu0 %v5215
        %5235 = vmatprep.subr.mxu0 0.0
        %5236 = vmatpush1.xpose.msra.mxu0 %v5213
        %5237 = vmatprep.subr.mxu0 0.0
        %5238 = vmatpush1.xpose.msra.mxu0 %v5211
        %5239 = vmatprep.subr.mxu0 0.0
        %5240 = vmatpush1.xpose.msra.mxu0 %v5209
        %5241 = vmatprep.subr.mxu0 0.0
        %5242 = vmatpush1.xpose.msra.mxu0 %v5207
        %5243 = vmatprep.subr.mxu0 0.0
        %5244 = vmatpush1.xpose.msra.mxu0 %v5205
        %5245 = vmatprep.subr.mxu0 0.0
        %5246 = vmatpush1.xpose.msra.mxu0 %v5203
        %5247 = vmatprep.subr.mxu0 0.0
        %5248 = vmatpush1.xpose.msra.mxu0 %v5201
        %5249 = vmatprep.subr.mxu0 0.0
        %5250 = vmatpush1.xpose.msra.mxu0 %v5199
        %5251 = vmatprep.subr.mxu0 0.0
        %5252 = vmatpush1.xpose.msra.mxu0 %v5197
        %5253 = vmatprep.subr.mxu0 0.0
        %5254 = vmatpush1.xpose.msra.mxu0 %v5195
        %5255 = vmatprep.subr.mxu0 0.0
        %5256 = vmatpush1.xpose.msra.mxu0 %v5193
        %5257 = vmatprep.subr.mxu0 0.0
        %5258 = vmatpush2.xpose.msra.mxu0 0.0
        %5259 = vmatprep.subr.mxu0 0.0
        %5260 = vmatpush2.xpose.msra.mxu0 0.0
        %5261 = vmatprep.subr.mxu0 0.0
        %5262 = vmatpush2.xpose.msra.mxu0 0.0
        %5263 = vmatprep.subr.mxu0 0.0
        %5264 = vmatpush2.xpose.msra.mxu0 0.0
        %5265 = vmatprep.subr.mxu0 0.0
        %5266 = vmatpush2.xpose.msra.mxu0 0.0
        %5267 = vmatprep.subr.mxu0 0.0
        %5268 = vmatpush2.xpose.msra.mxu0 0.0
        %5269 = vmatprep.subr.mxu0 0.0
        %5270 = vmatpush2.xpose.msra.mxu0 0.0
        %5271 = vmatprep.subr.mxu0 0.0
        %5272 = vmatpush2.xpose.msra.mxu0 0.0
        %5273 = vmatprep.subr.mxu0 0.0
        %5274 = vmatpush2.xpose.msra.mxu0 0.0
        %5275 = vmatprep.subr.mxu0 0.0
        %5276 = vmatpush2.xpose.msra.mxu0 0.0
        %5277 = vmatprep.subr.mxu0 0.0
        %5278 = vmatpush2.xpose.msra.mxu0 0.0
        %5279 = vmatprep.subr.mxu0 0.0
        %5280 = vmatpush2.xpose.msra.mxu0 0.0
        %5281 = vmatprep.subr.mxu0 0.0
        %5282 = vmatpush2.xpose.msra.mxu0 0.0
        %5283 = vmatprep.subr.mxu0 0.0
        %5284 = vmatpush2.xpose.msra.mxu0 0.0
        %5285 = vmatprep.subr.mxu0 0.0
        %5286 = vmatpush2.xpose.msra.mxu0 0.0
        %5287 = vmatprep.subr.mxu0 0.0
        %5288 = vmatpush2.xpose.msra.mxu0 0.0
        %5289 = vmatprep.mubr.f32.mxu0 0.0
        %5290 = vmatmul.mubr.f32.gmra.mxu0 %v5161
        %v5291 = vpop.f32.mrf.mxu0
        %v5292 = vadd.f32 %v921, %v5291
        %v5293 = vpop.f32.mrf.mxu0
        %5294 = vmatprep.mubr.f32.mxu0 0.0
        %5295 = vmatmul.mubr.f32.gmra.mxu0 %v5163
        %v5296 = vpop.f32.mrf.mxu0
        %v5297 = vadd.f32 %v922, %v5296
        %v5298 = vpop.f32.mrf.mxu0
        %5299 = vmatprep.mubr.f32.mxu0 0.0
        %5300 = vmatmul.mubr.f32.gmra.mxu0 %v5165
        %v5301 = vpop.f32.mrf.mxu0
        %v5302 = vadd.f32 %v923, %v5301
        %v5303 = vpop.f32.mrf.mxu0
        %5304 = vmatprep.mubr.f32.mxu0 0.0
        %5305 = vmatmul.mubr.f32.gmra.mxu0 %v5167
        %v5306 = vpop.f32.mrf.mxu0
        %v5307 = vadd.f32 %v924, %v5306
        %v5308 = vpop.f32.mrf.mxu0
        %5309 = vmatprep.mubr.f32.mxu0 0.0
        %5310 = vmatmul.mubr.f32.gmra.mxu0 %v5169
        %v5311 = vpop.f32.mrf.mxu0
        %v5312 = vadd.f32 %v925, %v5311
        %v5313 = vpop.f32.mrf.mxu0
        %5314 = vmatprep.mubr.f32.mxu0 0.0
        %5315 = vmatmul.mubr.f32.gmra.mxu0 %v5171
        %v5316 = vpop.f32.mrf.mxu0
        %v5317 = vadd.f32 %v926, %v5316
        %v5318 = vpop.f32.mrf.mxu0
        %5319 = vmatprep.mubr.f32.mxu0 0.0
        %5320 = vmatmul.mubr.f32.gmra.mxu0 %v5173
        %v5321 = vpop.f32.mrf.mxu0
        %v5322 = vadd.f32 %v927, %v5321
        %v5323 = vpop.f32.mrf.mxu0
        %5324 = vmatprep.mubr.f32.mxu0 0.0
        %5325 = vmatmul.mubr.f32.gmra.mxu0 %v5175
        %v5326 = vpop.f32.mrf.mxu0
        %v5327 = vadd.f32 %v928, %v5326
        %v5328 = vpop.f32.mrf.mxu0
        %5329 = vmatprep.mubr.f32.mxu0 0.0
        %5330 = vmatmul.mubr.f32.gmra.mxu0 %v5177
        %v5331 = vpop.f32.mrf.mxu0
        %v5332 = vadd.f32 %v929, %v5331
        %v5333 = vpop.f32.mrf.mxu0
        %5334 = vmatprep.mubr.f32.mxu0 0.0
        %5335 = vmatmul.mubr.f32.gmra.mxu0 %v5179
        %v5336 = vpop.f32.mrf.mxu0
        %v5337 = vadd.f32 %v930, %v5336
        %v5338 = vpop.f32.mrf.mxu0
        %5339 = vmatprep.mubr.f32.mxu0 0.0
        %5340 = vmatmul.mubr.f32.gmra.mxu0 %v5181
        %v5341 = vpop.f32.mrf.mxu0
        %v5342 = vadd.f32 %v931, %v5341
        %v5343 = vpop.f32.mrf.mxu0
        %5344 = vmatprep.mubr.f32.mxu0 0.0
        %5345 = vmatmul.mubr.f32.gmra.mxu0 %v5183
        %v5346 = vpop.f32.mrf.mxu0
        %v5347 = vadd.f32 %v932, %v5346
        %v5348 = vpop.f32.mrf.mxu0
        %5349 = vmatprep.mubr.f32.mxu0 0.0
        %5350 = vmatmul.mubr.f32.gmra.mxu0 %v5185
        %v5351 = vpop.f32.mrf.mxu0
        %v5352 = vadd.f32 %v933, %v5351
        %v5353 = vpop.f32.mrf.mxu0
        %5354 = vmatprep.mubr.f32.mxu0 0.0
        %5355 = vmatmul.mubr.f32.gmra.mxu0 %v5187
        %v5356 = vpop.f32.mrf.mxu0
        %v5357 = vadd.f32 %v934, %v5356
        %v5358 = vpop.f32.mrf.mxu0
        %5359 = vmatprep.mubr.f32.mxu0 0.0
        %5360 = vmatmul.mubr.f32.gmra.mxu0 %v5189
        %v5361 = vpop.f32.mrf.mxu0
        %v5362 = vadd.f32 %v935, %v5361
        %v5363 = vpop.f32.mrf.mxu0
        %5364 = vmatprep.mubr.f32.mxu0 0.0
        %5365 = vmatmul.mubr.f32.gmra.mxu0 %v5191
        %v5366 = vpop.f32.mrf.mxu0
        %v5367 = vadd.f32 %v936, %v5366
        %v5368 = vpop.f32.mrf.mxu0
        %5369 = vdwg.mxu0
        %5370 = vmax.xlane.f32.xlu0 %v5019
        %v5371 = vpop.xlane.xlu0 %5370
        %5372 = vmax.xlane.f32.xlu0 %v5024
        %v5373 = vpop.xlane.xlu0 %5372
        %5374 = vmax.xlane.f32.xlu0 %v5029
        %v5375 = vpop.xlane.xlu0 %5374
        %5376 = vmax.xlane.f32.xlu0 %v5034
        %v5377 = vpop.xlane.xlu0 %5376
        %5378 = vmax.xlane.f32.xlu0 %v5039
        %v5379 = vpop.xlane.xlu0 %5378
        %5380 = vmax.xlane.f32.xlu0 %v5044
        %v5381 = vpop.xlane.xlu0 %5380
        %5382 = vmax.xlane.f32.xlu0 %v5049
        %v5383 = vpop.xlane.xlu0 %5382
        %5384 = vmax.xlane.f32.xlu0 %v5054
        %v5385 = vpop.xlane.xlu0 %5384
        %5386 = vmax.xlane.f32.xlu0 %v5059
        %v5387 = vpop.xlane.xlu0 %5386
        %5388 = vmax.xlane.f32.xlu0 %v5064
        %v5389 = vpop.xlane.xlu0 %5388
        %5390 = vmax.xlane.f32.xlu0 %v5069
        %v5391 = vpop.xlane.xlu0 %5390
        %5392 = vmax.xlane.f32.xlu0 %v5074
        %v5393 = vpop.xlane.xlu0 %5392
        %5394 = vmax.xlane.f32.xlu0 %v5079
        %v5395 = vpop.xlane.xlu0 %5394
        %5396 = vmax.xlane.f32.xlu0 %v5084
        %v5397 = vpop.xlane.xlu0 %5396
        %5398 = vmax.xlane.f32.xlu0 %v5089
        %v5399 = vpop.xlane.xlu0 %5398
        %5400 = vmax.xlane.f32.xlu0 %v5094
        %v5401 = vpop.xlane.xlu0 %5400
        %5402 = vmax.xlane.f32.xlu0 %v5292
        %v5403 = vpop.xlane.xlu0 %5402
        %5404 = vmax.xlane.f32.xlu0 %v5297
        %v5405 = vpop.xlane.xlu0 %5404
        %5406 = vmax.xlane.f32.xlu0 %v5302
        %v5407 = vpop.xlane.xlu0 %5406
        %5408 = vmax.xlane.f32.xlu0 %v5307
        %v5409 = vpop.xlane.xlu0 %5408
        %5410 = vmax.xlane.f32.xlu0 %v5312
        %v5411 = vpop.xlane.xlu0 %5410
        %5412 = vmax.xlane.f32.xlu0 %v5317
        %v5413 = vpop.xlane.xlu0 %5412
        %5414 = vmax.xlane.f32.xlu0 %v5322
        %v5415 = vpop.xlane.xlu0 %5414
        %5416 = vmax.xlane.f32.xlu0 %v5327
        %v5417 = vpop.xlane.xlu0 %5416
        %5418 = vmax.xlane.f32.xlu0 %v5332
        %v5419 = vpop.xlane.xlu0 %5418
        %5420 = vmax.xlane.f32.xlu0 %v5337
        %v5421 = vpop.xlane.xlu0 %5420
        %5422 = vmax.xlane.f32.xlu0 %v5342
        %v5423 = vpop.xlane.xlu0 %5422
        %5424 = vmax.xlane.f32.xlu0 %v5347
        %v5425 = vpop.xlane.xlu0 %5424
        %5426 = vmax.xlane.f32.xlu0 %v5352
        %v5427 = vpop.xlane.xlu0 %5426
        %5428 = vmax.xlane.f32.xlu0 %v5357
        %v5429 = vpop.xlane.xlu0 %5428
        %5430 = vmax.xlane.f32.xlu0 %v5362
        %v5431 = vpop.xlane.xlu0 %5430
        %5432 = vmax.xlane.f32.xlu0 %v5367
        %v5433 = vpop.xlane.xlu0 %5432
        %v5434 = vsub.f32 %v5019, %v5371
        %v5435 = vsub.f32 %v5024, %v5373
        %v5436 = vsub.f32 %v5029, %v5375
        %v5437 = vsub.f32 %v5034, %v5377
        %v5438 = vsub.f32 %v5039, %v5379
        %v5439 = vsub.f32 %v5044, %v5381
        %v5440 = vsub.f32 %v5049, %v5383
        %v5441 = vsub.f32 %v5054, %v5385
        %v5442 = vsub.f32 %v5059, %v5387
        %v5443 = vsub.f32 %v5064, %v5389
        %v5444 = vsub.f32 %v5069, %v5391
        %v5445 = vsub.f32 %v5074, %v5393
        %v5446 = vsub.f32 %v5079, %v5395
        %v5447 = vsub.f32 %v5084, %v5397
        %v5448 = vsub.f32 %v5089, %v5399
        %v5449 = vsub.f32 %v5094, %v5401
        %v5450 = vsub.f32 %v5292, %v5403
        %v5451 = vsub.f32 %v5297, %v5405
        %v5452 = vsub.f32 %v5302, %v5407
        %v5453 = vsub.f32 %v5307, %v5409
        %v5454 = vsub.f32 %v5312, %v5411
        %v5455 = vsub.f32 %v5317, %v5413
        %v5456 = vsub.f32 %v5322, %v5415
        %v5457 = vsub.f32 %v5327, %v5417
        %v5458 = vsub.f32 %v5332, %v5419
        %v5459 = vsub.f32 %v5337, %v5421
        %v5460 = vsub.f32 %v5342, %v5423
        %v5461 = vsub.f32 %v5347, %v5425
        %v5462 = vsub.f32 %v5352, %v5427
        %v5463 = vsub.f32 %v5357, %v5429
        %v5464 = vsub.f32 %v5362, %v5431
        %v5465 = vsub.f32 %v5367, %v5433
        %v5466 = vmul.f32 %v5434, 1.442695
        %v5467 = vpow.pop %v5466
        %v5468 = vmul.f32 %v5435, 1.442695
        %v5469 = vpow.pop %v5468
        %v5470 = vmul.f32 %v5436, 1.442695
        %v5471 = vpow.pop %v5470
        %v5472 = vmul.f32 %v5437, 1.442695
        %v5473 = vpow.pop %v5472
        %v5474 = vmul.f32 %v5438, 1.442695
        %v5475 = vpow.pop %v5474
        %v5476 = vmul.f32 %v5439, 1.442695
        %v5477 = vpow.pop %v5476
        %v5478 = vmul.f32 %v5440, 1.442695
        %v5479 = vpow.pop %v5478
        %v5480 = vmul.f32 %v5441, 1.442695
        %v5481 = vpow.pop %v5480
        %v5482 = vmul.f32 %v5442, 1.442695
        %v5483 = vpow.pop %v5482
        %v5484 = vmul.f32 %v5443, 1.442695
        %v5485 = vpow.pop %v5484
        %v5486 = vmul.f32 %v5444, 1.442695
        %v5487 = vpow.pop %v5486
        %v5488 = vmul.f32 %v5445, 1.442695
        %v5489 = vpow.pop %v5488
        %v5490 = vmul.f32 %v5446, 1.442695
        %v5491 = vpow.pop %v5490
        %v5492 = vmul.f32 %v5447, 1.442695
        %v5493 = vpow.pop %v5492
        %v5494 = vmul.f32 %v5448, 1.442695
        %v5495 = vpow.pop %v5494
        %v5496 = vmul.f32 %v5449, 1.442695
        %v5497 = vpow.pop %v5496
        %v5498 = vmul.f32 %v5450, 1.442695
        %v5499 = vpow.pop %v5498
        %v5500 = vmul.f32 %v5451, 1.442695
        %v5501 = vpow.pop %v5500
        %v5502 = vmul.f32 %v5452, 1.442695
        %v5503 = vpow.pop %v5502
        %v5504 = vmul.f32 %v5453, 1.442695
        %v5505 = vpow.pop %v5504
        %v5506 = vmul.f32 %v5454, 1.442695
        %v5507 = vpow.pop %v5506
        %v5508 = vmul.f32 %v5455, 1.442695
        %v5509 = vpow.pop %v5508
        %v5510 = vmul.f32 %v5456, 1.442695
        %v5511 = vpow.pop %v5510
        %v5512 = vmul.f32 %v5457, 1.442695
        %v5513 = vpow.pop %v5512
        %v5514 = vmul.f32 %v5458, 1.442695
        %v5515 = vpow.pop %v5514
        %v5516 = vmul.f32 %v5459, 1.442695
        %v5517 = vpow.pop %v5516
        %v5518 = vmul.f32 %v5460, 1.442695
        %v5519 = vpow.pop %v5518
        %v5520 = vmul.f32 %v5461, 1.442695
        %v5521 = vpow.pop %v5520
        %v5522 = vmul.f32 %v5462, 1.442695
        %v5523 = vpow.pop %v5522
        %v5524 = vmul.f32 %v5463, 1.442695
        %v5525 = vpow.pop %v5524
        %v5526 = vmul.f32 %v5464, 1.442695
        %v5527 = vpow.pop %v5526
        %v5528 = vmul.f32 %v5465, 1.442695
        %v5529 = vpow.pop %v5528
        %5530 = vadd.xlane.f32.xlu0 %v5467
        %v5531 = vpop.xlane.xlu0 %5530
        %5532 = vadd.xlane.f32.xlu0 %v5469
        %v5533 = vpop.xlane.xlu0 %5532
        %5534 = vadd.xlane.f32.xlu0 %v5471
        %v5535 = vpop.xlane.xlu0 %5534
        %5536 = vadd.xlane.f32.xlu0 %v5473
        %v5537 = vpop.xlane.xlu0 %5536
        %5538 = vadd.xlane.f32.xlu0 %v5475
        %v5539 = vpop.xlane.xlu0 %5538
        %5540 = vadd.xlane.f32.xlu0 %v5477
        %v5541 = vpop.xlane.xlu0 %5540
        %5542 = vadd.xlane.f32.xlu0 %v5479
        %v5543 = vpop.xlane.xlu0 %5542
        %5544 = vadd.xlane.f32.xlu0 %v5481
        %v5545 = vpop.xlane.xlu0 %5544
        %5546 = vadd.xlane.f32.xlu0 %v5483
        %v5547 = vpop.xlane.xlu0 %5546
        %5548 = vadd.xlane.f32.xlu0 %v5485
        %v5549 = vpop.xlane.xlu0 %5548
        %5550 = vadd.xlane.f32.xlu0 %v5487
        %v5551 = vpop.xlane.xlu0 %5550
        %5552 = vadd.xlane.f32.xlu0 %v5489
        %v5553 = vpop.xlane.xlu0 %5552
        %5554 = vadd.xlane.f32.xlu0 %v5491
        %v5555 = vpop.xlane.xlu0 %5554
        %5556 = vadd.xlane.f32.xlu0 %v5493
        %v5557 = vpop.xlane.xlu0 %5556
        %5558 = vadd.xlane.f32.xlu0 %v5495
        %v5559 = vpop.xlane.xlu0 %5558
        %5560 = vadd.xlane.f32.xlu0 %v5497
        %v5561 = vpop.xlane.xlu0 %5560
        %5562 = vadd.xlane.f32.xlu0 %v5499
        %v5563 = vpop.xlane.xlu0 %5562
        %5564 = vadd.xlane.f32.xlu0 %v5501
        %v5565 = vpop.xlane.xlu0 %5564
        %5566 = vadd.xlane.f32.xlu0 %v5503
        %v5567 = vpop.xlane.xlu0 %5566
        %5568 = vadd.xlane.f32.xlu0 %v5505
        %v5569 = vpop.xlane.xlu0 %5568
        %5570 = vadd.xlane.f32.xlu0 %v5507
        %v5571 = vpop.xlane.xlu0 %5570
        %5572 = vadd.xlane.f32.xlu0 %v5509
        %v5573 = vpop.xlane.xlu0 %5572
        %5574 = vadd.xlane.f32.xlu0 %v5511
        %v5575 = vpop.xlane.xlu0 %5574
        %5576 = vadd.xlane.f32.xlu0 %v5513
        %v5577 = vpop.xlane.xlu0 %5576
        %5578 = vadd.xlane.f32.xlu0 %v5515
        %v5579 = vpop.xlane.xlu0 %5578
        %5580 = vadd.xlane.f32.xlu0 %v5517
        %v5581 = vpop.xlane.xlu0 %5580
        %5582 = vadd.xlane.f32.xlu0 %v5519
        %v5583 = vpop.xlane.xlu0 %5582
        %5584 = vadd.xlane.f32.xlu0 %v5521
        %v5585 = vpop.xlane.xlu0 %5584
        %5586 = vadd.xlane.f32.xlu0 %v5523
        %v5587 = vpop.xlane.xlu0 %5586
        %5588 = vadd.xlane.f32.xlu0 %v5525
        %v5589 = vpop.xlane.xlu0 %5588
        %5590 = vadd.xlane.f32.xlu0 %v5527
        %v5591 = vpop.xlane.xlu0 %5590
        %5592 = vadd.xlane.f32.xlu0 %v5529
        %v5593 = vpop.xlane.xlu0 %5592
        %v5594 = vrcp.pop %v5531
        %v5595 = vrcp.pop %v5533
        %v5596 = vrcp.pop %v5535
        %v5597 = vrcp.pop %v5537
        %v5598 = vrcp.pop %v5539
        %v5599 = vrcp.pop %v5541
        %v5600 = vrcp.pop %v5543
        %v5601 = vrcp.pop %v5545
        %v5602 = vrcp.pop %v5547
        %v5603 = vrcp.pop %v5549
        %v5604 = vrcp.pop %v5551
        %v5605 = vrcp.pop %v5553
        %v5606 = vrcp.pop %v5555
        %v5607 = vrcp.pop %v5557
        %v5608 = vrcp.pop %v5559
        %v5609 = vrcp.pop %v5561
        %v5610 = vrcp.pop %v5563
        %v5611 = vrcp.pop %v5565
        %v5612 = vrcp.pop %v5567
        %v5613 = vrcp.pop %v5569
        %v5614 = vrcp.pop %v5571
        %v5615 = vrcp.pop %v5573
        %v5616 = vrcp.pop %v5575
        %v5617 = vrcp.pop %v5577
        %v5618 = vrcp.pop %v5579
        %v5619 = vrcp.pop %v5581
        %v5620 = vrcp.pop %v5583
        %v5621 = vrcp.pop %v5585
        %v5622 = vrcp.pop %v5587
        %v5623 = vrcp.pop %v5589
        %v5624 = vrcp.pop %v5591
        %v5625 = vrcp.pop %v5593
        %5626 = vrot.lane.b32.xlu0 %v696, 32
        %v5627 = vpop.permute.xlu0 %5626
        %5628 = vrot.lane.b32.xlu0 %v701, 32
        %v5629 = vpop.permute.xlu0 %5628
        %5630 = vrot.lane.b32.xlu0 %v706, 32
        %v5631 = vpop.permute.xlu0 %5630
        %5632 = vrot.lane.b32.xlu0 %v711, 32
        %v5633 = vpop.permute.xlu0 %5632
        %5634 = vrot.lane.b32.xlu0 %v716, 32
        %v5635 = vpop.permute.xlu0 %5634
        %5636 = vrot.lane.b32.xlu0 %v721, 32
        %v5637 = vpop.permute.xlu0 %5636
        %5638 = vrot.lane.b32.xlu0 %v726, 32
        %v5639 = vpop.permute.xlu0 %5638
        %5640 = vrot.lane.b32.xlu0 %v731, 32
        %v5641 = vpop.permute.xlu0 %5640
        %5642 = vrot.lane.b32.xlu0 %v736, 32
        %v5643 = vpop.permute.xlu0 %5642
        %5644 = vrot.lane.b32.xlu0 %v741, 32
        %v5645 = vpop.permute.xlu0 %5644
        %5646 = vrot.lane.b32.xlu0 %v746, 32
        %v5647 = vpop.permute.xlu0 %5646
        %5648 = vrot.lane.b32.xlu0 %v751, 32
        %v5649 = vpop.permute.xlu0 %5648
        %5650 = vrot.lane.b32.xlu0 %v756, 32
        %v5651 = vpop.permute.xlu0 %5650
        %5652 = vrot.lane.b32.xlu0 %v761, 32
        %v5653 = vpop.permute.xlu0 %5652
        %5654 = vrot.lane.b32.xlu0 %v766, 32
        %v5655 = vpop.permute.xlu0 %5654
        %5656 = vrot.lane.b32.xlu0 %v771, 32
        %v5657 = vpop.permute.xlu0 %5656
        %5674 = vmatprep.subr.mxu0 0.0
        %5675 = vmatpush1.msra.mxu0 %v5657
        %5676 = vmatprep.subr.mxu0 0.0
        %5677 = vmatpush1.msra.mxu0 %v5655
        %5678 = vmatprep.subr.mxu0 0.0
        %5679 = vmatpush1.msra.mxu0 %v5653
        %5680 = vmatprep.subr.mxu0 0.0
        %5681 = vmatpush1.msra.mxu0 %v5651
        %5682 = vmatprep.subr.mxu0 0.0
        %5683 = vmatpush1.msra.mxu0 %v5649
        %5684 = vmatprep.subr.mxu0 0.0
        %5685 = vmatpush1.msra.mxu0 %v5647
        %5686 = vmatprep.subr.mxu0 0.0
        %5687 = vmatpush1.msra.mxu0 %v5645
        %5688 = vmatprep.subr.mxu0 0.0
        %5689 = vmatpush1.msra.mxu0 %v5643
        %5690 = vmatprep.subr.mxu0 0.0
        %5691 = vmatpush1.msra.mxu0 %v5641
        %5692 = vmatprep.subr.mxu0 0.0
        %5693 = vmatpush1.msra.mxu0 %v5639
        %5694 = vmatprep.subr.mxu0 0.0
        %5695 = vmatpush1.msra.mxu0 %v5637
        %5696 = vmatprep.subr.mxu0 0.0
        %5697 = vmatpush1.msra.mxu0 %v5635
        %5698 = vmatprep.subr.mxu0 0.0
        %5699 = vmatpush1.msra.mxu0 %v5633
        %5700 = vmatprep.subr.mxu0 0.0
        %5701 = vmatpush1.msra.mxu0 %v5631
        %5702 = vmatprep.subr.mxu0 0.0
        %5703 = vmatpush1.msra.mxu0 %v5629
        %5704 = vmatprep.subr.mxu0 0.0
        %5705 = vmatpush1.msra.mxu0 %v5627
        %5706 = vmatprep.subr.mxu0 0.0
        %5707 = vmatpush2.msra.mxu0 0.0
        %5708 = vmatprep.subr.mxu0 0.0
        %5709 = vmatpush2.msra.mxu0 0.0
        %5710 = vmatprep.subr.mxu0 0.0
        %5711 = vmatpush2.msra.mxu0 0.0
        %5712 = vmatprep.subr.mxu0 0.0
        %5713 = vmatpush2.msra.mxu0 0.0
        %5714 = vmatprep.subr.mxu0 0.0
        %5715 = vmatpush2.msra.mxu0 0.0
        %5716 = vmatprep.subr.mxu0 0.0
        %5717 = vmatpush2.msra.mxu0 0.0
        %5718 = vmatprep.subr.mxu0 0.0
        %5719 = vmatpush2.msra.mxu0 0.0
        %5720 = vmatprep.subr.mxu0 0.0
        %5721 = vmatpush2.msra.mxu0 0.0
        %5722 = vmatprep.subr.mxu0 0.0
        %5723 = vmatpush2.msra.mxu0 0.0
        %5724 = vmatprep.subr.mxu0 0.0
        %5725 = vmatpush2.msra.mxu0 0.0
        %5726 = vmatprep.subr.mxu0 0.0
        %5727 = vmatpush2.msra.mxu0 0.0
        %5728 = vmatprep.subr.mxu0 0.0
        %5729 = vmatpush2.msra.mxu0 0.0
        %5730 = vmatprep.subr.mxu0 0.0
        %5731 = vmatpush2.msra.mxu0 0.0
        %5732 = vmatprep.subr.mxu0 0.0
        %5733 = vmatpush2.msra.mxu0 0.0
        %5734 = vmatprep.subr.mxu0 0.0
        %5735 = vmatpush2.msra.mxu0 0.0
        %5736 = vmatprep.subr.mxu0 0.0
        %5737 = vmatpush2.msra.mxu0 0.0
        %5738 = vmatprep.mubr.f32.mxu0 0.0
        %5739 = vmatmul.mubr.f32.gmra.mxu0 %v5467
        %v5740 = vpop.f32.mrf.mxu0
        %v5741 = vadd.f32 0.0, %v5740
        %v5742 = vpop.f32.mrf.mxu0
        %5743 = vmatprep.mubr.f32.mxu0 0.0
        %5744 = vmatmul.mubr.f32.gmra.mxu0 %v5469
        %v5745 = vpop.f32.mrf.mxu0
        %v5746 = vadd.f32 0.0, %v5745
        %v5747 = vpop.f32.mrf.mxu0
        %5748 = vmatprep.mubr.f32.mxu0 0.0
        %5749 = vmatmul.mubr.f32.gmra.mxu0 %v5471
        %v5750 = vpop.f32.mrf.mxu0
        %v5751 = vadd.f32 0.0, %v5750
        %v5752 = vpop.f32.mrf.mxu0
        %5753 = vmatprep.mubr.f32.mxu0 0.0
        %5754 = vmatmul.mubr.f32.gmra.mxu0 %v5473
        %v5755 = vpop.f32.mrf.mxu0
        %v5756 = vadd.f32 0.0, %v5755
        %v5757 = vpop.f32.mrf.mxu0
        %5758 = vmatprep.mubr.f32.mxu0 0.0
        %5759 = vmatmul.mubr.f32.gmra.mxu0 %v5475
        %v5760 = vpop.f32.mrf.mxu0
        %v5761 = vadd.f32 0.0, %v5760
        %v5762 = vpop.f32.mrf.mxu0
        %5763 = vmatprep.mubr.f32.mxu0 0.0
        %5764 = vmatmul.mubr.f32.gmra.mxu0 %v5477
        %v5765 = vpop.f32.mrf.mxu0
        %v5766 = vadd.f32 0.0, %v5765
        %v5767 = vpop.f32.mrf.mxu0
        %5768 = vmatprep.mubr.f32.mxu0 0.0
        %5769 = vmatmul.mubr.f32.gmra.mxu0 %v5479
        %v5770 = vpop.f32.mrf.mxu0
        %v5771 = vadd.f32 0.0, %v5770
        %v5772 = vpop.f32.mrf.mxu0
        %5773 = vmatprep.mubr.f32.mxu0 0.0
        %5774 = vmatmul.mubr.f32.gmra.mxu0 %v5481
        %v5775 = vpop.f32.mrf.mxu0
        %v5776 = vadd.f32 0.0, %v5775
        %v5777 = vpop.f32.mrf.mxu0
        %5778 = vmatprep.mubr.f32.mxu0 0.0
        %5779 = vmatmul.mubr.f32.gmra.mxu0 %v5483
        %v5780 = vpop.f32.mrf.mxu0
        %v5781 = vadd.f32 0.0, %v5780
        %v5782 = vpop.f32.mrf.mxu0
        %5783 = vmatprep.mubr.f32.mxu0 0.0
        %5784 = vmatmul.mubr.f32.gmra.mxu0 %v5485
        %v5785 = vpop.f32.mrf.mxu0
        %v5786 = vadd.f32 0.0, %v5785
        %v5787 = vpop.f32.mrf.mxu0
        %5788 = vmatprep.mubr.f32.mxu0 0.0
        %5789 = vmatmul.mubr.f32.gmra.mxu0 %v5487
        %v5790 = vpop.f32.mrf.mxu0
        %v5791 = vadd.f32 0.0, %v5790
        %v5792 = vpop.f32.mrf.mxu0
        %5793 = vmatprep.mubr.f32.mxu0 0.0
        %5794 = vmatmul.mubr.f32.gmra.mxu0 %v5489
        %v5795 = vpop.f32.mrf.mxu0
        %v5796 = vadd.f32 0.0, %v5795
        %v5797 = vpop.f32.mrf.mxu0
        %5798 = vmatprep.mubr.f32.mxu0 0.0
        %5799 = vmatmul.mubr.f32.gmra.mxu0 %v5491
        %v5800 = vpop.f32.mrf.mxu0
        %v5801 = vadd.f32 0.0, %v5800
        %v5802 = vpop.f32.mrf.mxu0
        %5803 = vmatprep.mubr.f32.mxu0 0.0
        %5804 = vmatmul.mubr.f32.gmra.mxu0 %v5493
        %v5805 = vpop.f32.mrf.mxu0
        %v5806 = vadd.f32 0.0, %v5805
        %v5807 = vpop.f32.mrf.mxu0
        %5808 = vmatprep.mubr.f32.mxu0 0.0
        %5809 = vmatmul.mubr.f32.gmra.mxu0 %v5495
        %v5810 = vpop.f32.mrf.mxu0
        %v5811 = vadd.f32 0.0, %v5810
        %v5812 = vpop.f32.mrf.mxu0
        %5813 = vmatprep.mubr.f32.mxu0 0.0
        %5814 = vmatmul.mubr.f32.gmra.mxu0 %v5497
        %v5815 = vpop.f32.mrf.mxu0
        %v5816 = vadd.f32 0.0, %v5815
        %v5817 = vpop.f32.mrf.mxu0
        %5818 = vdwg.mxu0
        %5819 = vrot.lane.b32.xlu0 %v776, 32
        %v5820 = vpop.permute.xlu0 %5819
        %5821 = vrot.lane.b32.xlu0 %v781, 32
        %v5822 = vpop.permute.xlu0 %5821
        %5823 = vrot.lane.b32.xlu0 %v786, 32
        %v5824 = vpop.permute.xlu0 %5823
        %5825 = vrot.lane.b32.xlu0 %v791, 32
        %v5826 = vpop.permute.xlu0 %5825
        %5827 = vrot.lane.b32.xlu0 %v796, 32
        %v5828 = vpop.permute.xlu0 %5827
        %5829 = vrot.lane.b32.xlu0 %v801, 32
        %v5830 = vpop.permute.xlu0 %5829
        %5831 = vrot.lane.b32.xlu0 %v806, 32
        %v5832 = vpop.permute.xlu0 %5831
        %5833 = vrot.lane.b32.xlu0 %v811, 32
        %v5834 = vpop.permute.xlu0 %5833
        %5835 = vrot.lane.b32.xlu0 %v816, 32
        %v5836 = vpop.permute.xlu0 %5835
        %5837 = vrot.lane.b32.xlu0 %v821, 32
        %v5838 = vpop.permute.xlu0 %5837
        %5839 = vrot.lane.b32.xlu0 %v826, 32
        %v5840 = vpop.permute.xlu0 %5839
        %5841 = vrot.lane.b32.xlu0 %v831, 32
        %v5842 = vpop.permute.xlu0 %5841
        %5843 = vrot.lane.b32.xlu0 %v836, 32
        %v5844 = vpop.permute.xlu0 %5843
        %5845 = vrot.lane.b32.xlu0 %v841, 32
        %v5846 = vpop.permute.xlu0 %5845
        %5847 = vrot.lane.b32.xlu0 %v846, 32
        %v5848 = vpop.permute.xlu0 %5847
        %5849 = vrot.lane.b32.xlu0 %v851, 32
        %v5850 = vpop.permute.xlu0 %5849
        %5867 = vmatprep.subr.mxu0 0.0
        %5868 = vmatpush1.msra.mxu0 %v5850
        %5869 = vmatprep.subr.mxu0 0.0
        %5870 = vmatpush1.msra.mxu0 %v5848
        %5871 = vmatprep.subr.mxu0 0.0
        %5872 = vmatpush1.msra.mxu0 %v5846
        %5873 = vmatprep.subr.mxu0 0.0
        %5874 = vmatpush1.msra.mxu0 %v5844
        %5875 = vmatprep.subr.mxu0 0.0
        %5876 = vmatpush1.msra.mxu0 %v5842
        %5877 = vmatprep.subr.mxu0 0.0
        %5878 = vmatpush1.msra.mxu0 %v5840
        %5879 = vmatprep.subr.mxu0 0.0
        %5880 = vmatpush1.msra.mxu0 %v5838
        %5881 = vmatprep.subr.mxu0 0.0
        %5882 = vmatpush1.msra.mxu0 %v5836
        %5883 = vmatprep.subr.mxu0 0.0
        %5884 = vmatpush1.msra.mxu0 %v5834
        %5885 = vmatprep.subr.mxu0 0.0
        %5886 = vmatpush1.msra.mxu0 %v5832
        %5887 = vmatprep.subr.mxu0 0.0
        %5888 = vmatpush1.msra.mxu0 %v5830
        %5889 = vmatprep.subr.mxu0 0.0
        %5890 = vmatpush1.msra.mxu0 %v5828
        %5891 = vmatprep.subr.mxu0 0.0
        %5892 = vmatpush1.msra.mxu0 %v5826
        %5893 = vmatprep.subr.mxu0 0.0
        %5894 = vmatpush1.msra.mxu0 %v5824
        %5895 = vmatprep.subr.mxu0 0.0
        %5896 = vmatpush1.msra.mxu0 %v5822
        %5897 = vmatprep.subr.mxu0 0.0
        %5898 = vmatpush1.msra.mxu0 %v5820
        %5899 = vmatprep.subr.mxu0 0.0
        %5900 = vmatpush2.msra.mxu0 0.0
        %5901 = vmatprep.subr.mxu0 0.0
        %5902 = vmatpush2.msra.mxu0 0.0
        %5903 = vmatprep.subr.mxu0 0.0
        %5904 = vmatpush2.msra.mxu0 0.0
        %5905 = vmatprep.subr.mxu0 0.0
        %5906 = vmatpush2.msra.mxu0 0.0
        %5907 = vmatprep.subr.mxu0 0.0
        %5908 = vmatpush2.msra.mxu0 0.0
        %5909 = vmatprep.subr.mxu0 0.0
        %5910 = vmatpush2.msra.mxu0 0.0
        %5911 = vmatprep.subr.mxu0 0.0
        %5912 = vmatpush2.msra.mxu0 0.0
        %5913 = vmatprep.subr.mxu0 0.0
        %5914 = vmatpush2.msra.mxu0 0.0
        %5915 = vmatprep.subr.mxu0 0.0
        %5916 = vmatpush2.msra.mxu0 0.0
        %5917 = vmatprep.subr.mxu0 0.0
        %5918 = vmatpush2.msra.mxu0 0.0
        %5919 = vmatprep.subr.mxu0 0.0
        %5920 = vmatpush2.msra.mxu0 0.0
        %5921 = vmatprep.subr.mxu0 0.0
        %5922 = vmatpush2.msra.mxu0 0.0
        %5923 = vmatprep.subr.mxu0 0.0
        %5924 = vmatpush2.msra.mxu0 0.0
        %5925 = vmatprep.subr.mxu0 0.0
        %5926 = vmatpush2.msra.mxu0 0.0
        %5927 = vmatprep.subr.mxu0 0.0
        %5928 = vmatpush2.msra.mxu0 0.0
        %5929 = vmatprep.subr.mxu0 0.0
        %5930 = vmatpush2.msra.mxu0 0.0
        %5931 = vmatprep.mubr.f32.mxu0 0.0
        %5932 = vmatmul.mubr.f32.gmra.mxu0 %v5499
        %v5933 = vpop.f32.mrf.mxu0
        %v5934 = vadd.f32 0.0, %v5933
        %v5935 = vpop.f32.mrf.mxu0
        %5936 = vmatprep.mubr.f32.mxu0 0.0
        %5937 = vmatmul.mubr.f32.gmra.mxu0 %v5501
        %v5938 = vpop.f32.mrf.mxu0
        %v5939 = vadd.f32 0.0, %v5938
        %v5940 = vpop.f32.mrf.mxu0
        %5941 = vmatprep.mubr.f32.mxu0 0.0
        %5942 = vmatmul.mubr.f32.gmra.mxu0 %v5503
        %v5943 = vpop.f32.mrf.mxu0
        %v5944 = vadd.f32 0.0, %v5943
        %v5945 = vpop.f32.mrf.mxu0
        %5946 = vmatprep.mubr.f32.mxu0 0.0
        %5947 = vmatmul.mubr.f32.gmra.mxu0 %v5505
        %v5948 = vpop.f32.mrf.mxu0
        %v5949 = vadd.f32 0.0, %v5948
        %v5950 = vpop.f32.mrf.mxu0
        %5951 = vmatprep.mubr.f32.mxu0 0.0
        %5952 = vmatmul.mubr.f32.gmra.mxu0 %v5507
        %v5953 = vpop.f32.mrf.mxu0
        %v5954 = vadd.f32 0.0, %v5953
        %v5955 = vpop.f32.mrf.mxu0
        %5956 = vmatprep.mubr.f32.mxu0 0.0
        %5957 = vmatmul.mubr.f32.gmra.mxu0 %v5509
        %v5958 = vpop.f32.mrf.mxu0
        %v5959 = vadd.f32 0.0, %v5958
        %v5960 = vpop.f32.mrf.mxu0
        %5961 = vmatprep.mubr.f32.mxu0 0.0
        %5962 = vmatmul.mubr.f32.gmra.mxu0 %v5511
        %v5963 = vpop.f32.mrf.mxu0
        %v5964 = vadd.f32 0.0, %v5963
        %v5965 = vpop.f32.mrf.mxu0
        %5966 = vmatprep.mubr.f32.mxu0 0.0
        %5967 = vmatmul.mubr.f32.gmra.mxu0 %v5513
        %v5968 = vpop.f32.mrf.mxu0
        %v5969 = vadd.f32 0.0, %v5968
        %v5970 = vpop.f32.mrf.mxu0
        %5971 = vmatprep.mubr.f32.mxu0 0.0
        %5972 = vmatmul.mubr.f32.gmra.mxu0 %v5515
        %v5973 = vpop.f32.mrf.mxu0
        %v5974 = vadd.f32 0.0, %v5973
        %v5975 = vpop.f32.mrf.mxu0
        %5976 = vmatprep.mubr.f32.mxu0 0.0
        %5977 = vmatmul.mubr.f32.gmra.mxu0 %v5517
        %v5978 = vpop.f32.mrf.mxu0
        %v5979 = vadd.f32 0.0, %v5978
        %v5980 = vpop.f32.mrf.mxu0
        %5981 = vmatprep.mubr.f32.mxu0 0.0
        %5982 = vmatmul.mubr.f32.gmra.mxu0 %v5519
        %v5983 = vpop.f32.mrf.mxu0
        %v5984 = vadd.f32 0.0, %v5983
        %v5985 = vpop.f32.mrf.mxu0
        %5986 = vmatprep.mubr.f32.mxu0 0.0
        %5987 = vmatmul.mubr.f32.gmra.mxu0 %v5521
        %v5988 = vpop.f32.mrf.mxu0
        %v5989 = vadd.f32 0.0, %v5988
        %v5990 = vpop.f32.mrf.mxu0
        %5991 = vmatprep.mubr.f32.mxu0 0.0
        %5992 = vmatmul.mubr.f32.gmra.mxu0 %v5523
        %v5993 = vpop.f32.mrf.mxu0
        %v5994 = vadd.f32 0.0, %v5993
        %v5995 = vpop.f32.mrf.mxu0
        %5996 = vmatprep.mubr.f32.mxu0 0.0
        %5997 = vmatmul.mubr.f32.gmra.mxu0 %v5525
        %v5998 = vpop.f32.mrf.mxu0
        %v5999 = vadd.f32 0.0, %v5998
        %v6000 = vpop.f32.mrf.mxu0
        %6001 = vmatprep.mubr.f32.mxu0 0.0
        %6002 = vmatmul.mubr.f32.gmra.mxu0 %v5527
        %v6003 = vpop.f32.mrf.mxu0
        %v6004 = vadd.f32 0.0, %v6003
        %v6005 = vpop.f32.mrf.mxu0
        %6006 = vmatprep.mubr.f32.mxu0 0.0
        %6007 = vmatmul.mubr.f32.gmra.mxu0 %v5529
        %v6008 = vpop.f32.mrf.mxu0
        %v6009 = vadd.f32 0.0, %v6008
        %v6010 = vpop.f32.mrf.mxu0
        %6011 = vdwg.mxu0
        %v6012 = vmul.f32 %v5741, %v5594
        %v6013 = vmul.f32 %v5746, %v5595
        %v6014 = vmul.f32 %v5751, %v5596
        %v6015 = vmul.f32 %v5756, %v5597
        %v6016 = vmul.f32 %v5761, %v5598
        %v6017 = vmul.f32 %v5766, %v5599
        %v6018 = vmul.f32 %v5771, %v5600
        %v6019 = vmul.f32 %v5776, %v5601
        %v6020 = vmul.f32 %v5781, %v5602
        %v6021 = vmul.f32 %v5786, %v5603
        %v6022 = vmul.f32 %v5791, %v5604
        %v6023 = vmul.f32 %v5796, %v5605
        %v6024 = vmul.f32 %v5801, %v5606
        %v6025 = vmul.f32 %v5806, %v5607
        %v6026 = vmul.f32 %v5811, %v5608
        %v6027 = vmul.f32 %v5816, %v5609
        %v6028 = vmul.f32 %v5934, %v5610
        %v6029 = vmul.f32 %v5939, %v5611
        %v6030 = vmul.f32 %v5944, %v5612
        %v6031 = vmul.f32 %v5949, %v5613
        %v6032 = vmul.f32 %v5954, %v5614
        %v6033 = vmul.f32 %v5959, %v5615
        %v6034 = vmul.f32 %v5964, %v5616
        %v6035 = vmul.f32 %v5969, %v5617
        %v6036 = vmul.f32 %v5974, %v5618
        %v6037 = vmul.f32 %v5979, %v5619
        %v6038 = vmul.f32 %v5984, %v5620
        %v6039 = vmul.f32 %v5989, %v5621
        %v6040 = vmul.f32 %v5994, %v5622
        %v6041 = vmul.f32 %v5999, %v5623
        %v6042 = vmul.f32 %v6004, %v5624
        %v6043 = vmul.f32 %v6009, %v5625
        %6076 = vrot.lane.b32.xlu0 %v6012, 96
        %v6077 = vpop.permute.xlu0 %6076
        %6078 = vrot.lane.b32.xlu0 %v6013, 96
        %v6079 = vpop.permute.xlu0 %6078
        %6080 = vrot.lane.b32.xlu0 %v6014, 96
        %v6081 = vpop.permute.xlu0 %6080
        %6082 = vrot.lane.b32.xlu0 %v6015, 96
        %v6083 = vpop.permute.xlu0 %6082
        %6084 = vrot.lane.b32.xlu0 %v6016, 96
        %v6085 = vpop.permute.xlu0 %6084
        %6086 = vrot.lane.b32.xlu0 %v6017, 96
        %v6087 = vpop.permute.xlu0 %6086
        %6088 = vrot.lane.b32.xlu0 %v6018, 96
        %v6089 = vpop.permute.xlu0 %6088
        %6090 = vrot.lane.b32.xlu0 %v6019, 96
        %v6091 = vpop.permute.xlu0 %6090
        %6092 = vrot.lane.b32.xlu0 %v6020, 96
        %v6093 = vpop.permute.xlu0 %6092
        %6094 = vrot.lane.b32.xlu0 %v6021, 96
        %v6095 = vpop.permute.xlu0 %6094
        %6096 = vrot.lane.b32.xlu0 %v6022, 96
        %v6097 = vpop.permute.xlu0 %6096
        %6098 = vrot.lane.b32.xlu0 %v6023, 96
        %v6099 = vpop.permute.xlu0 %6098
        %6100 = vrot.lane.b32.xlu0 %v6024, 96
        %v6101 = vpop.permute.xlu0 %6100
        %6102 = vrot.lane.b32.xlu0 %v6025, 96
        %v6103 = vpop.permute.xlu0 %6102
        %6104 = vrot.lane.b32.xlu0 %v6026, 96
        %v6105 = vpop.permute.xlu0 %6104
        %6106 = vrot.lane.b32.xlu0 %v6027, 96
        %v6107 = vpop.permute.xlu0 %6106
        %6108 = vrot.lane.b32.xlu0 %v6028, 96
        %v6109 = vpop.permute.xlu0 %6108
        %6110 = vrot.lane.b32.xlu0 %v6029, 96
        %v6111 = vpop.permute.xlu0 %6110
        %6112 = vrot.lane.b32.xlu0 %v6030, 96
        %v6113 = vpop.permute.xlu0 %6112
        %6114 = vrot.lane.b32.xlu0 %v6031, 96
        %v6115 = vpop.permute.xlu0 %6114
        %6116 = vrot.lane.b32.xlu0 %v6032, 96
        %v6117 = vpop.permute.xlu0 %6116
        %6118 = vrot.lane.b32.xlu0 %v6033, 96
        %v6119 = vpop.permute.xlu0 %6118
        %6120 = vrot.lane.b32.xlu0 %v6034, 96
        %v6121 = vpop.permute.xlu0 %6120
        %6122 = vrot.lane.b32.xlu0 %v6035, 96
        %v6123 = vpop.permute.xlu0 %6122
        %6124 = vrot.lane.b32.xlu0 %v6036, 96
        %v6125 = vpop.permute.xlu0 %6124
        %6126 = vrot.lane.b32.xlu0 %v6037, 96
        %v6127 = vpop.permute.xlu0 %6126
        %6128 = vrot.lane.b32.xlu0 %v6038, 96
        %v6129 = vpop.permute.xlu0 %6128
        %6130 = vrot.lane.b32.xlu0 %v6039, 96
        %v6131 = vpop.permute.xlu0 %6130
        %6132 = vrot.lane.b32.xlu0 %v6040, 96
        %v6133 = vpop.permute.xlu0 %6132
        %6134 = vrot.lane.b32.xlu0 %v6041, 96
        %v6135 = vpop.permute.xlu0 %6134
        %6136 = vrot.lane.b32.xlu0 %v6042, 96
        %v6137 = vpop.permute.xlu0 %6136
        %6138 = vrot.lane.b32.xlu0 %v6043, 96
        %v6139 = vpop.permute.xlu0 %6138
        %vm6172 = vcmask 1048320
        %6173 = vst.msk [vmem:[#allocation2] sm:$0xff] %vm6172, %v6077
        %6174 = vst.msk [vmem:[#allocation2 + $0x8] sm:$0xff] %vm6172, %v6079
        %6175 = vst.msk [vmem:[#allocation2 + $0x10] sm:$0xff] %vm6172, %v6081
        %6176 = vst.msk [vmem:[#allocation2 + $0x18] sm:$0xff] %vm6172, %v6083
        %6177 = vst.msk [vmem:[#allocation2 + $0x20] sm:$0xff] %vm6172, %v6085
        %6178 = vst.msk [vmem:[#allocation2 + $0x28] sm:$0xff] %vm6172, %v6087
        %6179 = vst.msk [vmem:[#allocation2 + $0x30] sm:$0xff] %vm6172, %v6089
        %6180 = vst.msk [vmem:[#allocation2 + $0x38] sm:$0xff] %vm6172, %v6091
        %6181 = vst.msk [vmem:[#allocation2 + $0x40] sm:$0xff] %vm6172, %v6093
        %6182 = vst.msk [vmem:[#allocation2 + $0x48] sm:$0xff] %vm6172, %v6095
        %6183 = vst.msk [vmem:[#allocation2 + $0x50] sm:$0xff] %vm6172, %v6097
        %6184 = vst.msk [vmem:[#allocation2 + $0x58] sm:$0xff] %vm6172, %v6099
        %6185 = vst.msk [vmem:[#allocation2 + $0x60] sm:$0xff] %vm6172, %v6101
        %6186 = vst.msk [vmem:[#allocation2 + $0x68] sm:$0xff] %vm6172, %v6103
        %6187 = vst.msk [vmem:[#allocation2 + $0x70] sm:$0xff] %vm6172, %v6105
        %6188 = vst.msk [vmem:[#allocation2 + $0x78] sm:$0xff] %vm6172, %v6107
        %6189 = vst.msk [vmem:[#allocation2 + $0x80] sm:$0xff] %vm6172, %v6109
        %6190 = vst.msk [vmem:[#allocation2 + $0x88] sm:$0xff] %vm6172, %v6111
        %6191 = vst.msk [vmem:[#allocation2 + $0x90] sm:$0xff] %vm6172, %v6113
        %6192 = vst.msk [vmem:[#allocation2 + $0x98] sm:$0xff] %vm6172, %v6115
        %6193 = vst.msk [vmem:[#allocation2 + $0xa0] sm:$0xff] %vm6172, %v6117
        %6194 = vst.msk [vmem:[#allocation2 + $0xa8] sm:$0xff] %vm6172, %v6119
        %6195 = vst.msk [vmem:[#allocation2 + $0xb0] sm:$0xff] %vm6172, %v6121
        %6196 = vst.msk [vmem:[#allocation2 + $0xb8] sm:$0xff] %vm6172, %v6123
        %6197 = vst.msk [vmem:[#allocation2 + $0xc0] sm:$0xff] %vm6172, %v6125
        %6198 = vst.msk [vmem:[#allocation2 + $0xc8] sm:$0xff] %vm6172, %v6127
        %6199 = vst.msk [vmem:[#allocation2 + $0xd0] sm:$0xff] %vm6172, %v6129
        %6200 = vst.msk [vmem:[#allocation2 + $0xd8] sm:$0xff] %vm6172, %v6131
        %6201 = vst.msk [vmem:[#allocation2 + $0xe0] sm:$0xff] %vm6172, %v6133
        %6202 = vst.msk [vmem:[#allocation2 + $0xe8] sm:$0xff] %vm6172, %v6135
        %6203 = vst.msk [vmem:[#allocation2 + $0xf0] sm:$0xff] %vm6172, %v6137
        %6204 = vst.msk [vmem:[#allocation2 + $0xf8] sm:$0xff] %vm6172, %v6139
        %v6205 = vld [vmem:[#allocation2] sm:$0xff]
        %v6206 = vld [vmem:[#allocation2 + $0x8] sm:$0xff]
        %v6207 = vld [vmem:[#allocation2 + $0x10] sm:$0xff]
        %v6208 = vld [vmem:[#allocation2 + $0x18] sm:$0xff]
        %v6209 = vld [vmem:[#allocation2 + $0x20] sm:$0xff]
        %v6210 = vld [vmem:[#allocation2 + $0x28] sm:$0xff]
        %v6211 = vld [vmem:[#allocation2 + $0x30] sm:$0xff]
        %v6212 = vld [vmem:[#allocation2 + $0x38] sm:$0xff]
        %v6213 = vld [vmem:[#allocation2 + $0x40] sm:$0xff]
        %v6214 = vld [vmem:[#allocation2 + $0x48] sm:$0xff]
        %v6215 = vld [vmem:[#allocation2 + $0x50] sm:$0xff]
        %v6216 = vld [vmem:[#allocation2 + $0x58] sm:$0xff]
        %v6217 = vld [vmem:[#allocation2 + $0x60] sm:$0xff]
        %v6218 = vld [vmem:[#allocation2 + $0x68] sm:$0xff]
        %v6219 = vld [vmem:[#allocation2 + $0x70] sm:$0xff]
        %v6220 = vld [vmem:[#allocation2 + $0x78] sm:$0xff]
        %v6221 = vld [vmem:[#allocation2 + $0x80] sm:$0xff]
        %v6222 = vld [vmem:[#allocation2 + $0x88] sm:$0xff]
        %v6223 = vld [vmem:[#allocation2 + $0x90] sm:$0xff]
        %v6224 = vld [vmem:[#allocation2 + $0x98] sm:$0xff]
        %v6225 = vld [vmem:[#allocation2 + $0xa0] sm:$0xff]
        %v6226 = vld [vmem:[#allocation2 + $0xa8] sm:$0xff]
        %v6227 = vld [vmem:[#allocation2 + $0xb0] sm:$0xff]
        %v6228 = vld [vmem:[#allocation2 + $0xb8] sm:$0xff]
        %v6229 = vld [vmem:[#allocation2 + $0xc0] sm:$0xff]
        %v6230 = vld [vmem:[#allocation2 + $0xc8] sm:$0xff]
        %v6231 = vld [vmem:[#allocation2 + $0xd0] sm:$0xff]
        %v6232 = vld [vmem:[#allocation2 + $0xd8] sm:$0xff]
        %v6233 = vld [vmem:[#allocation2 + $0xe0] sm:$0xff]
        %v6234 = vld [vmem:[#allocation2 + $0xe8] sm:$0xff]
        %v6235 = vld [vmem:[#allocation2 + $0xf0] sm:$0xff]
        %v6236 = vld [vmem:[#allocation2 + $0xf8] sm:$0xff]
        %v6237 = vld [vmem:[#allocation8] sm:$0xff]
        %v6238 = vld [vmem:[#allocation8 + $0x8] sm:$0xff]
        %v6239 = vld [vmem:[#allocation8 + $0x10] sm:$0xff]
        %v6240 = vld [vmem:[#allocation8 + $0x18] sm:$0xff]
        %v6241 = vld [vmem:[#allocation8 + $0x20] sm:$0xff]
        %v6242 = vld [vmem:[#allocation8 + $0x28] sm:$0xff]
        %v6243 = vld [vmem:[#allocation8 + $0x30] sm:$0xff]
        %v6244 = vld [vmem:[#allocation8 + $0x38] sm:$0xff]
        %v6245 = vld [vmem:[#allocation8 + $0x40] sm:$0xff]
        %v6246 = vld [vmem:[#allocation8 + $0x48] sm:$0xff]
        %v6247 = vld [vmem:[#allocation8 + $0x50] sm:$0xff]
        %v6248 = vld [vmem:[#allocation8 + $0x58] sm:$0xff]
        %v6249 = vld [vmem:[#allocation8 + $0x60] sm:$0xff]
        %v6250 = vld [vmem:[#allocation8 + $0x68] sm:$0xff]
        %v6251 = vld [vmem:[#allocation8 + $0x70] sm:$0xff]
        %v6252 = vld [vmem:[#allocation8 + $0x78] sm:$0xff]
        %v6253 = vld [vmem:[%s4] sm:$0x1]
        %v6255 = vlaneseq
        %v6256 = vshrl.u32 %v6255, 7
        %v6257 = vsub.s32 0, %v6256
        %v6258 = vrot.slane %v6253, %v6257
        %6260 = vmatprep.subr.mxu0 0.0
        %6261 = vmatpush1.msra.mxu0 %v6252
        %6262 = vmatprep.subr.mxu0 0.0
        %6263 = vmatpush1.msra.mxu0 %v6251
        %6264 = vmatprep.subr.mxu0 0.0
        %6265 = vmatpush1.msra.mxu0 %v6250
        %6266 = vmatprep.subr.mxu0 0.0
        %6267 = vmatpush1.msra.mxu0 %v6249
        %6268 = vmatprep.subr.mxu0 0.0
        %6269 = vmatpush1.msra.mxu0 %v6248
        %6270 = vmatprep.subr.mxu0 0.0
        %6271 = vmatpush1.msra.mxu0 %v6247
        %6272 = vmatprep.subr.mxu0 0.0
        %6273 = vmatpush1.msra.mxu0 %v6246
        %6274 = vmatprep.subr.mxu0 0.0
        %6275 = vmatpush1.msra.mxu0 %v6245
        %6276 = vmatprep.subr.mxu0 0.0
        %6277 = vmatpush1.msra.mxu0 %v6244
        %6278 = vmatprep.subr.mxu0 0.0
        %6279 = vmatpush1.msra.mxu0 %v6243
        %6280 = vmatprep.subr.mxu0 0.0
        %6281 = vmatpush1.msra.mxu0 %v6242
        %6282 = vmatprep.subr.mxu0 0.0
        %6283 = vmatpush1.msra.mxu0 %v6241
        %6284 = vmatprep.subr.mxu0 0.0
        %6285 = vmatpush1.msra.mxu0 %v6240
        %6286 = vmatprep.subr.mxu0 0.0
        %6287 = vmatpush1.msra.mxu0 %v6239
        %6288 = vmatprep.subr.mxu0 0.0
        %6289 = vmatpush1.msra.mxu0 %v6238
        %6290 = vmatprep.subr.mxu0 0.0
        %6291 = vmatpush1.msra.mxu0 %v6237
        %6292 = vmatprep.subr.mxu0 0.0
        %6293 = vmatpush2.msra.mxu0 0.0
        %6294 = vmatprep.subr.mxu0 0.0
        %6295 = vmatpush2.msra.mxu0 0.0
        %6296 = vmatprep.subr.mxu0 0.0
        %6297 = vmatpush2.msra.mxu0 0.0
        %6298 = vmatprep.subr.mxu0 0.0
        %6299 = vmatpush2.msra.mxu0 0.0
        %6300 = vmatprep.subr.mxu0 0.0
        %6301 = vmatpush2.msra.mxu0 0.0
        %6302 = vmatprep.subr.mxu0 0.0
        %6303 = vmatpush2.msra.mxu0 0.0
        %6304 = vmatprep.subr.mxu0 0.0
        %6305 = vmatpush2.msra.mxu0 0.0
        %6306 = vmatprep.subr.mxu0 0.0
        %6307 = vmatpush2.msra.mxu0 0.0
        %6308 = vmatprep.subr.mxu0 0.0
        %6309 = vmatpush2.msra.mxu0 0.0
        %6310 = vmatprep.subr.mxu0 0.0
        %6311 = vmatpush2.msra.mxu0 0.0
        %6312 = vmatprep.subr.mxu0 0.0
        %6313 = vmatpush2.msra.mxu0 0.0
        %6314 = vmatprep.subr.mxu0 0.0
        %6315 = vmatpush2.msra.mxu0 0.0
        %6316 = vmatprep.subr.mxu0 0.0
        %6317 = vmatpush2.msra.mxu0 0.0
        %6318 = vmatprep.subr.mxu0 0.0
        %6319 = vmatpush2.msra.mxu0 0.0
        %6320 = vmatprep.subr.mxu0 0.0
        %6321 = vmatpush2.msra.mxu0 0.0
        %6322 = vmatprep.subr.mxu0 0.0
        %6323 = vmatpush2.msra.mxu0 0.0
        %6324 = vmatprep.mubr.f32.mxu0 0.0
        %6325 = vmatmul.mubr.f32.gmra.mxu0 %v6205
        %v6326 = vpop.f32.mrf.mxu0
        %v6327 = vadd.f32 %v6258, %v6326
        %v6328 = vpop.f32.mrf.mxu0
        %6329 = vmatprep.mubr.f32.mxu0 0.0
        %6330 = vmatmul.mubr.f32.gmra.mxu0 %v6206
        %v6331 = vpop.f32.mrf.mxu0
        %v6332 = vadd.f32 %v6258, %v6331
        %v6333 = vpop.f32.mrf.mxu0
        %6334 = vmatprep.mubr.f32.mxu0 0.0
        %6335 = vmatmul.mubr.f32.gmra.mxu0 %v6207
        %v6336 = vpop.f32.mrf.mxu0
        %v6337 = vadd.f32 %v6258, %v6336
        %v6338 = vpop.f32.mrf.mxu0
        %6339 = vmatprep.mubr.f32.mxu0 0.0
        %6340 = vmatmul.mubr.f32.gmra.mxu0 %v6208
        %v6341 = vpop.f32.mrf.mxu0
        %v6342 = vadd.f32 %v6258, %v6341
        %v6343 = vpop.f32.mrf.mxu0
        %6344 = vmatprep.mubr.f32.mxu0 0.0
        %6345 = vmatmul.mubr.f32.gmra.mxu0 %v6209
        %v6346 = vpop.f32.mrf.mxu0
        %v6347 = vadd.f32 %v6258, %v6346
        %v6348 = vpop.f32.mrf.mxu0
        %6349 = vmatprep.mubr.f32.mxu0 0.0
        %6350 = vmatmul.mubr.f32.gmra.mxu0 %v6210
        %v6351 = vpop.f32.mrf.mxu0
        %v6352 = vadd.f32 %v6258, %v6351
        %v6353 = vpop.f32.mrf.mxu0
        %6354 = vmatprep.mubr.f32.mxu0 0.0
        %6355 = vmatmul.mubr.f32.gmra.mxu0 %v6211
        %v6356 = vpop.f32.mrf.mxu0
        %v6357 = vadd.f32 %v6258, %v6356
        %v6358 = vpop.f32.mrf.mxu0
        %6359 = vmatprep.mubr.f32.mxu0 0.0
        %6360 = vmatmul.mubr.f32.gmra.mxu0 %v6212
        %v6361 = vpop.f32.mrf.mxu0
        %v6362 = vadd.f32 %v6258, %v6361
        %v6363 = vpop.f32.mrf.mxu0
        %6364 = vmatprep.mubr.f32.mxu0 0.0
        %6365 = vmatmul.mubr.f32.gmra.mxu0 %v6213
        %v6366 = vpop.f32.mrf.mxu0
        %v6367 = vadd.f32 %v6258, %v6366
        %v6368 = vpop.f32.mrf.mxu0
        %6369 = vmatprep.mubr.f32.mxu0 0.0
        %6370 = vmatmul.mubr.f32.gmra.mxu0 %v6214
        %v6371 = vpop.f32.mrf.mxu0
        %v6372 = vadd.f32 %v6258, %v6371
        %v6373 = vpop.f32.mrf.mxu0
        %6374 = vmatprep.mubr.f32.mxu0 0.0
        %6375 = vmatmul.mubr.f32.gmra.mxu0 %v6215
        %v6376 = vpop.f32.mrf.mxu0
        %v6377 = vadd.f32 %v6258, %v6376
        %v6378 = vpop.f32.mrf.mxu0
        %6379 = vmatprep.mubr.f32.mxu0 0.0
        %6380 = vmatmul.mubr.f32.gmra.mxu0 %v6216
        %v6381 = vpop.f32.mrf.mxu0
        %v6382 = vadd.f32 %v6258, %v6381
        %v6383 = vpop.f32.mrf.mxu0
        %6384 = vmatprep.mubr.f32.mxu0 0.0
        %6385 = vmatmul.mubr.f32.gmra.mxu0 %v6217
        %v6386 = vpop.f32.mrf.mxu0
        %v6387 = vadd.f32 %v6258, %v6386
        %v6388 = vpop.f32.mrf.mxu0
        %6389 = vmatprep.mubr.f32.mxu0 0.0
        %6390 = vmatmul.mubr.f32.gmra.mxu0 %v6218
        %v6391 = vpop.f32.mrf.mxu0
        %v6392 = vadd.f32 %v6258, %v6391
        %v6393 = vpop.f32.mrf.mxu0
        %6394 = vmatprep.mubr.f32.mxu0 0.0
        %6395 = vmatmul.mubr.f32.gmra.mxu0 %v6219
        %v6396 = vpop.f32.mrf.mxu0
        %v6397 = vadd.f32 %v6258, %v6396
        %v6398 = vpop.f32.mrf.mxu0
        %6399 = vmatprep.mubr.f32.mxu0 0.0
        %6400 = vmatmul.mubr.f32.gmra.mxu0 %v6220
        %v6401 = vpop.f32.mrf.mxu0
        %v6402 = vadd.f32 %v6258, %v6401
        %v6403 = vpop.f32.mrf.mxu0
        %6404 = vmatprep.mubr.f32.mxu0 0.0
        %6405 = vmatmul.mubr.f32.gmra.mxu0 %v6221
        %v6406 = vpop.f32.mrf.mxu0
        %v6407 = vadd.f32 %v6258, %v6406
        %v6408 = vpop.f32.mrf.mxu0
        %6409 = vmatprep.mubr.f32.mxu0 0.0
        %6410 = vmatmul.mubr.f32.gmra.mxu0 %v6222
        %v6411 = vpop.f32.mrf.mxu0
        %v6412 = vadd.f32 %v6258, %v6411
        %v6413 = vpop.f32.mrf.mxu0
        %6414 = vmatprep.mubr.f32.mxu0 0.0
        %6415 = vmatmul.mubr.f32.gmra.mxu0 %v6223
        %v6416 = vpop.f32.mrf.mxu0
        %v6417 = vadd.f32 %v6258, %v6416
        %v6418 = vpop.f32.mrf.mxu0
        %6419 = vmatprep.mubr.f32.mxu0 0.0
        %6420 = vmatmul.mubr.f32.gmra.mxu0 %v6224
        %v6421 = vpop.f32.mrf.mxu0
        %v6422 = vadd.f32 %v6258, %v6421
        %v6423 = vpop.f32.mrf.mxu0
        %6424 = vmatprep.mubr.f32.mxu0 0.0
        %6425 = vmatmul.mubr.f32.gmra.mxu0 %v6225
        %v6426 = vpop.f32.mrf.mxu0
        %v6427 = vadd.f32 %v6258, %v6426
        %v6428 = vpop.f32.mrf.mxu0
        %6429 = vmatprep.mubr.f32.mxu0 0.0
        %6430 = vmatmul.mubr.f32.gmra.mxu0 %v6226
        %v6431 = vpop.f32.mrf.mxu0
        %v6432 = vadd.f32 %v6258, %v6431
        %v6433 = vpop.f32.mrf.mxu0
        %6434 = vmatprep.mubr.f32.mxu0 0.0
        %6435 = vmatmul.mubr.f32.gmra.mxu0 %v6227
        %v6436 = vpop.f32.mrf.mxu0
        %v6437 = vadd.f32 %v6258, %v6436
        %v6438 = vpop.f32.mrf.mxu0
        %6439 = vmatprep.mubr.f32.mxu0 0.0
        %6440 = vmatmul.mubr.f32.gmra.mxu0 %v6228
        %v6441 = vpop.f32.mrf.mxu0
        %v6442 = vadd.f32 %v6258, %v6441
        %v6443 = vpop.f32.mrf.mxu0
        %6444 = vmatprep.mubr.f32.mxu0 0.0
        %6445 = vmatmul.mubr.f32.gmra.mxu0 %v6229
        %v6446 = vpop.f32.mrf.mxu0
        %v6447 = vadd.f32 %v6258, %v6446
        %v6448 = vpop.f32.mrf.mxu0
        %6449 = vmatprep.mubr.f32.mxu0 0.0
        %6450 = vmatmul.mubr.f32.gmra.mxu0 %v6230
        %v6451 = vpop.f32.mrf.mxu0
        %v6452 = vadd.f32 %v6258, %v6451
        %v6453 = vpop.f32.mrf.mxu0
        %6454 = vmatprep.mubr.f32.mxu0 0.0
        %6455 = vmatmul.mubr.f32.gmra.mxu0 %v6231
        %v6456 = vpop.f32.mrf.mxu0
        %v6457 = vadd.f32 %v6258, %v6456
        %v6458 = vpop.f32.mrf.mxu0
        %6459 = vmatprep.mubr.f32.mxu0 0.0
        %6460 = vmatmul.mubr.f32.gmra.mxu0 %v6232
        %v6461 = vpop.f32.mrf.mxu0
        %v6462 = vadd.f32 %v6258, %v6461
        %v6463 = vpop.f32.mrf.mxu0
        %6464 = vmatprep.mubr.f32.mxu0 0.0
        %6465 = vmatmul.mubr.f32.gmra.mxu0 %v6233
        %v6466 = vpop.f32.mrf.mxu0
        %v6467 = vadd.f32 %v6258, %v6466
        %v6468 = vpop.f32.mrf.mxu0
        %6469 = vmatprep.mubr.f32.mxu0 0.0
        %6470 = vmatmul.mubr.f32.gmra.mxu0 %v6234
        %v6471 = vpop.f32.mrf.mxu0
        %v6472 = vadd.f32 %v6258, %v6471
        %v6473 = vpop.f32.mrf.mxu0
        %6474 = vmatprep.mubr.f32.mxu0 0.0
        %6475 = vmatmul.mubr.f32.gmra.mxu0 %v6235
        %v6476 = vpop.f32.mrf.mxu0
        %v6477 = vadd.f32 %v6258, %v6476
        %v6478 = vpop.f32.mrf.mxu0
        %6479 = vmatprep.mubr.f32.mxu0 0.0
        %6480 = vmatmul.mubr.f32.gmra.mxu0 %v6236
        %v6481 = vpop.f32.mrf.mxu0
        %v6482 = vadd.f32 %v6258, %v6481
        %v6483 = vpop.f32.mrf.mxu0
        %6484 = vdwg.mxu0
        %6485 = vst [vmem:[%s272] sm:$0xff] %v6327
        %6486 = vst [vmem:[%s272 + $0x8] sm:$0xff] %v6332
        %6487 = vst [vmem:[%s272 + $0x10] sm:$0xff] %v6337
        %6488 = vst [vmem:[%s272 + $0x18] sm:$0xff] %v6342
        %6489 = vst [vmem:[%s272 + $0x20] sm:$0xff] %v6347
        %6490 = vst [vmem:[%s272 + $0x28] sm:$0xff] %v6352
        %6491 = vst [vmem:[%s272 + $0x30] sm:$0xff] %v6357
        %6492 = vst [vmem:[%s272 + $0x38] sm:$0xff] %v6362
        %6493 = vst [vmem:[%s272 + $0x40] sm:$0xff] %v6367
        %6494 = vst [vmem:[%s272 + $0x48] sm:$0xff] %v6372
        %6495 = vst [vmem:[%s272 + $0x50] sm:$0xff] %v6377
        %6496 = vst [vmem:[%s272 + $0x58] sm:$0xff] %v6382
        %6497 = vst [vmem:[%s272 + $0x60] sm:$0xff] %v6387
        %6498 = vst [vmem:[%s272 + $0x68] sm:$0xff] %v6392
        %6499 = vst [vmem:[%s272 + $0x70] sm:$0xff] %v6397
        %6500 = vst [vmem:[%s272 + $0x78] sm:$0xff] %v6402
        %6501 = vst [vmem:[%s272 + $0x80] sm:$0xff] %v6407
        %6502 = vst [vmem:[%s272 + $0x88] sm:$0xff] %v6412
        %6503 = vst [vmem:[%s272 + $0x90] sm:$0xff] %v6417
        %6504 = vst [vmem:[%s272 + $0x98] sm:$0xff] %v6422
        %6505 = vst [vmem:[%s272 + $0xa0] sm:$0xff] %v6427
        %6506 = vst [vmem:[%s272 + $0xa8] sm:$0xff] %v6432
        %6507 = vst [vmem:[%s272 + $0xb0] sm:$0xff] %v6437
        %6508 = vst [vmem:[%s272 + $0xb8] sm:$0xff] %v6442
        %6509 = vst [vmem:[%s272 + $0xc0] sm:$0xff] %v6447
        %6510 = vst [vmem:[%s272 + $0xc8] sm:$0xff] %v6452
        %6511 = vst [vmem:[%s272 + $0xd0] sm:$0xff] %v6457
        %6512 = vst [vmem:[%s272 + $0xd8] sm:$0xff] %v6462
        %6513 = vst [vmem:[%s272 + $0xe0] sm:$0xff] %v6467
        %6514 = vst [vmem:[%s272 + $0xe8] sm:$0xff] %v6472
        %6515 = vst [vmem:[%s272 + $0xf0] sm:$0xff] %v6477
        %6516 = vst [vmem:[%s272 + $0xf8] sm:$0xff] %v6482
        %s6517 = sand.u32 %s141, 1
        %s6518 = scalar_lea.sflag [#allocation5], %s6517
        %s6519 = sand.u32 %s141, 1
        %s6520 = smul.addr %s6519, 256
        %s6521 = scalar_lea.vmem [#allocation9], %s6520
        // Predicated region
        $region53: #{tpu_custom_call.1} parent=39 // pred_check
          %p6522 = pneg %p151
        $region54: #{tpu_custom_call.1} parent=39 // pred_check_branch
          %6524 = sbr.rel (%p6522) target = $region56
        $region55: #{tpu_custom_call.1} parent=39 // pred_region
          %s6525 = smul.u32 2, %s23
          %s6527 = ssub.s32 4096, 4096
          %6528 = vsyncadd %s6518, %s6527
          %s6529 = smul.addr %s6525, 16
          %s6530 = smul.addr %s6529, 128
          %s6531 = scalar_lea.hbm %s5, %s6530
          %s6532 = sshll.u32 %s6521, 4
          %s6533 = int_to_ptr.vmem [resolvable:$true] %s6532
          %6538 = dma.vmem_to_hbm [thread:$0]  %s6533, 4096, %s6531, %s6518, 128, 128, 8
        $region56: #{tpu_custom_call.1} parent=39 // pred_fallthru
          _
      $region40: #{tpu_custom_call.1} parent=5 // pred_fallthru
        _
      %p6539 = scmp.le.s32.totalorder 2, %s18
      // Predicated region
      $region57: #{tpu_custom_call.1} parent=5 // pred_check
        %p6540 = pneg %p6539
      $region58: #{tpu_custom_call.1} parent=5 // pred_check_branch
        %6542 = sbr.rel (%p6540) target = $region60
      $region59: #{tpu_custom_call.1} parent=5 // pred_region
        %s6543 = ssub.s32 %s18, 2
        // Predicated region
        $region61: #{tpu_custom_call.1} parent=59 // pred_check
          %p6544 = pneg %p157
        $region62: #{tpu_custom_call.1} parent=59 // pred_check_branch
          %6546 = sbr.rel (%p6544) target = $region64
        $region63: #{tpu_custom_call.1} parent=59 // pred_region
          %s6547 = sand.u32 %s142, 1
          %s6548 = scalar_lea.sflag [#allocation5], %s6547
          %s6549 = sand.u32 %s142, 1
          %s6550 = smul.addr %s6549, 256
          %s6551 = scalar_lea.vmem [#allocation9], %s6550
          %6552 = dma.done %s6548, 4096
        $region64: #{tpu_custom_call.1} parent=59 // pred_fallthru
          _
      $region60: #{tpu_custom_call.1} parent=5 // pred_fallthru
        _
    $region6: #{tpu_custom_call.1} parent=1 // loop_footer
      %s22 = sadd.s32 1, %s18
    $region7: #{tpu_custom_call.1} parent=1 // loop_footer_branch
      %17 = sbr.rel target = $region3
    $region8: #{tpu_custom_call.1} parent=1 // loop_exit
      _
    %6553 = vsyncpa [#allocation4], 1
    %s6554 = scalar_lea.sflag [#allocation4], 1
    %6555 = vsyncpa %s6554, 1
    %6556 = vsyncpa [#allocation7], 1
    %6557 = vsyncpa [#allocation5], 1
    %s6558 = scalar_lea.sflag [#allocation5], 1
    %6559 = vsyncpa %s6558, 1

</llo_original>
